<compile_context>
chip_gen: v5e
topology: v5e:2x2
jax: 0.10.0
libtpu: 0.0.40
codegen_flags: <defaults>
</compile_context>

<pallas_src>
import functools

import jax
import jax.numpy as jnp
from jax import lax
from jax.experimental import pallas as pl
from jax.experimental.pallas import tpu as pltpu

CFG = dict(
    vocab_size=256,
    context_length=16,
    emb_dim=32,
    n_heads=4,
    n_layers=2,
    drop_rate=0.0,
    qkv_bias=False,
)
EPS = 1e-5
NEG_INF = -1e30          # large finite negative; the diagonal is never masked -> no NaNs
MATMUL_DTYPE = jnp.float32   # set to jnp.bfloat16 on v6e/v7x (per review) for native-MXU
                             # dtype; f32 keeps the embedding row-gather bit exact.


# ---------------------------------------------------------------------------
# In-kernel math helpers (pure jnp, traced inside the Pallas kernel)
# ---------------------------------------------------------------------------
def _erf(x):
    # Abramowitz & Stegun 7.1.26 rational approximation, |err| < 1.5e-7.
    p = 0.3275911
    a1, a2, a3, a4, a5 = (0.254829592, -0.284496736, 1.421413741,
                          -1.453152027, 1.061405429)
    ax = jnp.abs(x)
    t = 1.0 / (1.0 + p * ax)
    poly = ((((a5 * t + a4) * t + a3) * t + a2) * t + a1) * t
    y = 1.0 - poly * jnp.exp(-ax * ax)
    return jnp.where(x >= 0, y, -y)


def _gelu(x):
    # erf-based GELU, matching torch.nn.GELU() default.
    return 0.5 * x * (1.0 + _erf(x * 0.7071067811865476))


def _layernorm(x, scale, shift):
    # Matches torch: mean / biased var over last dim, then scale * norm + shift.
    mean = jnp.mean(x, axis=-1, keepdims=True)
    var = jnp.mean((x - mean) ** 2, axis=-1, keepdims=True)
    return scale * ((x - mean) * lax.rsqrt(var + EPS)) + shift


# ---------------------------------------------------------------------------
# Fused GPT forward kernel (one grid step == one tile of `bt` sequences)
# ---------------------------------------------------------------------------
def gpt_kernel(idx_ref, tok_ref, pos_ref, wqkv_ref, wo_ref, w1_ref, w2_ref,
               slab_ref, wout_ref, out_ref,
               *, n_layers, n_heads, seq_len, mm_dtype):
    V, D = tok_ref.shape
    M = idx_ref.shape[0]                 # bt * T rows handled in this grid step
    T = seq_len
    bt = M // T
    H = n_heads
    hd = D // H
    D4 = 4 * D
    inv_scale = jnp.float32(1.0 / (hd ** 0.5))
    cd = lambda a: a.astype(mm_dtype)    # matmul-operand cast (identity for f32)

    # ---- token embedding (exact row gather via one-hot MXU matmul) + positional ----
    idx = idx_ref[...]                                           # (M, 1) int32
    lanes = lax.broadcasted_iota(jnp.int32, (M, V), 1)
    onehot = (lanes == idx).astype(jnp.float32)                  # (M, V)
    x = jnp.dot(onehot, tok_ref[...], preferred_element_type=jnp.float32)
    x = x + pos_ref[...]                                         # (M, D)

    # Causal mask shared by every (head, sequence) pair: allowed keys k <= query q.
    row = lax.broadcasted_iota(jnp.int32, (T, T), 0)
    col = lax.broadcasted_iota(jnp.int32, (T, T), 1)
    causal = (col <= row)[None, :, :]                            # (1, T, T)

    for l in range(n_layers):                                    # static unroll
        # -------- multi-head attention (single batched path over H*bt) --------
        h = _layernorm(x, slab_ref[l, 0:1, 0:D], slab_ref[l, 1:2, 0:D])
        hb = jnp.broadcast_to(h[None], (H, M, D))                # head-batched LHS
        q = jnp.einsum('hmd,hde->hme', cd(hb), cd(wqkv_ref[3 * l + 0]),
                       preferred_element_type=jnp.float32)       # (H, M, hd)
        k = jnp.einsum('hmd,hde->hme', cd(hb), cd(wqkv_ref[3 * l + 1]),
                       preferred_element_type=jnp.float32)
        v = jnp.einsum('hmd,hde->hme', cd(hb), cd(wqkv_ref[3 * l + 2]),
                       preferred_element_type=jnp.float32)
        # (H, bt*T, hd) -> (H*bt, T, hd): leading-dim, tile-aligned reshapes only.
        q = q.reshape(H * bt, T, hd)
        k = k.reshape(H * bt, T, hd)
        v = v.reshape(H * bt, T, hd)

        s = jnp.einsum('nqd,nkd->nqk', cd(q), cd(k),
                       preferred_element_type=jnp.float32) * inv_scale
        s = jnp.where(causal, s, NEG_INF)
        s = s - jnp.max(s, axis=-1, keepdims=True)
        p = jnp.exp(s)
        p = p * pl.reciprocal(jnp.sum(p, axis=-1, keepdims=True), approx=True)
        ctx = jnp.einsum('nqk,nkd->nqd', cd(p), cd(v),
                         preferred_element_type=jnp.float32)     # (H*bt, T, hd)

        # Out-projection: sum_h ctx_h @ Wo_h  ==  concat(ctx_h) @ Wo  (no head transpose).
        ctx = ctx.reshape(H, M, hd)
        o = jnp.einsum('hme,hed->hmd', cd(ctx), cd(wo_ref[l]),
                       preferred_element_type=jnp.float32)       # (H, M, D)
        x = x + jnp.sum(o, axis=0) + slab_ref[l, 4:5, 0:D]

        # -------- feed-forward --------
        h2 = _layernorm(x, slab_ref[l, 2:3, 0:D], slab_ref[l, 3:4, 0:D])
        f = jnp.dot(cd(h2), cd(w1_ref[l]),
                    preferred_element_type=jnp.float32) + slab_ref[l, 5:6, 0:D4]
        f = _gelu(f)
        f = jnp.dot(cd(f), cd(w2_ref[l]),
                    preferred_element_type=jnp.float32) + slab_ref[l, 6:7, 0:D]
        x = x + f

    # ---- final LayerNorm + LM head (lane-dense output: V is a multiple of 128) ----
    h = _layernorm(x, slab_ref[n_layers, 0:1, 0:D], slab_ref[n_layers, 1:2, 0:D])
    out_ref[...] = jnp.dot(cd(h), cd(wout_ref[...]),
                           preferred_element_type=jnp.float32)


# ---------------------------------------------------------------------------
# Wrapper (pallas_call plumbing)
# ---------------------------------------------------------------------------
def _const_spec(shape):
    # Grid-invariant operand: whole array resident in VMEM, fetched once.
    # TODO(synk): pipeline_mode=pl.Buffered(1) would drop the (pointless) double buffer
    # for these weights; omitted to stay on the conservative API surface.
    ndim = len(shape)
    return pl.BlockSpec(shape, lambda b: (0,) * ndim)


def _pick_batch_tile(B, T, target_rows=256):
    # Largest divisor of B such that bt*T stays near a few hundred rows per grid step.
    bt = max(1, min(B, target_rows // max(T, 1)))
    while B % bt:
        bt -= 1
    return bt


def gpt_forward(in_idx, packed, cfg):
    B, T = in_idx.shape
    D, V = cfg["emb_dim"], cfg["vocab_size"]
    L, H = cfg["n_layers"], cfg["n_heads"]
    hd = D // H
    D4 = 4 * D
    W = packed["slab"].shape[-1]

    bt = _pick_batch_tile(B, T)       # sequences per grid step (grid=(1,) for small B)
    nb = B // bt
    M = bt * T

    idx = in_idx.astype(jnp.int32).reshape(B * T, 1)
    pos_tile = jnp.tile(packed["pos_emb"][:T], (bt, 1))          # (M, D), same every step

    kernel = functools.partial(gpt_kernel, n_layers=L, n_heads=H, seq_len=T,
                               mm_dtype=MATMUL_DTYPE)

    grid_spec = pltpu.PrefetchScalarGridSpec(
        num_scalar_prefetch=0,
        grid=(nb,),
        in_specs=[
            # TODO(synk): ids could ride scalar prefetch (SMEM) instead of a padded VMEM
            # tile; kept in VMEM because the one-hot gather consumes them as a vector.
            pl.BlockSpec((M, 1), lambda b: (b, 0)),              # token ids for this tile
            _const_spec((V, D)),                                 # tok_emb
            _const_spec((M, D)),                                 # tiled positional emb
            _const_spec((3 * L, H, D, hd)),                      # head-major Wq/Wk/Wv
            _const_spec((L, H, hd, D)),                          # head-major Wo
            _const_spec((L, D, D4)),                             # FF W1
            _const_spec((L, D4, D)),                             # FF W2
            _const_spec((L + 1, 8, W)),                          # LN scales/shifts + biases
            _const_spec((D, V)),                                 # LM head
        ],
        out_specs=pl.BlockSpec((M, V), lambda b: (b, 0)),
    )

    out = pl.pallas_call(
        kernel,
        out_shape=jax.ShapeDtypeStruct((B * T, V), jnp.float32),
        grid_spec=grid_spec,
        compiler_params=pltpu.CompilerParams(
            dimension_semantics=("parallel",),   # batch-tile axis; both TCs on v7x if nb>1
        ),
    )(idx, packed["tok_emb"], pos_tile,
      packed["wqkv"], packed["wo"], packed["w1"], packed["w2"],
      packed["slab"], packed["out_head"])
    return out.reshape(B, T, V)


# ---------------------------------------------------------------------------
# Parameters: natural ("flat") layout + kernel packing (head-major + bias slab)
# Weights are stored as (in_dim, out_dim) so y = x @ W + b matches torch's x @ W.T + b.
# ---------------------------------------------------------------------------
def init_params(key, cfg):
    D, V, C, L = cfg["emb_dim"], cfg["vocab_size"], cfg["context_length"], cfg["n_layers"]
    keys = jax.random.split(key, 3 + L)
    flat = dict(
        tok_emb=0.02 * jax.random.normal(keys[0], (V, D), jnp.float32),
        pos_emb=0.02 * jax.random.normal(keys[1], (C, D), jnp.float32),
        out_head=0.05 * jax.random.normal(keys[2], (D, V), jnp.float32),
        fin_s=jnp.ones((D,), jnp.float32),
        fin_b=jnp.zeros((D,), jnp.float32),
        layers=[],
    )
    for l in range(L):
        k = jax.random.split(keys[3 + l], 8)
        flat["layers"].append(dict(
            ln1_s=jnp.ones((D,), jnp.float32), ln1_b=jnp.zeros((D,), jnp.float32),
            wq=0.05 * jax.random.normal(k[0], (D, D), jnp.float32),   # qkv_bias=False
            wk=0.05 * jax.random.normal(k[1], (D, D), jnp.float32),
            wv=0.05 * jax.random.normal(k[2], (D, D), jnp.float32),
            wo=0.05 * jax.random.normal(k[3], (D, D), jnp.float32),
            bo=jnp.zeros((D,), jnp.float32),
            ln2_s=jnp.ones((D,), jnp.float32), ln2_b=jnp.zeros((D,), jnp.float32),
            w1=0.05 * jax.random.normal(k[4], (D, 4 * D), jnp.float32),
            b1=0.02 * jax.random.normal(k[5], (4 * D,), jnp.float32),
            w2=0.05 * jax.random.normal(k[6], (4 * D, D), jnp.float32),
            b2=0.02 * jax.random.normal(k[7], (D,), jnp.float32),
        ))
    return flat


def pack_params(flat, cfg):
    D, L, H = cfg["emb_dim"], cfg["n_layers"], cfg["n_heads"]
    hd = D // H
    W = max(4 * D, 128)                      # lane-padded slab width

    wqkv, wo, w1, w2, slab_rows = [], [], [], [], []
    for lp in flat["layers"]:
        for w in (lp["wq"], lp["wk"], lp["wv"]):
            # (D_in, H*hd) -> head-major (H, D_in, hd); column h*hd+e == [h, :, e].
            wqkv.append(w.reshape(D, H, hd).transpose(1, 0, 2))
        wo.append(lp["wo"].reshape(H, hd, D))            # row split -> head-major
        w1.append(lp["w1"])
        w2.append(lp["w2"])
        rows = jnp.zeros((8, W), jnp.float32)
        rows = rows.at[0, :D].set(lp["ln1_s"])
        rows = rows.at[1, :D].set(lp["ln1_b"])
        rows = rows.at[2, :D].set(lp["ln2_s"])
        rows = rows.at[3, :D].set(lp["ln2_b"])
        rows = rows.at[4, :D].set(lp["bo"])
        rows = rows.at[5, :4 * D].set(lp["b1"])
        rows = rows.at[6, :D].set(lp["b2"])
        slab_rows.append(rows)
    fin = jnp.zeros((8, W), jnp.float32)
    fin = fin.at[0, :D].set(flat["fin_s"])
    fin = fin.at[1, :D].set(flat["fin_b"])
    slab_rows.append(fin)

    return dict(
        tok_emb=flat["tok_emb"],
        pos_emb=flat["pos_emb"],
        out_head=flat["out_head"],
        wqkv=jnp.stack(wqkv, axis=0),        # (3L, H, D, hd)
        wo=jnp.stack(wo, axis=0),            # (L, H, hd, D)
        w1=jnp.stack(w1, axis=0),            # (L, D, 4D)
        w2=jnp.stack(w2, axis=0),            # (L, 4D, D)
        slab=jnp.stack(slab_rows, axis=0),   # (L+1, 8, W)
    )


# ---------------------------------------------------------------------------
# Pure-jnp reference (mirrors the PyTorch module) for a correctness self-check
# ---------------------------------------------------------------------------
def gpt_reference(in_idx, flat, cfg):
    B, T = in_idx.shape
    D, H, L = cfg["emb_dim"], cfg["n_heads"], cfg["n_layers"]
    hd = D // H

    def ln(x, s, b):
        mu = jnp.mean(x, axis=-1, keepdims=True)
        var = jnp.mean((x - mu) ** 2, axis=-1, keepdims=True)
        return s * (x - mu) / jnp.sqrt(var + EPS) + b

    x = flat["tok_emb"][in_idx] + flat["pos_emb"][:T][None, :, :]
    i = jnp.arange(T)
    causal = (i[None, :] <= i[:, None])[None, None]           # (1,1,T,T)
    for lp in flat["layers"]:
        h = ln(x, lp["ln1_s"], lp["ln1_b"])
        q = (h @ lp["wq"]).reshape(B, T, H, hd).transpose(0, 2, 1, 3)
        k = (h @ lp["wk"]).reshape(B, T, H, hd).transpose(0, 2, 1, 3)
        v = (h @ lp["wv"]).reshape(B, T, H, hd).transpose(0, 2, 1, 3)
        s = jnp.einsum('bhqd,bhkd->bhqk', q, k) / (hd ** 0.5)
        s = jnp.where(causal, s, -jnp.inf)
        p = jax.nn.softmax(s, axis=-1)
        ctx = jnp.einsum('bhqk,bhkd->bhqd', p, v).transpose(0, 2, 1, 3).reshape(B, T, D)
        x = x + ctx @ lp["wo"] + lp["bo"]
        h2 = ln(x, lp["ln2_s"], lp["ln2_b"])
        f = jax.nn.gelu(h2 @ lp["w1"] + lp["b1"], approximate=False)
        x = x + f @ lp["w2"] + lp["b2"]
    h = ln(x, flat["fin_s"], flat["fin_b"])
    return h @ flat["out_head"]


if __name__ == "__main__":
    key = jax.random.PRNGKey(0)
    pkey, ikey = jax.random.split(key)
    flat_params = init_params(pkey, CFG)
    packed_params = pack_params(flat_params, CFG)

    batch, seq_len = 2, 8
    in_idx = jax.random.randint(ikey, (batch, seq_len), 0, CFG["vocab_size"],
                                dtype=jnp.int32)

    logits = gpt_forward(in_idx, packed_params, CFG)
    jax.block_until_ready(logits)
    assert logits.shape == (batch, seq_len, CFG["vocab_size"])
    assert bool(jnp.all(jnp.isfinite(logits)))

    # Self-check vs. straightforward jnp reference (generous tol: approx-reciprocal
    # softmax denominator and the erf polynomial in GELU are intentionally approximate).
    ref = gpt_reference(in_idx, flat_params, CFG)
    err = float(jnp.max(jnp.abs(logits - ref)))
    assert err < 2e-2, f"kernel/reference mismatch: max abs err = {err}"
    print("KERNEL_OK")
</pallas_src>

<mosaic_0001>
module attributes {stable_mosaic.version = 11 : i64} {
  func.func @gpt_kernel(%arg0: i32, %arg1: memref<16x1xi32, #tpu.memory_space<vmem>>, %arg2: memref<256x32xf32, #tpu.memory_space<vmem>>, %arg3: memref<16x32xf32, #tpu.memory_space<vmem>>, %arg4: memref<6x4x32x8xf32, #tpu.memory_space<vmem>>, %arg5: memref<2x4x8x32xf32, #tpu.memory_space<vmem>>, %arg6: memref<2x32x128xf32, #tpu.memory_space<vmem>>, %arg7: memref<2x128x32xf32, #tpu.memory_space<vmem>>, %arg8: memref<3x8x128xf32, #tpu.memory_space<vmem>>, %arg9: memref<32x256xf32, #tpu.memory_space<vmem>>, %arg10: memref<16x256xf32, #tpu.memory_space<vmem>>) attributes {dimension_semantics = [#tpu.dimension_semantics<parallel>], iteration_bounds = array<i64: 1>, scalar_prefetch = 0 : i64, scratch_operands = 0 : i64, tpu.core_type = #tpu.core_type<tc>, window_params = [{transform_indices = @transform_0, window_bounds = array<i64: 16, 1>}, {pipeline_mode = #tpu.pipeline_mode<synchronous>, transform_indices = @transform_1, window_bounds = array<i64: 256, 32>}, {pipeline_mode = #tpu.pipeline_mode<synchronous>, transform_indices = @transform_2, window_bounds = array<i64: 16, 32>}, {pipeline_mode = #tpu.pipeline_mode<synchronous>, transform_indices = @transform_3, window_bounds = array<i64: 6, 4, 32, 8>}, {pipeline_mode = #tpu.pipeline_mode<synchronous>, transform_indices = @transform_4, window_bounds = array<i64: 2, 4, 8, 32>}, {pipeline_mode = #tpu.pipeline_mode<synchronous>, transform_indices = @transform_5, window_bounds = array<i64: 2, 32, 128>}, {pipeline_mode = #tpu.pipeline_mode<synchronous>, transform_indices = @transform_6, window_bounds = array<i64: 2, 128, 32>}, {pipeline_mode = #tpu.pipeline_mode<synchronous>, transform_indices = @transform_7, window_bounds = array<i64: 3, 8, 128>}, {pipeline_mode = #tpu.pipeline_mode<synchronous>, transform_indices = @transform_8, window_bounds = array<i64: 32, 256>}, {transform_indices = @transform_9, window_bounds = array<i64: 16, 256>}]} {
    %c0 = arith.constant 0 : index
    %c0_0 = arith.constant 0 : index
    %0 = vector.load %arg1[%c0, %c0_0] : memref<16x1xi32, #tpu.memory_space<vmem>>, vector<16x1xi32>
    %1 = tpu.iota {dimensions = array<i32: 1>} : vector<16x256xi32>
    %2 = vector.broadcast %0 : vector<16x1xi32> to vector<16x256xi32>
    %3 = arith.cmpi eq, %1, %2 : vector<16x256xi32>
    %4 = arith.extui %3 : vector<16x256xi1> to vector<16x256xi32>
    %5 = arith.sitofp %4 : vector<16x256xi32> to vector<16x256xf32>
    %c0_1 = arith.constant 0 : index
    %c0_2 = arith.constant 0 : index
    %6 = vector.load %arg2[%c0_1, %c0_2] : memref<256x32xf32, #tpu.memory_space<vmem>>, vector<256x32xf32>
    %cst = arith.constant dense<0.000000e+00> : vector<16x32xf32>
    %7 = tpu.matmul %5, %6, %cst {dimension_numbers = #tpu.dot_dimension_numbers<[1], [0], [0], [1], [0, 0, 1, 1], [], []>} : vector<16x256xf32>, vector<256x32xf32>, vector<16x32xf32> -> vector<16x32xf32>
    %c0_3 = arith.constant 0 : index
    %c0_4 = arith.constant 0 : index
    %8 = vector.load %arg3[%c0_3, %c0_4] : memref<16x32xf32, #tpu.memory_space<vmem>>, vector<16x32xf32>
    %9 = arith.addf %7, %8 : vector<16x32xf32>
    %10 = tpu.iota {dimensions = array<i32: 0>} : vector<8x8xi32>
    %11 = tpu.iota {dimensions = array<i32: 1>} : vector<8x8xi32>
    %12 = arith.cmpi sle, %11, %10 : vector<8x8xi32>
    %13 = vector.shape_cast %12 : vector<8x8xi1> to vector<1x8x8xi1>
    %c0_5 = arith.constant 0 : index
    %c0_6 = arith.constant 0 : index
    %c0_7 = arith.constant 0 : index
    %14 = vector.load %arg8[%c0_5, %c0_6, %c0_7] : memref<3x8x128xf32, #tpu.memory_space<vmem>>, vector<1x1x32xf32>
    %15 = vector.shape_cast %14 : vector<1x1x32xf32> to vector<1x32xf32>
    %c0_8 = arith.constant 0 : index
    %c1 = arith.constant 1 : index
    %c0_9 = arith.constant 0 : index
    %16 = vector.load %arg8[%c0_8, %c1, %c0_9] : memref<3x8x128xf32, #tpu.memory_space<vmem>>, vector<1x1x32xf32>
    %17 = vector.shape_cast %16 : vector<1x1x32xf32> to vector<1x32xf32>
    %cst_10 = arith.constant dense<0.000000e+00> : vector<16xf32>
    %18 = vector.multi_reduction <add>, %9, %cst_10 [1] : vector<16x32xf32> to vector<16xf32>
    %19 = vector.shape_cast %18 : vector<16xf32> to vector<16x1xf32>
    %cst_11 = arith.constant 3.200000e+01 : f32
    %20 = vector.broadcast %cst_11 : f32 to vector<16x1xf32>
    %21 = arith.divf %19, %20 : vector<16x1xf32>
    %22 = vector.broadcast %21 : vector<16x1xf32> to vector<16x32xf32>
    %23 = arith.subf %9, %22 : vector<16x32xf32>
    %24 = arith.mulf %23, %23 : vector<16x32xf32>
    %cst_12 = arith.constant dense<0.000000e+00> : vector<16xf32>
    %25 = vector.multi_reduction <add>, %24, %cst_12 [1] : vector<16x32xf32> to vector<16xf32>
    %26 = vector.shape_cast %25 : vector<16xf32> to vector<16x1xf32>
    %cst_13 = arith.constant 3.200000e+01 : f32
    %27 = vector.broadcast %cst_13 : f32 to vector<16x1xf32>
    %28 = arith.divf %26, %27 : vector<16x1xf32>
    %29 = vector.broadcast %21 : vector<16x1xf32> to vector<16x32xf32>
    %30 = arith.subf %9, %29 : vector<16x32xf32>
    %cst_14 = arith.constant 9.99999974E-6 : f32
    %31 = vector.broadcast %cst_14 : f32 to vector<16x1xf32>
    %32 = arith.addf %28, %31 : vector<16x1xf32>
    %33 = math.rsqrt %32 : vector<16x1xf32>
    %34 = vector.broadcast %33 : vector<16x1xf32> to vector<16x32xf32>
    %35 = arith.mulf %30, %34 : vector<16x32xf32>
    %36 = vector.broadcast %15 : vector<1x32xf32> to vector<16x32xf32>
    %37 = arith.mulf %36, %35 : vector<16x32xf32>
    %38 = vector.broadcast %17 : vector<1x32xf32> to vector<16x32xf32>
    %39 = arith.addf %37, %38 : vector<16x32xf32>
    %40 = vector.shape_cast %39 : vector<16x32xf32> to vector<1x16x32xf32>
    %41 = vector.shape_cast %40 : vector<1x16x32xf32> to vector<1x16x32xf32>
    %42 = vector.broadcast %41 : vector<1x16x32xf32> to vector<4x16x32xf32>
    %c0_15 = arith.constant 0 : index
    %c0_16 = arith.constant 0 : index
    %c0_17 = arith.constant 0 : index
    %c0_18 = arith.constant 0 : index
    %43 = vector.load %arg4[%c0_15, %c0_16, %c0_17, %c0_18] : memref<6x4x32x8xf32, #tpu.memory_space<vmem>>, vector<1x4x32x8xf32>
    %44 = vector.shape_cast %43 : vector<1x4x32x8xf32> to vector<4x32x8xf32>
    "tpu.trace_start"() <{level = 10 : i32, message = "hmd,hde->hme"}> : () -> ()
    %cst_19 = arith.constant dense<0.000000e+00> : vector<4x16x8xf32>
    %45 = tpu.matmul %42, %44, %cst_19 {dimension_numbers = #tpu.dot_dimension_numbers<[2], [1], [1], [2], [0, 0, 0, 1, 1, 2], [0], [0]>} : vector<4x16x32xf32>, vector<4x32x8xf32>, vector<4x16x8xf32> -> vector<4x16x8xf32>
    "tpu.trace_stop"() : () -> ()
    %c1_20 = arith.constant 1 : index
    %c0_21 = arith.constant 0 : index
    %c0_22 = arith.constant 0 : index
    %c0_23 = arith.constant 0 : index
    %46 = vector.load %arg4[%c1_20, %c0_21, %c0_22, %c0_23] : memref<6x4x32x8xf32, #tpu.memory_space<vmem>>, vector<1x4x32x8xf32>
    %47 = vector.shape_cast %46 : vector<1x4x32x8xf32> to vector<4x32x8xf32>
    "tpu.trace_start"() <{level = 10 : i32, message = "hmd,hde->hme"}> : () -> ()
    %cst_24 = arith.constant dense<0.000000e+00> : vector<4x16x8xf32>
    %48 = tpu.matmul %42, %47, %cst_24 {dimension_numbers = #tpu.dot_dimension_numbers<[2], [1], [1], [2], [0, 0, 0, 1, 1, 2], [0], [0]>} : vector<4x16x32xf32>, vector<4x32x8xf32>, vector<4x16x8xf32> -> vector<4x16x8xf32>
    "tpu.trace_stop"() : () -> ()
    %c2 = arith.constant 2 : index
    %c0_25 = arith.constant 0 : index
    %c0_26 = arith.constant 0 : index
    %c0_27 = arith.constant 0 : index
    %49 = vector.load %arg4[%c2, %c0_25, %c0_26, %c0_27] : memref<6x4x32x8xf32, #tpu.memory_space<vmem>>, vector<1x4x32x8xf32>
    %50 = vector.shape_cast %49 : vector<1x4x32x8xf32> to vector<4x32x8xf32>
    "tpu.trace_start"() <{level = 10 : i32, message = "hmd,hde->hme"}> : () -> ()
    %cst_28 = arith.constant dense<0.000000e+00> : vector<4x16x8xf32>
    %51 = tpu.matmul %42, %50, %cst_28 {dimension_numbers = #tpu.dot_dimension_numbers<[2], [1], [1], [2], [0, 0, 0, 1, 1, 2], [0], [0]>} : vector<4x16x32xf32>, vector<4x32x8xf32>, vector<4x16x8xf32> -> vector<4x16x8xf32>
    "tpu.trace_stop"() : () -> ()
    %52 = vector.shape_cast %45 : vector<4x16x8xf32> to vector<8x8x8xf32>
    %53 = vector.shape_cast %48 : vector<4x16x8xf32> to vector<8x8x8xf32>
    %54 = vector.shape_cast %51 : vector<4x16x8xf32> to vector<8x8x8xf32>
    "tpu.trace_start"() <{level = 10 : i32, message = "nqd,nkd->nqk"}> : () -> ()
    %cst_29 = arith.constant dense<0.000000e+00> : vector<8x8x8xf32>
    %55 = tpu.matmul %52, %53, %cst_29 {dimension_numbers = #tpu.dot_dimension_numbers<[2], [2], [1], [1], [0, 0, 0, 1, 1, 1], [0], [0]>} : vector<8x8x8xf32>, vector<8x8x8xf32>, vector<8x8x8xf32> -> vector<8x8x8xf32>
    "tpu.trace_stop"() : () -> ()
    %cst_30 = arith.constant 0.353553385 : f32
    %56 = vector.broadcast %cst_30 : f32 to vector<8x8x8xf32>
    %57 = arith.mulf %55, %56 : vector<8x8x8xf32>
    %cst_31 = arith.constant -1.000000e+30 : f32
    %58 = vector.shape_cast %13 : vector<1x8x8xi1> to vector<1x8x8xi1>
    %59 = vector.broadcast %58 : vector<1x8x8xi1> to vector<8x8x8xi1>
    %60 = vector.broadcast %cst_31 : f32 to vector<8x8x8xf32>
    %61 = arith.select %59, %57, %60 : vector<8x8x8xi1>, vector<8x8x8xf32>
    %cst_32 = arith.constant dense<0xFF800000> : vector<8x8xf32>
    %62 = vector.multi_reduction <maximumf>, %61, %cst_32 [2] : vector<8x8x8xf32> to vector<8x8xf32>
    %63 = vector.shape_cast %62 : vector<8x8xf32> to vector<8x8x1xf32>
    %64 = vector.broadcast %63 : vector<8x8x1xf32> to vector<8x8x8xf32>
    %65 = arith.subf %61, %64 : vector<8x8x8xf32>
    %66 = math.exp %65 : vector<8x8x8xf32>
    %cst_33 = arith.constant dense<0.000000e+00> : vector<8x8xf32>
    %67 = vector.multi_reduction <add>, %66, %cst_33 [2] : vector<8x8x8xf32> to vector<8x8xf32>
    %68 = vector.shape_cast %67 : vector<8x8xf32> to vector<8x8x1xf32>
    %69 = tpu.reciprocal %68 {approx = true} : vector<8x8x1xf32> -> vector<8x8x1xf32>
    %70 = vector.broadcast %69 : vector<8x8x1xf32> to vector<8x8x8xf32>
    %71 = arith.mulf %66, %70 : vector<8x8x8xf32>
    "tpu.trace_start"() <{level = 10 : i32, message = "nqk,nkd->nqd"}> : () -> ()
    %cst_34 = arith.constant dense<0.000000e+00> : vector<8x8x8xf32>
    %72 = tpu.matmul %71, %54, %cst_34 {dimension_numbers = #tpu.dot_dimension_numbers<[2], [1], [1], [2], [0, 0, 0, 1, 1, 2], [0], [0]>} : vector<8x8x8xf32>, vector<8x8x8xf32>, vector<8x8x8xf32> -> vector<8x8x8xf32>
    "tpu.trace_stop"() : () -> ()
    %73 = vector.shape_cast %72 : vector<8x8x8xf32> to vector<4x16x8xf32>
    %c0_35 = arith.constant 0 : index
    %c0_36 = arith.constant 0 : index
    %c0_37 = arith.constant 0 : index
    %c0_38 = arith.constant 0 : index
    %74 = vector.load %arg5[%c0_35, %c0_36, %c0_37, %c0_38] : memref<2x4x8x32xf32, #tpu.memory_space<vmem>>, vector<1x4x8x32xf32>
    %75 = vector.shape_cast %74 : vector<1x4x8x32xf32> to vector<4x8x32xf32>
    "tpu.trace_start"() <{level = 10 : i32, message = "hme,hed->hmd"}> : () -> ()
    %cst_39 = arith.constant dense<0.000000e+00> : vector<4x16x32xf32>
    %76 = tpu.matmul %73, %75, %cst_39 {dimension_numbers = #tpu.dot_dimension_numbers<[2], [1], [1], [2], [0, 0, 0, 1, 1, 2], [0], [0]>} : vector<4x16x8xf32>, vector<4x8x32xf32>, vector<4x16x32xf32> -> vector<4x16x32xf32>
    "tpu.trace_stop"() : () -> ()
    %cst_40 = arith.constant dense<0.000000e+00> : vector<16x32xf32>
    %77 = vector.multi_reduction <add>, %76, %cst_40 [0] : vector<4x16x32xf32> to vector<16x32xf32>
    %78 = arith.addf %9, %77 : vector<16x32xf32>
    %c0_41 = arith.constant 0 : index
    %c4 = arith.constant 4 : index
    %c0_42 = arith.constant 0 : index
    %79 = vector.load %arg8[%c0_41, %c4, %c0_42] : memref<3x8x128xf32, #tpu.memory_space<vmem>>, vector<1x1x32xf32>
    %80 = vector.shape_cast %79 : vector<1x1x32xf32> to vector<1x32xf32>
    %81 = vector.broadcast %80 : vector<1x32xf32> to vector<16x32xf32>
    %82 = arith.addf %78, %81 : vector<16x32xf32>
    %c0_43 = arith.constant 0 : index
    %c2_44 = arith.constant 2 : index
    %c0_45 = arith.constant 0 : index
    %83 = vector.load %arg8[%c0_43, %c2_44, %c0_45] : memref<3x8x128xf32, #tpu.memory_space<vmem>>, vector<1x1x32xf32>
    %84 = vector.shape_cast %83 : vector<1x1x32xf32> to vector<1x32xf32>
    %c0_46 = arith.constant 0 : index
    %c3 = arith.constant 3 : index
    %c0_47 = arith.constant 0 : index
    %85 = vector.load %arg8[%c0_46, %c3, %c0_47] : memref<3x8x128xf32, #tpu.memory_space<vmem>>, vector<1x1x32xf32>
    %86 = vector.shape_cast %85 : vector<1x1x32xf32> to vector<1x32xf32>
    %cst_48 = arith.constant dense<0.000000e+00> : vector<16xf32>
    %87 = vector.multi_reduction <add>, %82, %cst_48 [1] : vector<16x32xf32> to vector<16xf32>
    %88 = vector.shape_cast %87 : vector<16xf32> to vector<16x1xf32>
    %cst_49 = arith.constant 3.200000e+01 : f32
    %89 = vector.broadcast %cst_49 : f32 to vector<16x1xf32>
    %90 = arith.divf %88, %89 : vector<16x1xf32>
    %91 = vector.broadcast %90 : vector<16x1xf32> to vector<16x32xf32>
    %92 = arith.subf %82, %91 : vector<16x32xf32>
    %93 = arith.mulf %92, %92 : vector<16x32xf32>
    %cst_50 = arith.constant dense<0.000000e+00> : vector<16xf32>
    %94 = vector.multi_reduction <add>, %93, %cst_50 [1] : vector<16x32xf32> to vector<16xf32>
    %95 = vector.shape_cast %94 : vector<16xf32> to vector<16x1xf32>
    %cst_51 = arith.constant 3.200000e+01 : f32
    %96 = vector.broadcast %cst_51 : f32 to vector<16x1xf32>
    %97 = arith.divf %95, %96 : vector<16x1xf32>
    %98 = vector.broadcast %90 : vector<16x1xf32> to vector<16x32xf32>
    %99 = arith.subf %82, %98 : vector<16x32xf32>
    %cst_52 = arith.constant 9.99999974E-6 : f32
    %100 = vector.broadcast %cst_52 : f32 to vector<16x1xf32>
    %101 = arith.addf %97, %100 : vector<16x1xf32>
    %102 = math.rsqrt %101 : vector<16x1xf32>
    %103 = vector.broadcast %102 : vector<16x1xf32> to vector<16x32xf32>
    %104 = arith.mulf %99, %103 : vector<16x32xf32>
    %105 = vector.broadcast %84 : vector<1x32xf32> to vector<16x32xf32>
    %106 = arith.mulf %105, %104 : vector<16x32xf32>
    %107 = vector.broadcast %86 : vector<1x32xf32> to vector<16x32xf32>
    %108 = arith.addf %106, %107 : vector<16x32xf32>
    %c0_53 = arith.constant 0 : index
    %c0_54 = arith.constant 0 : index
    %c0_55 = arith.constant 0 : index
    %109 = vector.load %arg6[%c0_53, %c0_54, %c0_55] : memref<2x32x128xf32, #tpu.memory_space<vmem>>, vector<1x32x128xf32>
    %110 = vector.shape_cast %109 : vector<1x32x128xf32> to vector<32x128xf32>
    %cst_56 = arith.constant dense<0.000000e+00> : vector<16x128xf32>
    %111 = tpu.matmul %108, %110, %cst_56 {dimension_numbers = #tpu.dot_dimension_numbers<[1], [0], [0], [1], [0, 0, 1, 1], [], []>} : vector<16x32xf32>, vector<32x128xf32>, vector<16x128xf32> -> vector<16x128xf32>
    %c0_57 = arith.constant 0 : index
    %c5 = arith.constant 5 : index
    %c0_58 = arith.constant 0 : index
    %112 = vector.load %arg8[%c0_57, %c5, %c0_58] : memref<3x8x128xf32, #tpu.memory_space<vmem>>, vector<1x1x128xf32>
    %113 = vector.shape_cast %112 : vector<1x1x128xf32> to vector<1x128xf32>
    %114 = vector.broadcast %113 : vector<1x128xf32> to vector<16x128xf32>
    %115 = arith.addf %111, %114 : vector<16x128xf32>
    %cst_59 = arith.constant 5.000000e-01 : f32
    %116 = vector.broadcast %cst_59 : f32 to vector<16x128xf32>
    %117 = arith.mulf %116, %115 : vector<16x128xf32>
    %cst_60 = arith.constant 0.707106769 : f32
    %118 = vector.broadcast %cst_60 : f32 to vector<16x128xf32>
    %119 = arith.mulf %115, %118 : vector<16x128xf32>
    %120 = math.absf %119 : vector<16x128xf32>
    %cst_61 = arith.constant 0.327591091 : f32
    %121 = vector.broadcast %cst_61 : f32 to vector<16x128xf32>
    %122 = arith.mulf %121, %120 : vector<16x128xf32>
    %cst_62 = arith.constant 1.000000e+00 : f32
    %123 = vector.broadcast %cst_62 : f32 to vector<16x128xf32>
    %124 = arith.addf %123, %122 : vector<16x128xf32>
    %cst_63 = arith.constant 1.000000e+00 : f32
    %125 = vector.broadcast %cst_63 : f32 to vector<16x128xf32>
    %126 = arith.divf %125, %124 : vector<16x128xf32>
    %cst_64 = arith.constant 1.06140542 : f32
    %127 = vector.broadcast %cst_64 : f32 to vector<16x128xf32>
    %128 = arith.mulf %127, %126 : vector<16x128xf32>
    %cst_65 = arith.constant -1.45315206 : f32
    %129 = vector.broadcast %cst_65 : f32 to vector<16x128xf32>
    %130 = arith.addf %128, %129 : vector<16x128xf32>
    %131 = arith.mulf %130, %126 : vector<16x128xf32>
    %cst_66 = arith.constant 1.42141378 : f32
    %132 = vector.broadcast %cst_66 : f32 to vector<16x128xf32>
    %133 = arith.addf %131, %132 : vector<16x128xf32>
    %134 = arith.mulf %133, %126 : vector<16x128xf32>
    %cst_67 = arith.constant -0.284496725 : f32
    %135 = vector.broadcast %cst_67 : f32 to vector<16x128xf32>
    %136 = arith.addf %134, %135 : vector<16x128xf32>
    %137 = arith.mulf %136, %126 : vector<16x128xf32>
    %cst_68 = arith.constant 0.254829586 : f32
    %138 = vector.broadcast %cst_68 : f32 to vector<16x128xf32>
    %139 = arith.addf %137, %138 : vector<16x128xf32>
    %140 = arith.mulf %139, %126 : vector<16x128xf32>
    %cst_69 = arith.constant 0.000000e+00 : f32
    %141 = vector.broadcast %cst_69 : f32 to vector<16x128xf32>
    %142 = arith.subf %141, %120 : vector<16x128xf32>
    %143 = arith.mulf %142, %120 : vector<16x128xf32>
    %144 = math.exp %143 : vector<16x128xf32>
    %145 = arith.mulf %140, %144 : vector<16x128xf32>
    %cst_70 = arith.constant 1.000000e+00 : f32
    %146 = vector.broadcast %cst_70 : f32 to vector<16x128xf32>
    %147 = arith.subf %146, %145 : vector<16x128xf32>
    %cst_71 = arith.constant 0.000000e+00 : f32
    %148 = vector.broadcast %cst_71 : f32 to vector<16x128xf32>
    %149 = arith.cmpf oge, %119, %148 : vector<16x128xf32>
    %cst_72 = arith.constant 0.000000e+00 : f32
    %150 = vector.broadcast %cst_72 : f32 to vector<16x128xf32>
    %151 = arith.subf %150, %147 : vector<16x128xf32>
    %152 = arith.select %149, %147, %151 : vector<16x128xi1>, vector<16x128xf32>
    %cst_73 = arith.constant 1.000000e+00 : f32
    %153 = vector.broadcast %cst_73 : f32 to vector<16x128xf32>
    %154 = arith.addf %153, %152 : vector<16x128xf32>
    %155 = arith.mulf %117, %154 : vector<16x128xf32>
    %c0_74 = arith.constant 0 : index
    %c0_75 = arith.constant 0 : index
    %c0_76 = arith.constant 0 : index
    %156 = vector.load %arg7[%c0_74, %c0_75, %c0_76] : memref<2x128x32xf32, #tpu.memory_space<vmem>>, vector<1x128x32xf32>
    %157 = vector.shape_cast %156 : vector<1x128x32xf32> to vector<128x32xf32>
    %cst_77 = arith.constant dense<0.000000e+00> : vector<16x32xf32>
    %158 = tpu.matmul %155, %157, %cst_77 {dimension_numbers = #tpu.dot_dimension_numbers<[1], [0], [0], [1], [0, 0, 1, 1], [], []>} : vector<16x128xf32>, vector<128x32xf32>, vector<16x32xf32> -> vector<16x32xf32>
    %c0_78 = arith.constant 0 : index
    %c6 = arith.constant 6 : index
    %c0_79 = arith.constant 0 : index
    %159 = vector.load %arg8[%c0_78, %c6, %c0_79] : memref<3x8x128xf32, #tpu.memory_space<vmem>>, vector<1x1x32xf32>
    %160 = vector.shape_cast %159 : vector<1x1x32xf32> to vector<1x32xf32>
    %161 = vector.broadcast %160 : vector<1x32xf32> to vector<16x32xf32>
    %162 = arith.addf %158, %161 : vector<16x32xf32>
    %163 = arith.addf %82, %162 : vector<16x32xf32>
    %c1_80 = arith.constant 1 : index
    %c0_81 = arith.constant 0 : index
    %c0_82 = arith.constant 0 : index
    %164 = vector.load %arg8[%c1_80, %c0_81, %c0_82] : memref<3x8x128xf32, #tpu.memory_space<vmem>>, vector<1x1x32xf32>
    %165 = vector.shape_cast %164 : vector<1x1x32xf32> to vector<1x32xf32>
    %c1_83 = arith.constant 1 : index
    %c1_84 = arith.constant 1 : index
    %c0_85 = arith.constant 0 : index
    %166 = vector.load %arg8[%c1_83, %c1_84, %c0_85] : memref<3x8x128xf32, #tpu.memory_space<vmem>>, vector<1x1x32xf32>
    %167 = vector.shape_cast %166 : vector<1x1x32xf32> to vector<1x32xf32>
    %cst_86 = arith.constant dense<0.000000e+00> : vector<16xf32>
    %168 = vector.multi_reduction <add>, %163, %cst_86 [1] : vector<16x32xf32> to vector<16xf32>
    %169 = vector.shape_cast %168 : vector<16xf32> to vector<16x1xf32>
    %cst_87 = arith.constant 3.200000e+01 : f32
    %170 = vector.broadcast %cst_87 : f32 to vector<16x1xf32>
    %171 = arith.divf %169, %170 : vector<16x1xf32>
    %172 = vector.broadcast %171 : vector<16x1xf32> to vector<16x32xf32>
    %173 = arith.subf %163, %172 : vector<16x32xf32>
    %174 = arith.mulf %173, %173 : vector<16x32xf32>
    %cst_88 = arith.constant dense<0.000000e+00> : vector<16xf32>
    %175 = vector.multi_reduction <add>, %174, %cst_88 [1] : vector<16x32xf32> to vector<16xf32>
    %176 = vector.shape_cast %175 : vector<16xf32> to vector<16x1xf32>
    %cst_89 = arith.constant 3.200000e+01 : f32
    %177 = vector.broadcast %cst_89 : f32 to vector<16x1xf32>
    %178 = arith.divf %176, %177 : vector<16x1xf32>
    %179 = vector.broadcast %171 : vector<16x1xf32> to vector<16x32xf32>
    %180 = arith.subf %163, %179 : vector<16x32xf32>
    %cst_90 = arith.constant 9.99999974E-6 : f32
    %181 = vector.broadcast %cst_90 : f32 to vector<16x1xf32>
    %182 = arith.addf %178, %181 : vector<16x1xf32>
    %183 = math.rsqrt %182 : vector<16x1xf32>
    %184 = vector.broadcast %183 : vector<16x1xf32> to vector<16x32xf32>
    %185 = arith.mulf %180, %184 : vector<16x32xf32>
    %186 = vector.broadcast %165 : vector<1x32xf32> to vector<16x32xf32>
    %187 = arith.mulf %186, %185 : vector<16x32xf32>
    %188 = vector.broadcast %167 : vector<1x32xf32> to vector<16x32xf32>
    %189 = arith.addf %187, %188 : vector<16x32xf32>
    %190 = vector.shape_cast %189 : vector<16x32xf32> to vector<1x16x32xf32>
    %191 = vector.shape_cast %190 : vector<1x16x32xf32> to vector<1x16x32xf32>
    %192 = vector.broadcast %191 : vector<1x16x32xf32> to vector<4x16x32xf32>
    %c3_91 = arith.constant 3 : index
    %c0_92 = arith.constant 0 : index
    %c0_93 = arith.constant 0 : index
    %c0_94 = arith.constant 0 : index
    %193 = vector.load %arg4[%c3_91, %c0_92, %c0_93, %c0_94] : memref<6x4x32x8xf32, #tpu.memory_space<vmem>>, vector<1x4x32x8xf32>
    %194 = vector.shape_cast %193 : vector<1x4x32x8xf32> to vector<4x32x8xf32>
    "tpu.trace_start"() <{level = 10 : i32, message = "hmd,hde->hme"}> : () -> ()
    %cst_95 = arith.constant dense<0.000000e+00> : vector<4x16x8xf32>
    %195 = tpu.matmul %192, %194, %cst_95 {dimension_numbers = #tpu.dot_dimension_numbers<[2], [1], [1], [2], [0, 0, 0, 1, 1, 2], [0], [0]>} : vector<4x16x32xf32>, vector<4x32x8xf32>, vector<4x16x8xf32> -> vector<4x16x8xf32>
    "tpu.trace_stop"() : () -> ()
    %c4_96 = arith.constant 4 : index
    %c0_97 = arith.constant 0 : index
    %c0_98 = arith.constant 0 : index
    %c0_99 = arith.constant 0 : index
    %196 = vector.load %arg4[%c4_96, %c0_97, %c0_98, %c0_99] : memref<6x4x32x8xf32, #tpu.memory_space<vmem>>, vector<1x4x32x8xf32>
    %197 = vector.shape_cast %196 : vector<1x4x32x8xf32> to vector<4x32x8xf32>
    "tpu.trace_start"() <{level = 10 : i32, message = "hmd,hde->hme"}> : () -> ()
    %cst_100 = arith.constant dense<0.000000e+00> : vector<4x16x8xf32>
    %198 = tpu.matmul %192, %197, %cst_100 {dimension_numbers = #tpu.dot_dimension_numbers<[2], [1], [1], [2], [0, 0, 0, 1, 1, 2], [0], [0]>} : vector<4x16x32xf32>, vector<4x32x8xf32>, vector<4x16x8xf32> -> vector<4x16x8xf32>
    "tpu.trace_stop"() : () -> ()
    %c5_101 = arith.constant 5 : index
    %c0_102 = arith.constant 0 : index
    %c0_103 = arith.constant 0 : index
    %c0_104 = arith.constant 0 : index
    %199 = vector.load %arg4[%c5_101, %c0_102, %c0_103, %c0_104] : memref<6x4x32x8xf32, #tpu.memory_space<vmem>>, vector<1x4x32x8xf32>
    %200 = vector.shape_cast %199 : vector<1x4x32x8xf32> to vector<4x32x8xf32>
    "tpu.trace_start"() <{level = 10 : i32, message = "hmd,hde->hme"}> : () -> ()
    %cst_105 = arith.constant dense<0.000000e+00> : vector<4x16x8xf32>
    %201 = tpu.matmul %192, %200, %cst_105 {dimension_numbers = #tpu.dot_dimension_numbers<[2], [1], [1], [2], [0, 0, 0, 1, 1, 2], [0], [0]>} : vector<4x16x32xf32>, vector<4x32x8xf32>, vector<4x16x8xf32> -> vector<4x16x8xf32>
    "tpu.trace_stop"() : () -> ()
    %202 = vector.shape_cast %195 : vector<4x16x8xf32> to vector<8x8x8xf32>
    %203 = vector.shape_cast %198 : vector<4x16x8xf32> to vector<8x8x8xf32>
    %204 = vector.shape_cast %201 : vector<4x16x8xf32> to vector<8x8x8xf32>
    "tpu.trace_start"() <{level = 10 : i32, message = "nqd,nkd->nqk"}> : () -> ()
    %cst_106 = arith.constant dense<0.000000e+00> : vector<8x8x8xf32>
    %205 = tpu.matmul %202, %203, %cst_106 {dimension_numbers = #tpu.dot_dimension_numbers<[2], [2], [1], [1], [0, 0, 0, 1, 1, 1], [0], [0]>} : vector<8x8x8xf32>, vector<8x8x8xf32>, vector<8x8x8xf32> -> vector<8x8x8xf32>
    "tpu.trace_stop"() : () -> ()
    %cst_107 = arith.constant 0.353553385 : f32
    %206 = vector.broadcast %cst_107 : f32 to vector<8x8x8xf32>
    %207 = arith.mulf %205, %206 : vector<8x8x8xf32>
    %cst_108 = arith.constant -1.000000e+30 : f32
    %208 = vector.shape_cast %13 : vector<1x8x8xi1> to vector<1x8x8xi1>
    %209 = vector.broadcast %208 : vector<1x8x8xi1> to vector<8x8x8xi1>
    %210 = vector.broadcast %cst_108 : f32 to vector<8x8x8xf32>
    %211 = arith.select %209, %207, %210 : vector<8x8x8xi1>, vector<8x8x8xf32>
    %cst_109 = arith.constant dense<0xFF800000> : vector<8x8xf32>
    %212 = vector.multi_reduction <maximumf>, %211, %cst_109 [2] : vector<8x8x8xf32> to vector<8x8xf32>
    %213 = vector.shape_cast %212 : vector<8x8xf32> to vector<8x8x1xf32>
    %214 = vector.broadcast %213 : vector<8x8x1xf32> to vector<8x8x8xf32>
    %215 = arith.subf %211, %214 : vector<8x8x8xf32>
    %216 = math.exp %215 : vector<8x8x8xf32>
    %cst_110 = arith.constant dense<0.000000e+00> : vector<8x8xf32>
    %217 = vector.multi_reduction <add>, %216, %cst_110 [2] : vector<8x8x8xf32> to vector<8x8xf32>
    %218 = vector.shape_cast %217 : vector<8x8xf32> to vector<8x8x1xf32>
    %219 = tpu.reciprocal %218 {approx = true} : vector<8x8x1xf32> -> vector<8x8x1xf32>
    %220 = vector.broadcast %219 : vector<8x8x1xf32> to vector<8x8x8xf32>
    %221 = arith.mulf %216, %220 : vector<8x8x8xf32>
    "tpu.trace_start"() <{level = 10 : i32, message = "nqk,nkd->nqd"}> : () -> ()
    %cst_111 = arith.constant dense<0.000000e+00> : vector<8x8x8xf32>
    %222 = tpu.matmul %221, %204, %cst_111 {dimension_numbers = #tpu.dot_dimension_numbers<[2], [1], [1], [2], [0, 0, 0, 1, 1, 2], [0], [0]>} : vector<8x8x8xf32>, vector<8x8x8xf32>, vector<8x8x8xf32> -> vector<8x8x8xf32>
    "tpu.trace_stop"() : () -> ()
    %223 = vector.shape_cast %222 : vector<8x8x8xf32> to vector<4x16x8xf32>
    %c1_112 = arith.constant 1 : index
    %c0_113 = arith.constant 0 : index
    %c0_114 = arith.constant 0 : index
    %c0_115 = arith.constant 0 : index
    %224 = vector.load %arg5[%c1_112, %c0_113, %c0_114, %c0_115] : memref<2x4x8x32xf32, #tpu.memory_space<vmem>>, vector<1x4x8x32xf32>
    %225 = vector.shape_cast %224 : vector<1x4x8x32xf32> to vector<4x8x32xf32>
    "tpu.trace_start"() <{level = 10 : i32, message = "hme,hed->hmd"}> : () -> ()
    %cst_116 = arith.constant dense<0.000000e+00> : vector<4x16x32xf32>
    %226 = tpu.matmul %223, %225, %cst_116 {dimension_numbers = #tpu.dot_dimension_numbers<[2], [1], [1], [2], [0, 0, 0, 1, 1, 2], [0], [0]>} : vector<4x16x8xf32>, vector<4x8x32xf32>, vector<4x16x32xf32> -> vector<4x16x32xf32>
    "tpu.trace_stop"() : () -> ()
    %cst_117 = arith.constant dense<0.000000e+00> : vector<16x32xf32>
    %227 = vector.multi_reduction <add>, %226, %cst_117 [0] : vector<4x16x32xf32> to vector<16x32xf32>
    %228 = arith.addf %163, %227 : vector<16x32xf32>
    %c1_118 = arith.constant 1 : index
    %c4_119 = arith.constant 4 : index
    %c0_120 = arith.constant 0 : index
    %229 = vector.load %arg8[%c1_118, %c4_119, %c0_120] : memref<3x8x128xf32, #tpu.memory_space<vmem>>, vector<1x1x32xf32>
    %230 = vector.shape_cast %229 : vector<1x1x32xf32> to vector<1x32xf32>
    %231 = vector.broadcast %230 : vector<1x32xf32> to vector<16x32xf32>
    %232 = arith.addf %228, %231 : vector<16x32xf32>
    %c1_121 = arith.constant 1 : index
    %c2_122 = arith.constant 2 : index
    %c0_123 = arith.constant 0 : index
    %233 = vector.load %arg8[%c1_121, %c2_122, %c0_123] : memref<3x8x128xf32, #tpu.memory_space<vmem>>, vector<1x1x32xf32>
    %234 = vector.shape_cast %233 : vector<1x1x32xf32> to vector<1x32xf32>
    %c1_124 = arith.constant 1 : index
    %c3_125 = arith.constant 3 : index
    %c0_126 = arith.constant 0 : index
    %235 = vector.load %arg8[%c1_124, %c3_125, %c0_126] : memref<3x8x128xf32, #tpu.memory_space<vmem>>, vector<1x1x32xf32>
    %236 = vector.shape_cast %235 : vector<1x1x32xf32> to vector<1x32xf32>
    %cst_127 = arith.constant dense<0.000000e+00> : vector<16xf32>
    %237 = vector.multi_reduction <add>, %232, %cst_127 [1] : vector<16x32xf32> to vector<16xf32>
    %238 = vector.shape_cast %237 : vector<16xf32> to vector<16x1xf32>
    %cst_128 = arith.constant 3.200000e+01 : f32
    %239 = vector.broadcast %cst_128 : f32 to vector<16x1xf32>
    %240 = arith.divf %238, %239 : vector<16x1xf32>
    %241 = vector.broadcast %240 : vector<16x1xf32> to vector<16x32xf32>
    %242 = arith.subf %232, %241 : vector<16x32xf32>
    %243 = arith.mulf %242, %242 : vector<16x32xf32>
    %cst_129 = arith.constant dense<0.000000e+00> : vector<16xf32>
    %244 = vector.multi_reduction <add>, %243, %cst_129 [1] : vector<16x32xf32> to vector<16xf32>
    %245 = vector.shape_cast %244 : vector<16xf32> to vector<16x1xf32>
    %cst_130 = arith.constant 3.200000e+01 : f32
    %246 = vector.broadcast %cst_130 : f32 to vector<16x1xf32>
    %247 = arith.divf %245, %246 : vector<16x1xf32>
    %248 = vector.broadcast %240 : vector<16x1xf32> to vector<16x32xf32>
    %249 = arith.subf %232, %248 : vector<16x32xf32>
    %cst_131 = arith.constant 9.99999974E-6 : f32
    %250 = vector.broadcast %cst_131 : f32 to vector<16x1xf32>
    %251 = arith.addf %247, %250 : vector<16x1xf32>
    %252 = math.rsqrt %251 : vector<16x1xf32>
    %253 = vector.broadcast %252 : vector<16x1xf32> to vector<16x32xf32>
    %254 = arith.mulf %249, %253 : vector<16x32xf32>
    %255 = vector.broadcast %234 : vector<1x32xf32> to vector<16x32xf32>
    %256 = arith.mulf %255, %254 : vector<16x32xf32>
    %257 = vector.broadcast %236 : vector<1x32xf32> to vector<16x32xf32>
    %258 = arith.addf %256, %257 : vector<16x32xf32>
    %c1_132 = arith.constant 1 : index
    %c0_133 = arith.constant 0 : index
    %c0_134 = arith.constant 0 : index
    %259 = vector.load %arg6[%c1_132, %c0_133, %c0_134] : memref<2x32x128xf32, #tpu.memory_space<vmem>>, vector<1x32x128xf32>
    %260 = vector.shape_cast %259 : vector<1x32x128xf32> to vector<32x128xf32>
    %cst_135 = arith.constant dense<0.000000e+00> : vector<16x128xf32>
    %261 = tpu.matmul %258, %260, %cst_135 {dimension_numbers = #tpu.dot_dimension_numbers<[1], [0], [0], [1], [0, 0, 1, 1], [], []>} : vector<16x32xf32>, vector<32x128xf32>, vector<16x128xf32> -> vector<16x128xf32>
    %c1_136 = arith.constant 1 : index
    %c5_137 = arith.constant 5 : index
    %c0_138 = arith.constant 0 : index
    %262 = vector.load %arg8[%c1_136, %c5_137, %c0_138] : memref<3x8x128xf32, #tpu.memory_space<vmem>>, vector<1x1x128xf32>
    %263 = vector.shape_cast %262 : vector<1x1x128xf32> to vector<1x128xf32>
    %264 = vector.broadcast %263 : vector<1x128xf32> to vector<16x128xf32>
    %265 = arith.addf %261, %264 : vector<16x128xf32>
    %cst_139 = arith.constant 5.000000e-01 : f32
    %266 = vector.broadcast %cst_139 : f32 to vector<16x128xf32>
    %267 = arith.mulf %266, %265 : vector<16x128xf32>
    %cst_140 = arith.constant 0.707106769 : f32
    %268 = vector.broadcast %cst_140 : f32 to vector<16x128xf32>
    %269 = arith.mulf %265, %268 : vector<16x128xf32>
    %270 = math.absf %269 : vector<16x128xf32>
    %cst_141 = arith.constant 0.327591091 : f32
    %271 = vector.broadcast %cst_141 : f32 to vector<16x128xf32>
    %272 = arith.mulf %271, %270 : vector<16x128xf32>
    %cst_142 = arith.constant 1.000000e+00 : f32
    %273 = vector.broadcast %cst_142 : f32 to vector<16x128xf32>
    %274 = arith.addf %273, %272 : vector<16x128xf32>
    %cst_143 = arith.constant 1.000000e+00 : f32
    %275 = vector.broadcast %cst_143 : f32 to vector<16x128xf32>
    %276 = arith.divf %275, %274 : vector<16x128xf32>
    %cst_144 = arith.constant 1.06140542 : f32
    %277 = vector.broadcast %cst_144 : f32 to vector<16x128xf32>
    %278 = arith.mulf %277, %276 : vector<16x128xf32>
    %cst_145 = arith.constant -1.45315206 : f32
    %279 = vector.broadcast %cst_145 : f32 to vector<16x128xf32>
    %280 = arith.addf %278, %279 : vector<16x128xf32>
    %281 = arith.mulf %280, %276 : vector<16x128xf32>
    %cst_146 = arith.constant 1.42141378 : f32
    %282 = vector.broadcast %cst_146 : f32 to vector<16x128xf32>
    %283 = arith.addf %281, %282 : vector<16x128xf32>
    %284 = arith.mulf %283, %276 : vector<16x128xf32>
    %cst_147 = arith.constant -0.284496725 : f32
    %285 = vector.broadcast %cst_147 : f32 to vector<16x128xf32>
    %286 = arith.addf %284, %285 : vector<16x128xf32>
    %287 = arith.mulf %286, %276 : vector<16x128xf32>
    %cst_148 = arith.constant 0.254829586 : f32
    %288 = vector.broadcast %cst_148 : f32 to vector<16x128xf32>
    %289 = arith.addf %287, %288 : vector<16x128xf32>
    %290 = arith.mulf %289, %276 : vector<16x128xf32>
    %cst_149 = arith.constant 0.000000e+00 : f32
    %291 = vector.broadcast %cst_149 : f32 to vector<16x128xf32>
    %292 = arith.subf %291, %270 : vector<16x128xf32>
    %293 = arith.mulf %292, %270 : vector<16x128xf32>
    %294 = math.exp %293 : vector<16x128xf32>
    %295 = arith.mulf %290, %294 : vector<16x128xf32>
    %cst_150 = arith.constant 1.000000e+00 : f32
    %296 = vector.broadcast %cst_150 : f32 to vector<16x128xf32>
    %297 = arith.subf %296, %295 : vector<16x128xf32>
    %cst_151 = arith.constant 0.000000e+00 : f32
    %298 = vector.broadcast %cst_151 : f32 to vector<16x128xf32>
    %299 = arith.cmpf oge, %269, %298 : vector<16x128xf32>
    %cst_152 = arith.constant 0.000000e+00 : f32
    %300 = vector.broadcast %cst_152 : f32 to vector<16x128xf32>
    %301 = arith.subf %300, %297 : vector<16x128xf32>
    %302 = arith.select %299, %297, %301 : vector<16x128xi1>, vector<16x128xf32>
    %cst_153 = arith.constant 1.000000e+00 : f32
    %303 = vector.broadcast %cst_153 : f32 to vector<16x128xf32>
    %304 = arith.addf %303, %302 : vector<16x128xf32>
    %305 = arith.mulf %267, %304 : vector<16x128xf32>
    %c1_154 = arith.constant 1 : index
    %c0_155 = arith.constant 0 : index
    %c0_156 = arith.constant 0 : index
    %306 = vector.load %arg7[%c1_154, %c0_155, %c0_156] : memref<2x128x32xf32, #tpu.memory_space<vmem>>, vector<1x128x32xf32>
    %307 = vector.shape_cast %306 : vector<1x128x32xf32> to vector<128x32xf32>
    %cst_157 = arith.constant dense<0.000000e+00> : vector<16x32xf32>
    %308 = tpu.matmul %305, %307, %cst_157 {dimension_numbers = #tpu.dot_dimension_numbers<[1], [0], [0], [1], [0, 0, 1, 1], [], []>} : vector<16x128xf32>, vector<128x32xf32>, vector<16x32xf32> -> vector<16x32xf32>
    %c1_158 = arith.constant 1 : index
    %c6_159 = arith.constant 6 : index
    %c0_160 = arith.constant 0 : index
    %309 = vector.load %arg8[%c1_158, %c6_159, %c0_160] : memref<3x8x128xf32, #tpu.memory_space<vmem>>, vector<1x1x32xf32>
    %310 = vector.shape_cast %309 : vector<1x1x32xf32> to vector<1x32xf32>
    %311 = vector.broadcast %310 : vector<1x32xf32> to vector<16x32xf32>
    %312 = arith.addf %308, %311 : vector<16x32xf32>
    %313 = arith.addf %232, %312 : vector<16x32xf32>
    %c2_161 = arith.constant 2 : index
    %c0_162 = arith.constant 0 : index
    %c0_163 = arith.constant 0 : index
    %314 = vector.load %arg8[%c2_161, %c0_162, %c0_163] : memref<3x8x128xf32, #tpu.memory_space<vmem>>, vector<1x1x32xf32>
    %315 = vector.shape_cast %314 : vector<1x1x32xf32> to vector<1x32xf32>
    %c2_164 = arith.constant 2 : index
    %c1_165 = arith.constant 1 : index
    %c0_166 = arith.constant 0 : index
    %316 = vector.load %arg8[%c2_164, %c1_165, %c0_166] : memref<3x8x128xf32, #tpu.memory_space<vmem>>, vector<1x1x32xf32>
    %317 = vector.shape_cast %316 : vector<1x1x32xf32> to vector<1x32xf32>
    %cst_167 = arith.constant dense<0.000000e+00> : vector<16xf32>
    %318 = vector.multi_reduction <add>, %313, %cst_167 [1] : vector<16x32xf32> to vector<16xf32>
    %319 = vector.shape_cast %318 : vector<16xf32> to vector<16x1xf32>
    %cst_168 = arith.constant 3.200000e+01 : f32
    %320 = vector.broadcast %cst_168 : f32 to vector<16x1xf32>
    %321 = arith.divf %319, %320 : vector<16x1xf32>
    %322 = vector.broadcast %321 : vector<16x1xf32> to vector<16x32xf32>
    %323 = arith.subf %313, %322 : vector<16x32xf32>
    %324 = arith.mulf %323, %323 : vector<16x32xf32>
    %cst_169 = arith.constant dense<0.000000e+00> : vector<16xf32>
    %325 = vector.multi_reduction <add>, %324, %cst_169 [1] : vector<16x32xf32> to vector<16xf32>
    %326 = vector.shape_cast %325 : vector<16xf32> to vector<16x1xf32>
    %cst_170 = arith.constant 3.200000e+01 : f32
    %327 = vector.broadcast %cst_170 : f32 to vector<16x1xf32>
    %328 = arith.divf %326, %327 : vector<16x1xf32>
    %329 = vector.broadcast %321 : vector<16x1xf32> to vector<16x32xf32>
    %330 = arith.subf %313, %329 : vector<16x32xf32>
    %cst_171 = arith.constant 9.99999974E-6 : f32
    %331 = vector.broadcast %cst_171 : f32 to vector<16x1xf32>
    %332 = arith.addf %328, %331 : vector<16x1xf32>
    %333 = math.rsqrt %332 : vector<16x1xf32>
    %334 = vector.broadcast %333 : vector<16x1xf32> to vector<16x32xf32>
    %335 = arith.mulf %330, %334 : vector<16x32xf32>
    %336 = vector.broadcast %315 : vector<1x32xf32> to vector<16x32xf32>
    %337 = arith.mulf %336, %335 : vector<16x32xf32>
    %338 = vector.broadcast %317 : vector<1x32xf32> to vector<16x32xf32>
    %339 = arith.addf %337, %338 : vector<16x32xf32>
    %c0_172 = arith.constant 0 : index
    %c0_173 = arith.constant 0 : index
    %340 = vector.load %arg9[%c0_172, %c0_173] : memref<32x256xf32, #tpu.memory_space<vmem>>, vector<32x256xf32>
    %cst_174 = arith.constant dense<0.000000e+00> : vector<16x256xf32>
    %341 = tpu.matmul %339, %340, %cst_174 {dimension_numbers = #tpu.dot_dimension_numbers<[1], [0], [0], [1], [0, 0, 1, 1], [], []>} : vector<16x32xf32>, vector<32x256xf32>, vector<16x256xf32> -> vector<16x256xf32>
    %c0_175 = arith.constant 0 : index
    %c0_176 = arith.constant 0 : index
    %342 = vector.load %arg10[%c0_175, %c0_176] : memref<16x256xf32, #tpu.memory_space<vmem>>, vector<16x256xf32>
    tpu.vector_store %arg10[%c0_175, %c0_176], %341 {strides = array<i32>} : memref<16x256xf32, #tpu.memory_space<vmem>>, vector<16x256xf32>,
    return
  }
  func.func @transform_0(%arg0: i32) -> (i32, i32) {
    %c0_i32 = arith.constant 0 : i32
    %c0_i32_0 = arith.constant 0 : i32
    return %arg0, %c0_i32 : i32, i32
  }
  func.func @transform_1(%arg0: i32) -> (i32, i32) {
    %c0_i32 = arith.constant 0 : i32
    %c0_i32_0 = arith.constant 0 : i32
    %c0_i32_1 = arith.constant 0 : i32
    return %c0_i32, %c0_i32_0 : i32, i32
  }
  func.func @transform_2(%arg0: i32) -> (i32, i32) {
    %c0_i32 = arith.constant 0 : i32
    %c0_i32_0 = arith.constant 0 : i32
    %c0_i32_1 = arith.constant 0 : i32
    return %c0_i32, %c0_i32_0 : i32, i32
  }
  func.func @transform_3(%arg0: i32) -> (i32, i32, i32, i32) {
    %c0_i32 = arith.constant 0 : i32
    %c0_i32_0 = arith.constant 0 : i32
    %c0_i32_1 = arith.constant 0 : i32
    %c0_i32_2 = arith.constant 0 : i32
    %c0_i32_3 = arith.constant 0 : i32
    return %c0_i32, %c0_i32_0, %c0_i32_1, %c0_i32_2 : i32, i32, i32, i32
  }
  func.func @transform_4(%arg0: i32) -> (i32, i32, i32, i32) {
    %c0_i32 = arith.constant 0 : i32
    %c0_i32_0 = arith.constant 0 : i32
    %c0_i32_1 = arith.constant 0 : i32
    %c0_i32_2 = arith.constant 0 : i32
    %c0_i32_3 = arith.constant 0 : i32
    return %c0_i32, %c0_i32_0, %c0_i32_1, %c0_i32_2 : i32, i32, i32, i32
  }
  func.func @transform_5(%arg0: i32) -> (i32, i32, i32) {
    %c0_i32 = arith.constant 0 : i32
    %c0_i32_0 = arith.constant 0 : i32
    %c0_i32_1 = arith.constant 0 : i32
    %c0_i32_2 = arith.constant 0 : i32
    return %c0_i32, %c0_i32_0, %c0_i32_1 : i32, i32, i32
  }
  func.func @transform_6(%arg0: i32) -> (i32, i32, i32) {
    %c0_i32 = arith.constant 0 : i32
    %c0_i32_0 = arith.constant 0 : i32
    %c0_i32_1 = arith.constant 0 : i32
    %c0_i32_2 = arith.constant 0 : i32
    return %c0_i32, %c0_i32_0, %c0_i32_1 : i32, i32, i32
  }
  func.func @transform_7(%arg0: i32) -> (i32, i32, i32) {
    %c0_i32 = arith.constant 0 : i32
    %c0_i32_0 = arith.constant 0 : i32
    %c0_i32_1 = arith.constant 0 : i32
    %c0_i32_2 = arith.constant 0 : i32
    return %c0_i32, %c0_i32_0, %c0_i32_1 : i32, i32, i32
  }
  func.func @transform_8(%arg0: i32) -> (i32, i32) {
    %c0_i32 = arith.constant 0 : i32
    %c0_i32_0 = arith.constant 0 : i32
    %c0_i32_1 = arith.constant 0 : i32
    return %c0_i32, %c0_i32_0 : i32, i32
  }
  func.func @transform_9(%arg0: i32) -> (i32, i32) {
    %c0_i32 = arith.constant 0 : i32
    %c0_i32_0 = arith.constant 0 : i32
    return %arg0, %c0_i32 : i32, i32
  }
}

</mosaic_0001>

<llo_original>
// kernel: tpu_custom_call.1
$region0: #{tpu_custom_call.1}
  #allocation0 [shape = 'u32[]', space=smem, size = 0x4, offset = 0x4, fixed_abs, tag = 'smem constant byte address 0x4 - core index']
  #allocation1 [shape = 'u32[72,128]{1,0:T(1,128)}', space=vmem, size = 0x9000, scoped, tag = 'internal scratch']
  %s0 = inlined_call_operand.vmem [shape: s32[16,1], index: 0, kind: input, shape index: {}]
  %s1 = inlined_call_operand.vmem [shape: f32[256,32], index: 1, kind: input, shape index: {}]
  %s2 = inlined_call_operand.vmem [shape: f32[16,32], index: 2, kind: input, shape index: {}]
  %s3 = inlined_call_operand.vmem [shape: f32[6,4,32,8], index: 3, kind: input, shape index: {}]
  %s4 = inlined_call_operand.vmem [shape: f32[2,4,8,32], index: 4, kind: input, shape index: {}]
  %s5 = inlined_call_operand.vmem [shape: f32[2,32,128], index: 5, kind: input, shape index: {}]
  %s6 = inlined_call_operand.vmem [shape: f32[2,128,32], index: 6, kind: input, shape index: {}]
  %s7 = inlined_call_operand.vmem [shape: f32[3,8,128], index: 7, kind: input, shape index: {}]
  %s8 = inlined_call_operand.vmem [shape: f32[32,256], index: 8, kind: input, shape index: {}]
  %s9 = inlined_call_operand.hbm [shape: f32[16,256], index: 9, kind: output, shape index: {}]
  %s10 = sld [smem:[#allocation0]]
  $region46: #{tpu_custom_call.1} parent=0
    _
  %s12 = ssub.s32 1, %s10
  %s13 = scalar_select 0, %s12, %s10
  $region1: #{tpu_custom_call.1} parent=0
    #allocation2 [shape = 'u8[16384]{0}', space=vmem, size = 0x4000, scoped, tag = 'output window, operand 0, single buffered']
    #allocation3 [shape = 's32[1]{0}', space=sflag, size = 0x4, scoped, tag = 'scoped memory for tpu_custom_call.1']
    %14 = vsyncpa [#allocation3], 0
    // Predicated region
    $region2: #{tpu_custom_call.1} parent=1 // pred_check
      _
    $region3: #{tpu_custom_call.1} parent=1 // pred_check_branch
      %16 = sbr.rel (0) target = $region5
    $region4: #{tpu_custom_call.1} parent=1 // pred_region
      _
    $region5: #{tpu_custom_call.1} parent=1 // pred_fallthru
      _
    // Predicated region
    $region6: #{tpu_custom_call.1} parent=1 // pred_check
      _
    $region7: #{tpu_custom_call.1} parent=1 // pred_check_branch
      %18 = sbr.rel (0) target = $region9
    $region8: #{tpu_custom_call.1} parent=1 // pred_region
      _
    $region9: #{tpu_custom_call.1} parent=1 // pred_fallthru
      _
    // Predicated region
    $region10: #{tpu_custom_call.1} parent=1 // pred_check
      _
    $region11: #{tpu_custom_call.1} parent=1 // pred_check_branch
      %20 = sbr.rel (0) target = $region13
    $region12: #{tpu_custom_call.1} parent=1 // pred_region
      _
    $region13: #{tpu_custom_call.1} parent=1 // pred_fallthru
      _
    // Predicated region
    $region14: #{tpu_custom_call.1} parent=1 // pred_check
      _
    $region15: #{tpu_custom_call.1} parent=1 // pred_check_branch
      %22 = sbr.rel (0) target = $region17
    $region16: #{tpu_custom_call.1} parent=1 // pred_region
      _
    $region17: #{tpu_custom_call.1} parent=1 // pred_fallthru
      _
    // Predicated region
    $region18: #{tpu_custom_call.1} parent=1 // pred_check
      _
    $region19: #{tpu_custom_call.1} parent=1 // pred_check_branch
      %24 = sbr.rel (0) target = $region21
    $region20: #{tpu_custom_call.1} parent=1 // pred_region
      _
    $region21: #{tpu_custom_call.1} parent=1 // pred_fallthru
      _
    // Predicated region
    $region22: #{tpu_custom_call.1} parent=1 // pred_check
      _
    $region23: #{tpu_custom_call.1} parent=1 // pred_check_branch
      %26 = sbr.rel (0) target = $region25
    $region24: #{tpu_custom_call.1} parent=1 // pred_region
      _
    $region25: #{tpu_custom_call.1} parent=1 // pred_fallthru
      _
    // Predicated region
    $region26: #{tpu_custom_call.1} parent=1 // pred_check
      _
    $region27: #{tpu_custom_call.1} parent=1 // pred_check_branch
      %28 = sbr.rel (0) target = $region29
    $region28: #{tpu_custom_call.1} parent=1 // pred_region
      _
    $region29: #{tpu_custom_call.1} parent=1 // pred_fallthru
      _
    // Predicated region
    $region30: #{tpu_custom_call.1} parent=1 // pred_check
      _
    $region31: #{tpu_custom_call.1} parent=1 // pred_check_branch
      %30 = sbr.rel (0) target = $region33
    $region32: #{tpu_custom_call.1} parent=1 // pred_region
      _
    $region33: #{tpu_custom_call.1} parent=1 // pred_fallthru
      _
    // Predicated region
    $region34: #{tpu_custom_call.1} parent=1 // pred_check
      _
    $region35: #{tpu_custom_call.1} parent=1 // pred_check_branch
      %32 = sbr.rel (0) target = $region37
    $region36: #{tpu_custom_call.1} parent=1 // pred_region
      _
    $region37: #{tpu_custom_call.1} parent=1 // pred_fallthru
      _
    %v33 = vld [vmem:[%s0] sm:$0xff]
    %v34 = vld [vmem:[%s0 + $0x8] sm:$0xff]
    %v35 = vlaneseq
    %v36 = vand.u32 %v35, 127
    %v37 = vadd.s32 %v36, 128
    %38 = vset.pattern.permute.xlu0 0
    %39 = vperm.xlu0 %38, %v33
    %v40 = vpop.permute.xlu0 %39
    %41 = vset.pattern.permute.xlu0 0
    %42 = vperm.xlu0 %41, %v34
    %v43 = vpop.permute.xlu0 %42
    %vm44 = vcmp.eq.s32.totalorder %v36, %v40
    %vm45 = vcmp.eq.s32.totalorder %v37, %v40
    %vm46 = vcmp.eq.s32.totalorder %v36, %v43
    %vm47 = vcmp.eq.s32.totalorder %v37, %v43
    %v48 = vsel %vm44, 1, 0
    %v49 = vsel %vm45, 1, 0
    %v50 = vsel %vm46, 1, 0
    %v51 = vsel %vm47, 1, 0
    %v52 = vcvt.s32.f32 %v48
    %v53 = vcvt.s32.f32 %v49
    %v54 = vcvt.s32.f32 %v50
    %v55 = vcvt.s32.f32 %v51
    %v56 = vld [vmem:[%s1] sm:$0xff]
    %v57 = vld [vmem:[%s1 + $0x8] sm:$0xff]
    %v58 = vld [vmem:[%s1 + $0x10] sm:$0xff]
    %v59 = vld [vmem:[%s1 + $0x18] sm:$0xff]
    %v60 = vld [vmem:[%s1 + $0x20] sm:$0xff]
    %v61 = vld [vmem:[%s1 + $0x28] sm:$0xff]
    %v62 = vld [vmem:[%s1 + $0x30] sm:$0xff]
    %v63 = vld [vmem:[%s1 + $0x38] sm:$0xff]
    %v64 = vld [vmem:[%s1 + $0x40] sm:$0xff]
    %v65 = vld [vmem:[%s1 + $0x48] sm:$0xff]
    %v66 = vld [vmem:[%s1 + $0x50] sm:$0xff]
    %v67 = vld [vmem:[%s1 + $0x58] sm:$0xff]
    %v68 = vld [vmem:[%s1 + $0x60] sm:$0xff]
    %v69 = vld [vmem:[%s1 + $0x68] sm:$0xff]
    %v70 = vld [vmem:[%s1 + $0x70] sm:$0xff]
    %v71 = vld [vmem:[%s1 + $0x78] sm:$0xff]
    %v72 = vld [vmem:[%s1 + $0x80] sm:$0xff]
    %v73 = vld [vmem:[%s1 + $0x88] sm:$0xff]
    %v74 = vld [vmem:[%s1 + $0x90] sm:$0xff]
    %v75 = vld [vmem:[%s1 + $0x98] sm:$0xff]
    %v76 = vld [vmem:[%s1 + $0xa0] sm:$0xff]
    %v77 = vld [vmem:[%s1 + $0xa8] sm:$0xff]
    %v78 = vld [vmem:[%s1 + $0xb0] sm:$0xff]
    %v79 = vld [vmem:[%s1 + $0xb8] sm:$0xff]
    %v80 = vld [vmem:[%s1 + $0xc0] sm:$0xff]
    %v81 = vld [vmem:[%s1 + $0xc8] sm:$0xff]
    %v82 = vld [vmem:[%s1 + $0xd0] sm:$0xff]
    %v83 = vld [vmem:[%s1 + $0xd8] sm:$0xff]
    %v84 = vld [vmem:[%s1 + $0xe0] sm:$0xff]
    %v85 = vld [vmem:[%s1 + $0xe8] sm:$0xff]
    %v86 = vld [vmem:[%s1 + $0xf0] sm:$0xff]
    %v87 = vld [vmem:[%s1 + $0xf8] sm:$0xff]
    %v88 = vld [vmem:[%s2] sm:$0xff]
    %v89 = vld [vmem:[%s2 + $0x8] sm:$0xff]
    %90 = vmatpush.msra.mxu0 %v71
    %91 = vmatpush.msra.mxu0 %v70
    %92 = vmatpush.msra.mxu0 %v69
    %93 = vmatpush.msra.mxu0 %v68
    %94 = vmatpush.msra.mxu0 %v67
    %95 = vmatpush.msra.mxu0 %v66
    %96 = vmatpush.msra.mxu0 %v65
    %97 = vmatpush.msra.mxu0 %v64
    %98 = vmatpush.msra.mxu0 %v63
    %99 = vmatpush.msra.mxu0 %v62
    %100 = vmatpush.msra.mxu0 %v61
    %101 = vmatpush.msra.mxu0 %v60
    %102 = vmatpush.msra.mxu0 %v59
    %103 = vmatpush.msra.mxu0 %v58
    %104 = vmatpush.msra.mxu0 %v57
    %105 = vmatpush.msra.mxu0 %v56
    %106 = vmatmul.f32.gmra.mxu0 %v52
    %v107 = vpop.f32.mrf.mxu0
    %v108 = vadd.f32 %v88, %v107
    %109 = vmatmul.f32.gmra.mxu0 %v54
    %v110 = vpop.f32.mrf.mxu0
    %v111 = vadd.f32 %v89, %v110
    %112 = vdwg.mxu0
    %113 = vmatpush.msra.mxu0 %v87
    %114 = vmatpush.msra.mxu0 %v86
    %115 = vmatpush.msra.mxu0 %v85
    %116 = vmatpush.msra.mxu0 %v84
    %117 = vmatpush.msra.mxu0 %v83
    %118 = vmatpush.msra.mxu0 %v82
    %119 = vmatpush.msra.mxu0 %v81
    %120 = vmatpush.msra.mxu0 %v80
    %121 = vmatpush.msra.mxu0 %v79
    %122 = vmatpush.msra.mxu0 %v78
    %123 = vmatpush.msra.mxu0 %v77
    %124 = vmatpush.msra.mxu0 %v76
    %125 = vmatpush.msra.mxu0 %v75
    %126 = vmatpush.msra.mxu0 %v74
    %127 = vmatpush.msra.mxu0 %v73
    %128 = vmatpush.msra.mxu0 %v72
    %129 = vmatmul.f32.gmra.mxu0 %v53
    %v130 = vpop.f32.mrf.mxu0
    %v131 = vadd.f32 %v108, %v130
    %132 = vmatmul.f32.gmra.mxu0 %v55
    %v133 = vpop.f32.mrf.mxu0
    %v134 = vadd.f32 %v111, %v133
    %135 = vdwg.mxu0
    %v136 = vlaneseq
    %v137 = vshrl.u32 %v136, 7
    %vm138 = vcmp.le.s32.totalorder %v36, %v137
    %v139 = vld [vmem:[%s7] sm:$0x1]
    %v140 = vld [vmem:[%s7 + $0x1] sm:$0x1]
    %vm141 = vcmask 261120
    %v142 = vsel %vm141, %v131, 0.0
    %143 = vadd.xlane.f32.xlu0 %v142
    %v144 = vpop.xlane.xlu0 %143
    %v145 = vsel %vm141, %v134, 0.0
    %146 = vadd.xlane.f32.xlu0 %v145
    %v147 = vpop.xlane.xlu0 %146
    %v148 = vrcp.pop 32.0
    %v149 = vmul.f32 32.0, %v148
    %v150 = vsub.f32 1.0, %v149
    %v151 = vmul.f32 %v148, %v150
    %v152 = vadd.f32 %v148, %v151
    %vm153 = vweird.f32 %v148
    %v154 = vsel %vm153, %v148, %v152
    %v155 = vmul.f32 %v144, %v154
    %v156 = vmul.f32 %v147, %v154
    %v157 = vsub.f32 %v131, %v155
    %v158 = vsub.f32 %v134, %v156
    %v159 = vmul.f32 %v157, %v157
    %v160 = vmul.f32 %v158, %v158
    %v161 = vsel %vm141, %v159, 0.0
    %162 = vadd.xlane.f32.xlu0 %v161
    %v163 = vpop.xlane.xlu0 %162
    %v164 = vsel %vm141, %v160, 0.0
    %165 = vadd.xlane.f32.xlu0 %v164
    %v166 = vpop.xlane.xlu0 %165
    %v167 = vmul.f32 %v163, %v154
    %v168 = vmul.f32 %v166, %v154
    %v169 = vadd.f32 %v167, 1e-05
    %v170 = vadd.f32 %v168, 1e-05
    %v171 = vrsqrt.pop %v169
    %v172 = vmul.f32 %v171, %v169
    %v173 = vmul.f32 %v172, %v171
    %v174 = vmul.f32 0.5, %v173
    %v175 = vsub.f32 1.5, %v174
    %v176 = vmul.f32 %v171, %v175
    %vm177 = vweird.f32 %v169
    %vm178 = vweird.f32 %v171
    %vm179 = vmor %vm177, %vm178
    %v180 = vsel %vm179, %v171, %v176
    %v181 = vrsqrt.pop %v170
    %v182 = vmul.f32 %v181, %v170
    %v183 = vmul.f32 %v182, %v181
    %v184 = vmul.f32 0.5, %v183
    %v185 = vsub.f32 1.5, %v184
    %v186 = vmul.f32 %v181, %v185
    %vm187 = vweird.f32 %v170
    %vm188 = vweird.f32 %v181
    %vm189 = vmor %vm187, %vm188
    %v190 = vsel %vm189, %v181, %v186
    %v191 = vmul.f32 %v157, %v180
    %v192 = vmul.f32 %v158, %v190
    %v193 = vperm.slane %v139, 0
    %v194 = vmul.f32 %v193, %v191
    %v195 = vmul.f32 %v193, %v192
    %v196 = vperm.slane %v140, 0
    %v197 = vadd.f32 %v194, %v196
    %v198 = vadd.f32 %v195, %v196
    %v199 = vld [vmem:[%s3] sm:$0xff]
    %v200 = vld [vmem:[%s3 + $0x8] sm:$0xff]
    %v201 = vld [vmem:[%s3 + $0x10] sm:$0xff]
    %v202 = vld [vmem:[%s3 + $0x18] sm:$0xff]
    %v203 = vld [vmem:[%s3 + $0x20] sm:$0xff]
    %v204 = vld [vmem:[%s3 + $0x28] sm:$0xff]
    %v205 = vld [vmem:[%s3 + $0x30] sm:$0xff]
    %v206 = vld [vmem:[%s3 + $0x38] sm:$0xff]
    %v207 = vld [vmem:[%s3 + $0x40] sm:$0xff]
    %v208 = vld [vmem:[%s3 + $0x48] sm:$0xff]
    %v209 = vld [vmem:[%s3 + $0x50] sm:$0xff]
    %v210 = vld [vmem:[%s3 + $0x58] sm:$0xff]
    %v211 = vld [vmem:[%s3 + $0x60] sm:$0xff]
    %v212 = vld [vmem:[%s3 + $0x68] sm:$0xff]
    %v213 = vld [vmem:[%s3 + $0x70] sm:$0xff]
    %v214 = vld [vmem:[%s3 + $0x78] sm:$0xff]
    %v216 = vsel %vm141, %v197, 0
    %v219 = vsel %vm141, %v198, 0
    %221 = vmatpush.msra.mxu0 0.0
    %222 = vmatpush.msra.mxu0 0.0
    %223 = vmatpush.msra.mxu0 0.0
    %224 = vmatpush.msra.mxu0 0.0
    %225 = vmatpush.msra.mxu0 0.0
    %226 = vmatpush.msra.mxu0 0.0
    %227 = vmatpush.msra.mxu0 0.0
    %228 = vmatpush.msra.mxu0 0.0
    %229 = vmatpush.msra.mxu0 0.0
    %230 = vmatpush.msra.mxu0 0.0
    %231 = vmatpush.msra.mxu0 0.0
    %232 = vmatpush.msra.mxu0 0.0
    %233 = vmatpush.msra.mxu0 %v202
    %234 = vmatpush.msra.mxu0 %v201
    %235 = vmatpush.msra.mxu0 %v200
    %236 = vmatpush.msra.mxu0 %v199
    %237 = vmatmul.f32.gmra.mxu0 %v216
    %v238 = vpop.f32.mrf.mxu0
    %v239 = vadd.f32 0.0, %v238
    %240 = vmatmul.f32.gmra.mxu0 %v219
    %v241 = vpop.f32.mrf.mxu0
    %v242 = vadd.f32 0.0, %v241
    %243 = vdwg.mxu0
    %244 = vmatpush.msra.mxu0 0.0
    %245 = vmatpush.msra.mxu0 0.0
    %246 = vmatpush.msra.mxu0 0.0
    %247 = vmatpush.msra.mxu0 0.0
    %248 = vmatpush.msra.mxu0 0.0
    %249 = vmatpush.msra.mxu0 0.0
    %250 = vmatpush.msra.mxu0 0.0
    %251 = vmatpush.msra.mxu0 0.0
    %252 = vmatpush.msra.mxu0 0.0
    %253 = vmatpush.msra.mxu0 0.0
    %254 = vmatpush.msra.mxu0 0.0
    %255 = vmatpush.msra.mxu0 0.0
    %256 = vmatpush.msra.mxu0 %v206
    %257 = vmatpush.msra.mxu0 %v205
    %258 = vmatpush.msra.mxu0 %v204
    %259 = vmatpush.msra.mxu0 %v203
    %260 = vmatmul.f32.gmra.mxu0 %v216
    %v261 = vpop.f32.mrf.mxu0
    %v262 = vadd.f32 0.0, %v261
    %263 = vmatmul.f32.gmra.mxu0 %v219
    %v264 = vpop.f32.mrf.mxu0
    %v265 = vadd.f32 0.0, %v264
    %266 = vdwg.mxu0
    %267 = vmatpush.msra.mxu0 0.0
    %268 = vmatpush.msra.mxu0 0.0
    %269 = vmatpush.msra.mxu0 0.0
    %270 = vmatpush.msra.mxu0 0.0
    %271 = vmatpush.msra.mxu0 0.0
    %272 = vmatpush.msra.mxu0 0.0
    %273 = vmatpush.msra.mxu0 0.0
    %274 = vmatpush.msra.mxu0 0.0
    %275 = vmatpush.msra.mxu0 0.0
    %276 = vmatpush.msra.mxu0 0.0
    %277 = vmatpush.msra.mxu0 0.0
    %278 = vmatpush.msra.mxu0 0.0
    %279 = vmatpush.msra.mxu0 %v210
    %280 = vmatpush.msra.mxu0 %v209
    %281 = vmatpush.msra.mxu0 %v208
    %282 = vmatpush.msra.mxu0 %v207
    %283 = vmatmul.f32.gmra.mxu0 %v216
    %v284 = vpop.f32.mrf.mxu0
    %v285 = vadd.f32 0.0, %v284
    %286 = vmatmul.f32.gmra.mxu0 %v219
    %v287 = vpop.f32.mrf.mxu0
    %v288 = vadd.f32 0.0, %v287
    %289 = vdwg.mxu0
    %290 = vmatpush.msra.mxu0 0.0
    %291 = vmatpush.msra.mxu0 0.0
    %292 = vmatpush.msra.mxu0 0.0
    %293 = vmatpush.msra.mxu0 0.0
    %294 = vmatpush.msra.mxu0 0.0
    %295 = vmatpush.msra.mxu0 0.0
    %296 = vmatpush.msra.mxu0 0.0
    %297 = vmatpush.msra.mxu0 0.0
    %298 = vmatpush.msra.mxu0 0.0
    %299 = vmatpush.msra.mxu0 0.0
    %300 = vmatpush.msra.mxu0 0.0
    %301 = vmatpush.msra.mxu0 0.0
    %302 = vmatpush.msra.mxu0 %v214
    %303 = vmatpush.msra.mxu0 %v213
    %304 = vmatpush.msra.mxu0 %v212
    %305 = vmatpush.msra.mxu0 %v211
    %306 = vmatmul.f32.gmra.mxu0 %v216
    %v307 = vpop.f32.mrf.mxu0
    %v308 = vadd.f32 0.0, %v307
    %309 = vmatmul.f32.gmra.mxu0 %v219
    %v310 = vpop.f32.mrf.mxu0
    %v311 = vadd.f32 0.0, %v310
    %312 = vdwg.mxu0
    %s313 = scalar_lea.vmem %s3, 128
    %v314 = vld [vmem:[%s313] sm:$0xff]
    %v315 = vld [vmem:[%s313 + $0x8] sm:$0xff]
    %v316 = vld [vmem:[%s313 + $0x10] sm:$0xff]
    %v317 = vld [vmem:[%s313 + $0x18] sm:$0xff]
    %v318 = vld [vmem:[%s313 + $0x20] sm:$0xff]
    %v319 = vld [vmem:[%s313 + $0x28] sm:$0xff]
    %v320 = vld [vmem:[%s313 + $0x30] sm:$0xff]
    %v321 = vld [vmem:[%s313 + $0x38] sm:$0xff]
    %v322 = vld [vmem:[%s313 + $0x40] sm:$0xff]
    %v323 = vld [vmem:[%s313 + $0x48] sm:$0xff]
    %v324 = vld [vmem:[%s313 + $0x50] sm:$0xff]
    %v325 = vld [vmem:[%s313 + $0x58] sm:$0xff]
    %v326 = vld [vmem:[%s313 + $0x60] sm:$0xff]
    %v327 = vld [vmem:[%s313 + $0x68] sm:$0xff]
    %v328 = vld [vmem:[%s313 + $0x70] sm:$0xff]
    %v329 = vld [vmem:[%s313 + $0x78] sm:$0xff]
    %330 = vmatpush.msra.mxu0 0.0
    %331 = vmatpush.msra.mxu0 0.0
    %332 = vmatpush.msra.mxu0 0.0
    %333 = vmatpush.msra.mxu0 0.0
    %334 = vmatpush.msra.mxu0 0.0
    %335 = vmatpush.msra.mxu0 0.0
    %336 = vmatpush.msra.mxu0 0.0
    %337 = vmatpush.msra.mxu0 0.0
    %338 = vmatpush.msra.mxu0 0.0
    %339 = vmatpush.msra.mxu0 0.0
    %340 = vmatpush.msra.mxu0 0.0
    %341 = vmatpush.msra.mxu0 0.0
    %342 = vmatpush.msra.mxu0 %v317
    %343 = vmatpush.msra.mxu0 %v316
    %344 = vmatpush.msra.mxu0 %v315
    %345 = vmatpush.msra.mxu0 %v314
    %346 = vmatmul.f32.gmra.mxu0 %v216
    %v347 = vpop.f32.mrf.mxu0
    %v348 = vadd.f32 0.0, %v347
    %349 = vmatmul.f32.gmra.mxu0 %v219
    %v350 = vpop.f32.mrf.mxu0
    %v351 = vadd.f32 0.0, %v350
    %352 = vdwg.mxu0
    %353 = vmatpush.msra.mxu0 0.0
    %354 = vmatpush.msra.mxu0 0.0
    %355 = vmatpush.msra.mxu0 0.0
    %356 = vmatpush.msra.mxu0 0.0
    %357 = vmatpush.msra.mxu0 0.0
    %358 = vmatpush.msra.mxu0 0.0
    %359 = vmatpush.msra.mxu0 0.0
    %360 = vmatpush.msra.mxu0 0.0
    %361 = vmatpush.msra.mxu0 0.0
    %362 = vmatpush.msra.mxu0 0.0
    %363 = vmatpush.msra.mxu0 0.0
    %364 = vmatpush.msra.mxu0 0.0
    %365 = vmatpush.msra.mxu0 %v321
    %366 = vmatpush.msra.mxu0 %v320
    %367 = vmatpush.msra.mxu0 %v319
    %368 = vmatpush.msra.mxu0 %v318
    %369 = vmatmul.f32.gmra.mxu0 %v216
    %v370 = vpop.f32.mrf.mxu0
    %v371 = vadd.f32 0.0, %v370
    %372 = vmatmul.f32.gmra.mxu0 %v219
    %v373 = vpop.f32.mrf.mxu0
    %v374 = vadd.f32 0.0, %v373
    %375 = vdwg.mxu0
    %376 = vmatpush.msra.mxu0 0.0
    %377 = vmatpush.msra.mxu0 0.0
    %378 = vmatpush.msra.mxu0 0.0
    %379 = vmatpush.msra.mxu0 0.0
    %380 = vmatpush.msra.mxu0 0.0
    %381 = vmatpush.msra.mxu0 0.0
    %382 = vmatpush.msra.mxu0 0.0
    %383 = vmatpush.msra.mxu0 0.0
    %384 = vmatpush.msra.mxu0 0.0
    %385 = vmatpush.msra.mxu0 0.0
    %386 = vmatpush.msra.mxu0 0.0
    %387 = vmatpush.msra.mxu0 0.0
    %388 = vmatpush.msra.mxu0 %v325
    %389 = vmatpush.msra.mxu0 %v324
    %390 = vmatpush.msra.mxu0 %v323
    %391 = vmatpush.msra.mxu0 %v322
    %392 = vmatmul.f32.gmra.mxu0 %v216
    %v393 = vpop.f32.mrf.mxu0
    %v394 = vadd.f32 0.0, %v393
    %395 = vmatmul.f32.gmra.mxu0 %v219
    %v396 = vpop.f32.mrf.mxu0
    %v397 = vadd.f32 0.0, %v396
    %398 = vdwg.mxu0
    %399 = vmatpush.msra.mxu0 0.0
    %400 = vmatpush.msra.mxu0 0.0
    %401 = vmatpush.msra.mxu0 0.0
    %402 = vmatpush.msra.mxu0 0.0
    %403 = vmatpush.msra.mxu0 0.0
    %404 = vmatpush.msra.mxu0 0.0
    %405 = vmatpush.msra.mxu0 0.0
    %406 = vmatpush.msra.mxu0 0.0
    %407 = vmatpush.msra.mxu0 0.0
    %408 = vmatpush.msra.mxu0 0.0
    %409 = vmatpush.msra.mxu0 0.0
    %410 = vmatpush.msra.mxu0 0.0
    %411 = vmatpush.msra.mxu0 %v329
    %412 = vmatpush.msra.mxu0 %v328
    %413 = vmatpush.msra.mxu0 %v327
    %414 = vmatpush.msra.mxu0 %v326
    %415 = vmatmul.f32.gmra.mxu0 %v216
    %v416 = vpop.f32.mrf.mxu0
    %v417 = vadd.f32 0.0, %v416
    %418 = vmatmul.f32.gmra.mxu0 %v219
    %v419 = vpop.f32.mrf.mxu0
    %v420 = vadd.f32 0.0, %v419
    %421 = vdwg.mxu0
    %s422 = scalar_lea.vmem %s3, 256
    %v423 = vld [vmem:[%s422] sm:$0xff]
    %v424 = vld [vmem:[%s422 + $0x8] sm:$0xff]
    %v425 = vld [vmem:[%s422 + $0x10] sm:$0xff]
    %v426 = vld [vmem:[%s422 + $0x18] sm:$0xff]
    %v427 = vld [vmem:[%s422 + $0x20] sm:$0xff]
    %v428 = vld [vmem:[%s422 + $0x28] sm:$0xff]
    %v429 = vld [vmem:[%s422 + $0x30] sm:$0xff]
    %v430 = vld [vmem:[%s422 + $0x38] sm:$0xff]
    %v431 = vld [vmem:[%s422 + $0x40] sm:$0xff]
    %v432 = vld [vmem:[%s422 + $0x48] sm:$0xff]
    %v433 = vld [vmem:[%s422 + $0x50] sm:$0xff]
    %v434 = vld [vmem:[%s422 + $0x58] sm:$0xff]
    %v435 = vld [vmem:[%s422 + $0x60] sm:$0xff]
    %v436 = vld [vmem:[%s422 + $0x68] sm:$0xff]
    %v437 = vld [vmem:[%s422 + $0x70] sm:$0xff]
    %v438 = vld [vmem:[%s422 + $0x78] sm:$0xff]
    %439 = vmatpush.msra.mxu0 0.0
    %440 = vmatpush.msra.mxu0 0.0
    %441 = vmatpush.msra.mxu0 0.0
    %442 = vmatpush.msra.mxu0 0.0
    %443 = vmatpush.msra.mxu0 0.0
    %444 = vmatpush.msra.mxu0 0.0
    %445 = vmatpush.msra.mxu0 0.0
    %446 = vmatpush.msra.mxu0 0.0
    %447 = vmatpush.msra.mxu0 0.0
    %448 = vmatpush.msra.mxu0 0.0
    %449 = vmatpush.msra.mxu0 0.0
    %450 = vmatpush.msra.mxu0 0.0
    %451 = vmatpush.msra.mxu0 %v426
    %452 = vmatpush.msra.mxu0 %v425
    %453 = vmatpush.msra.mxu0 %v424
    %454 = vmatpush.msra.mxu0 %v423
    %455 = vmatmul.f32.gmra.mxu0 %v216
    %v456 = vpop.f32.mrf.mxu0
    %v457 = vadd.f32 0.0, %v456
    %458 = vmatmul.f32.gmra.mxu0 %v219
    %v459 = vpop.f32.mrf.mxu0
    %v460 = vadd.f32 0.0, %v459
    %461 = vdwg.mxu0
    %462 = vmatpush.msra.mxu0 0.0
    %463 = vmatpush.msra.mxu0 0.0
    %464 = vmatpush.msra.mxu0 0.0
    %465 = vmatpush.msra.mxu0 0.0
    %466 = vmatpush.msra.mxu0 0.0
    %467 = vmatpush.msra.mxu0 0.0
    %468 = vmatpush.msra.mxu0 0.0
    %469 = vmatpush.msra.mxu0 0.0
    %470 = vmatpush.msra.mxu0 0.0
    %471 = vmatpush.msra.mxu0 0.0
    %472 = vmatpush.msra.mxu0 0.0
    %473 = vmatpush.msra.mxu0 0.0
    %474 = vmatpush.msra.mxu0 %v430
    %475 = vmatpush.msra.mxu0 %v429
    %476 = vmatpush.msra.mxu0 %v428
    %477 = vmatpush.msra.mxu0 %v427
    %478 = vmatmul.f32.gmra.mxu0 %v216
    %v479 = vpop.f32.mrf.mxu0
    %v480 = vadd.f32 0.0, %v479
    %481 = vmatmul.f32.gmra.mxu0 %v219
    %v482 = vpop.f32.mrf.mxu0
    %v483 = vadd.f32 0.0, %v482
    %484 = vdwg.mxu0
    %485 = vmatpush.msra.mxu0 0.0
    %486 = vmatpush.msra.mxu0 0.0
    %487 = vmatpush.msra.mxu0 0.0
    %488 = vmatpush.msra.mxu0 0.0
    %489 = vmatpush.msra.mxu0 0.0
    %490 = vmatpush.msra.mxu0 0.0
    %491 = vmatpush.msra.mxu0 0.0
    %492 = vmatpush.msra.mxu0 0.0
    %493 = vmatpush.msra.mxu0 0.0
    %494 = vmatpush.msra.mxu0 0.0
    %495 = vmatpush.msra.mxu0 0.0
    %496 = vmatpush.msra.mxu0 0.0
    %497 = vmatpush.msra.mxu0 %v434
    %498 = vmatpush.msra.mxu0 %v433
    %499 = vmatpush.msra.mxu0 %v432
    %500 = vmatpush.msra.mxu0 %v431
    %501 = vmatmul.f32.gmra.mxu0 %v216
    %v502 = vpop.f32.mrf.mxu0
    %v503 = vadd.f32 0.0, %v502
    %504 = vmatmul.f32.gmra.mxu0 %v219
    %v505 = vpop.f32.mrf.mxu0
    %v506 = vadd.f32 0.0, %v505
    %507 = vdwg.mxu0
    %508 = vmatpush.msra.mxu0 0.0
    %509 = vmatpush.msra.mxu0 0.0
    %510 = vmatpush.msra.mxu0 0.0
    %511 = vmatpush.msra.mxu0 0.0
    %512 = vmatpush.msra.mxu0 0.0
    %513 = vmatpush.msra.mxu0 0.0
    %514 = vmatpush.msra.mxu0 0.0
    %515 = vmatpush.msra.mxu0 0.0
    %516 = vmatpush.msra.mxu0 0.0
    %517 = vmatpush.msra.mxu0 0.0
    %518 = vmatpush.msra.mxu0 0.0
    %519 = vmatpush.msra.mxu0 0.0
    %520 = vmatpush.msra.mxu0 %v438
    %521 = vmatpush.msra.mxu0 %v437
    %522 = vmatpush.msra.mxu0 %v436
    %523 = vmatpush.msra.mxu0 %v435
    %524 = vmatmul.f32.gmra.mxu0 %v216
    %v525 = vpop.f32.mrf.mxu0
    %v526 = vadd.f32 0.0, %v525
    %527 = vmatmul.f32.gmra.mxu0 %v219
    %v528 = vpop.f32.mrf.mxu0
    %v529 = vadd.f32 0.0, %v528
    %530 = vdwg.mxu0
    %vm531 = vcmask 64512
    %v533 = vsel %vm531, %v239, 0
    %v536 = vsel %vm531, %v348, 0
    %538 = vmatpush.xpose.msra.mxu0 0.0
    %539 = vmatpush.xpose.msra.mxu0 0.0
    %540 = vmatpush.xpose.msra.mxu0 0.0
    %541 = vmatpush.xpose.msra.mxu0 0.0
    %542 = vmatpush.xpose.msra.mxu0 0.0
    %543 = vmatpush.xpose.msra.mxu0 0.0
    %544 = vmatpush.xpose.msra.mxu0 0.0
    %545 = vmatpush.xpose.msra.mxu0 0.0
    %546 = vmatpush.xpose.msra.mxu0 0.0
    %547 = vmatpush.xpose.msra.mxu0 0.0
    %548 = vmatpush.xpose.msra.mxu0 0.0
    %549 = vmatpush.xpose.msra.mxu0 0.0
    %550 = vmatpush.xpose.msra.mxu0 0.0
    %551 = vmatpush.xpose.msra.mxu0 0.0
    %552 = vmatpush.xpose.msra.mxu0 0.0
    %553 = vmatpush.xpose.msra.mxu0 %v536
    %554 = vmatmul.f32.gmra.mxu0 %v533
    %v555 = vpop.f32.mrf.mxu0
    %v556 = vadd.f32 0.0, %v555
    %557 = vdwg.mxu0
    %v559 = vsel %vm531, %v242, 0
    %v562 = vsel %vm531, %v351, 0
    %564 = vmatpush.xpose.msra.mxu0 0.0
    %565 = vmatpush.xpose.msra.mxu0 0.0
    %566 = vmatpush.xpose.msra.mxu0 0.0
    %567 = vmatpush.xpose.msra.mxu0 0.0
    %568 = vmatpush.xpose.msra.mxu0 0.0
    %569 = vmatpush.xpose.msra.mxu0 0.0
    %570 = vmatpush.xpose.msra.mxu0 0.0
    %571 = vmatpush.xpose.msra.mxu0 0.0
    %572 = vmatpush.xpose.msra.mxu0 0.0
    %573 = vmatpush.xpose.msra.mxu0 0.0
    %574 = vmatpush.xpose.msra.mxu0 0.0
    %575 = vmatpush.xpose.msra.mxu0 0.0
    %576 = vmatpush.xpose.msra.mxu0 0.0
    %577 = vmatpush.xpose.msra.mxu0 0.0
    %578 = vmatpush.xpose.msra.mxu0 0.0
    %579 = vmatpush.xpose.msra.mxu0 %v562
    %580 = vmatmul.f32.gmra.mxu0 %v559
    %v581 = vpop.f32.mrf.mxu0
    %v582 = vadd.f32 0.0, %v581
    %583 = vdwg.mxu0
    %v585 = vsel %vm531, %v262, 0
    %v588 = vsel %vm531, %v371, 0
    %590 = vmatpush.xpose.msra.mxu0 0.0
    %591 = vmatpush.xpose.msra.mxu0 0.0
    %592 = vmatpush.xpose.msra.mxu0 0.0
    %593 = vmatpush.xpose.msra.mxu0 0.0
    %594 = vmatpush.xpose.msra.mxu0 0.0
    %595 = vmatpush.xpose.msra.mxu0 0.0
    %596 = vmatpush.xpose.msra.mxu0 0.0
    %597 = vmatpush.xpose.msra.mxu0 0.0
    %598 = vmatpush.xpose.msra.mxu0 0.0
    %599 = vmatpush.xpose.msra.mxu0 0.0
    %600 = vmatpush.xpose.msra.mxu0 0.0
    %601 = vmatpush.xpose.msra.mxu0 0.0
    %602 = vmatpush.xpose.msra.mxu0 0.0
    %603 = vmatpush.xpose.msra.mxu0 0.0
    %604 = vmatpush.xpose.msra.mxu0 0.0
    %605 = vmatpush.xpose.msra.mxu0 %v588
    %606 = vmatmul.f32.gmra.mxu0 %v585
    %v607 = vpop.f32.mrf.mxu0
    %v608 = vadd.f32 0.0, %v607
    %609 = vdwg.mxu0
    %v611 = vsel %vm531, %v265, 0
    %v614 = vsel %vm531, %v374, 0
    %616 = vmatpush.xpose.msra.mxu0 0.0
    %617 = vmatpush.xpose.msra.mxu0 0.0
    %618 = vmatpush.xpose.msra.mxu0 0.0
    %619 = vmatpush.xpose.msra.mxu0 0.0
    %620 = vmatpush.xpose.msra.mxu0 0.0
    %621 = vmatpush.xpose.msra.mxu0 0.0
    %622 = vmatpush.xpose.msra.mxu0 0.0
    %623 = vmatpush.xpose.msra.mxu0 0.0
    %624 = vmatpush.xpose.msra.mxu0 0.0
    %625 = vmatpush.xpose.msra.mxu0 0.0
    %626 = vmatpush.xpose.msra.mxu0 0.0
    %627 = vmatpush.xpose.msra.mxu0 0.0
    %628 = vmatpush.xpose.msra.mxu0 0.0
    %629 = vmatpush.xpose.msra.mxu0 0.0
    %630 = vmatpush.xpose.msra.mxu0 0.0
    %631 = vmatpush.xpose.msra.mxu0 %v614
    %632 = vmatmul.f32.gmra.mxu0 %v611
    %v633 = vpop.f32.mrf.mxu0
    %v634 = vadd.f32 0.0, %v633
    %635 = vdwg.mxu0
    %v637 = vsel %vm531, %v285, 0
    %v640 = vsel %vm531, %v394, 0
    %642 = vmatpush.xpose.msra.mxu0 0.0
    %643 = vmatpush.xpose.msra.mxu0 0.0
    %644 = vmatpush.xpose.msra.mxu0 0.0
    %645 = vmatpush.xpose.msra.mxu0 0.0
    %646 = vmatpush.xpose.msra.mxu0 0.0
    %647 = vmatpush.xpose.msra.mxu0 0.0
    %648 = vmatpush.xpose.msra.mxu0 0.0
    %649 = vmatpush.xpose.msra.mxu0 0.0
    %650 = vmatpush.xpose.msra.mxu0 0.0
    %651 = vmatpush.xpose.msra.mxu0 0.0
    %652 = vmatpush.xpose.msra.mxu0 0.0
    %653 = vmatpush.xpose.msra.mxu0 0.0
    %654 = vmatpush.xpose.msra.mxu0 0.0
    %655 = vmatpush.xpose.msra.mxu0 0.0
    %656 = vmatpush.xpose.msra.mxu0 0.0
    %657 = vmatpush.xpose.msra.mxu0 %v640
    %658 = vmatmul.f32.gmra.mxu0 %v637
    %v659 = vpop.f32.mrf.mxu0
    %v660 = vadd.f32 0.0, %v659
    %661 = vdwg.mxu0
    %v663 = vsel %vm531, %v288, 0
    %v666 = vsel %vm531, %v397, 0
    %668 = vmatpush.xpose.msra.mxu0 0.0
    %669 = vmatpush.xpose.msra.mxu0 0.0
    %670 = vmatpush.xpose.msra.mxu0 0.0
    %671 = vmatpush.xpose.msra.mxu0 0.0
    %672 = vmatpush.xpose.msra.mxu0 0.0
    %673 = vmatpush.xpose.msra.mxu0 0.0
    %674 = vmatpush.xpose.msra.mxu0 0.0
    %675 = vmatpush.xpose.msra.mxu0 0.0
    %676 = vmatpush.xpose.msra.mxu0 0.0
    %677 = vmatpush.xpose.msra.mxu0 0.0
    %678 = vmatpush.xpose.msra.mxu0 0.0
    %679 = vmatpush.xpose.msra.mxu0 0.0
    %680 = vmatpush.xpose.msra.mxu0 0.0
    %681 = vmatpush.xpose.msra.mxu0 0.0
    %682 = vmatpush.xpose.msra.mxu0 0.0
    %683 = vmatpush.xpose.msra.mxu0 %v666
    %684 = vmatmul.f32.gmra.mxu0 %v663
    %v685 = vpop.f32.mrf.mxu0
    %v686 = vadd.f32 0.0, %v685
    %687 = vdwg.mxu0
    %v689 = vsel %vm531, %v308, 0
    %v692 = vsel %vm531, %v417, 0
    %694 = vmatpush.xpose.msra.mxu0 0.0
    %695 = vmatpush.xpose.msra.mxu0 0.0
    %696 = vmatpush.xpose.msra.mxu0 0.0
    %697 = vmatpush.xpose.msra.mxu0 0.0
    %698 = vmatpush.xpose.msra.mxu0 0.0
    %699 = vmatpush.xpose.msra.mxu0 0.0
    %700 = vmatpush.xpose.msra.mxu0 0.0
    %701 = vmatpush.xpose.msra.mxu0 0.0
    %702 = vmatpush.xpose.msra.mxu0 0.0
    %703 = vmatpush.xpose.msra.mxu0 0.0
    %704 = vmatpush.xpose.msra.mxu0 0.0
    %705 = vmatpush.xpose.msra.mxu0 0.0
    %706 = vmatpush.xpose.msra.mxu0 0.0
    %707 = vmatpush.xpose.msra.mxu0 0.0
    %708 = vmatpush.xpose.msra.mxu0 0.0
    %709 = vmatpush.xpose.msra.mxu0 %v692
    %710 = vmatmul.f32.gmra.mxu0 %v689
    %v711 = vpop.f32.mrf.mxu0
    %v712 = vadd.f32 0.0, %v711
    %713 = vdwg.mxu0
    %v715 = vsel %vm531, %v311, 0
    %v718 = vsel %vm531, %v420, 0
    %720 = vmatpush.xpose.msra.mxu0 0.0
    %721 = vmatpush.xpose.msra.mxu0 0.0
    %722 = vmatpush.xpose.msra.mxu0 0.0
    %723 = vmatpush.xpose.msra.mxu0 0.0
    %724 = vmatpush.xpose.msra.mxu0 0.0
    %725 = vmatpush.xpose.msra.mxu0 0.0
    %726 = vmatpush.xpose.msra.mxu0 0.0
    %727 = vmatpush.xpose.msra.mxu0 0.0
    %728 = vmatpush.xpose.msra.mxu0 0.0
    %729 = vmatpush.xpose.msra.mxu0 0.0
    %730 = vmatpush.xpose.msra.mxu0 0.0
    %731 = vmatpush.xpose.msra.mxu0 0.0
    %732 = vmatpush.xpose.msra.mxu0 0.0
    %733 = vmatpush.xpose.msra.mxu0 0.0
    %734 = vmatpush.xpose.msra.mxu0 0.0
    %735 = vmatpush.xpose.msra.mxu0 %v718
    %736 = vmatmul.f32.gmra.mxu0 %v715
    %v737 = vpop.f32.mrf.mxu0
    %v738 = vadd.f32 0.0, %v737
    %739 = vdwg.mxu0
    %v740 = vmul.f32 %v556, 0.35355338
    %v741 = vmul.f32 %v582, 0.35355338
    %v742 = vmul.f32 %v608, 0.35355338
    %v743 = vmul.f32 %v634, 0.35355338
    %v744 = vmul.f32 %v660, 0.35355338
    %v745 = vmul.f32 %v686, 0.35355338
    %v746 = vmul.f32 %v712, 0.35355338
    %v747 = vmul.f32 %v738, 0.35355338
    %v748 = vsel %vm138, 1, 0
    %vm749 = vcmp.eq.s32.totalorder %v748, 1
    %v750 = vsel %vm749, %v740, -1e+30
    %v751 = vsel %vm749, %v741, -1e+30
    %v752 = vsel %vm749, %v742, -1e+30
    %v753 = vsel %vm749, %v743, -1e+30
    %v754 = vsel %vm749, %v744, -1e+30
    %v755 = vsel %vm749, %v745, -1e+30
    %v756 = vsel %vm749, %v746, -1e+30
    %v757 = vsel %vm749, %v747, -1e+30
    %v758 = vsel %vm531, %v750, -inf
    %759 = vmax.xlane.f32.xlu0 %v758
    %v760 = vpop.xlane.xlu0 %759
    %v761 = vsel %vm531, %v751, -inf
    %762 = vmax.xlane.f32.xlu0 %v761
    %v763 = vpop.xlane.xlu0 %762
    %v764 = vsel %vm531, %v752, -inf
    %765 = vmax.xlane.f32.xlu0 %v764
    %v766 = vpop.xlane.xlu0 %765
    %v767 = vsel %vm531, %v753, -inf
    %768 = vmax.xlane.f32.xlu0 %v767
    %v769 = vpop.xlane.xlu0 %768
    %v770 = vsel %vm531, %v754, -inf
    %771 = vmax.xlane.f32.xlu0 %v770
    %v772 = vpop.xlane.xlu0 %771
    %v773 = vsel %vm531, %v755, -inf
    %774 = vmax.xlane.f32.xlu0 %v773
    %v775 = vpop.xlane.xlu0 %774
    %v776 = vsel %vm531, %v756, -inf
    %777 = vmax.xlane.f32.xlu0 %v776
    %v778 = vpop.xlane.xlu0 %777
    %v779 = vsel %vm531, %v757, -inf
    %780 = vmax.xlane.f32.xlu0 %v779
    %v781 = vpop.xlane.xlu0 %780
    %v782 = vsub.f32 %v750, %v760
    %v783 = vsub.f32 %v751, %v763
    %v784 = vsub.f32 %v752, %v766
    %v785 = vsub.f32 %v753, %v769
    %v786 = vsub.f32 %v754, %v772
    %v787 = vsub.f32 %v755, %v775
    %v788 = vsub.f32 %v756, %v778
    %v789 = vsub.f32 %v757, %v781
    %v790 = vmul.f32 %v782, 1.442695
    %v791 = vpow.pop %v790
    %v792 = vmul.f32 %v783, 1.442695
    %v793 = vpow.pop %v792
    %v794 = vmul.f32 %v784, 1.442695
    %v795 = vpow.pop %v794
    %v796 = vmul.f32 %v785, 1.442695
    %v797 = vpow.pop %v796
    %v798 = vmul.f32 %v786, 1.442695
    %v799 = vpow.pop %v798
    %v800 = vmul.f32 %v787, 1.442695
    %v801 = vpow.pop %v800
    %v802 = vmul.f32 %v788, 1.442695
    %v803 = vpow.pop %v802
    %v804 = vmul.f32 %v789, 1.442695
    %v805 = vpow.pop %v804
    %v806 = vsel %vm531, %v791, 0.0
    %807 = vadd.xlane.f32.xlu0 %v806
    %v808 = vpop.xlane.xlu0 %807
    %v809 = vsel %vm531, %v793, 0.0
    %810 = vadd.xlane.f32.xlu0 %v809
    %v811 = vpop.xlane.xlu0 %810
    %v812 = vsel %vm531, %v795, 0.0
    %813 = vadd.xlane.f32.xlu0 %v812
    %v814 = vpop.xlane.xlu0 %813
    %v815 = vsel %vm531, %v797, 0.0
    %816 = vadd.xlane.f32.xlu0 %v815
    %v817 = vpop.xlane.xlu0 %816
    %v818 = vsel %vm531, %v799, 0.0
    %819 = vadd.xlane.f32.xlu0 %v818
    %v820 = vpop.xlane.xlu0 %819
    %v821 = vsel %vm531, %v801, 0.0
    %822 = vadd.xlane.f32.xlu0 %v821
    %v823 = vpop.xlane.xlu0 %822
    %v824 = vsel %vm531, %v803, 0.0
    %825 = vadd.xlane.f32.xlu0 %v824
    %v826 = vpop.xlane.xlu0 %825
    %v827 = vsel %vm531, %v805, 0.0
    %828 = vadd.xlane.f32.xlu0 %v827
    %v829 = vpop.xlane.xlu0 %828
    %v830 = vrcp.pop %v808
    %v831 = vrcp.pop %v811
    %v832 = vrcp.pop %v814
    %v833 = vrcp.pop %v817
    %v834 = vrcp.pop %v820
    %v835 = vrcp.pop %v823
    %v836 = vrcp.pop %v826
    %v837 = vrcp.pop %v829
    %v838 = vmul.f32 %v791, %v830
    %v839 = vmul.f32 %v793, %v831
    %v840 = vmul.f32 %v795, %v832
    %v841 = vmul.f32 %v797, %v833
    %v842 = vmul.f32 %v799, %v834
    %v843 = vmul.f32 %v801, %v835
    %v844 = vmul.f32 %v803, %v836
    %v845 = vmul.f32 %v805, %v837
    %v847 = vsel %vm531, %v838, 0
    %849 = vmatpush.msra.mxu0 0.0
    %850 = vmatpush.msra.mxu0 0.0
    %851 = vmatpush.msra.mxu0 0.0
    %852 = vmatpush.msra.mxu0 0.0
    %853 = vmatpush.msra.mxu0 0.0
    %854 = vmatpush.msra.mxu0 0.0
    %855 = vmatpush.msra.mxu0 0.0
    %856 = vmatpush.msra.mxu0 0.0
    %857 = vmatpush.msra.mxu0 0.0
    %858 = vmatpush.msra.mxu0 0.0
    %859 = vmatpush.msra.mxu0 0.0
    %860 = vmatpush.msra.mxu0 0.0
    %861 = vmatpush.msra.mxu0 0.0
    %862 = vmatpush.msra.mxu0 0.0
    %863 = vmatpush.msra.mxu0 0.0
    %864 = vmatpush.msra.mxu0 %v457
    %865 = vmatmul.f32.gmra.mxu0 %v847
    %v866 = vpop.f32.mrf.mxu0
    %v867 = vadd.f32 0.0, %v866
    %868 = vdwg.mxu0
    %v870 = vsel %vm531, %v839, 0
    %872 = vmatpush.msra.mxu0 0.0
    %873 = vmatpush.msra.mxu0 0.0
    %874 = vmatpush.msra.mxu0 0.0
    %875 = vmatpush.msra.mxu0 0.0
    %876 = vmatpush.msra.mxu0 0.0
    %877 = vmatpush.msra.mxu0 0.0
    %878 = vmatpush.msra.mxu0 0.0
    %879 = vmatpush.msra.mxu0 0.0
    %880 = vmatpush.msra.mxu0 0.0
    %881 = vmatpush.msra.mxu0 0.0
    %882 = vmatpush.msra.mxu0 0.0
    %883 = vmatpush.msra.mxu0 0.0
    %884 = vmatpush.msra.mxu0 0.0
    %885 = vmatpush.msra.mxu0 0.0
    %886 = vmatpush.msra.mxu0 0.0
    %887 = vmatpush.msra.mxu0 %v460
    %888 = vmatmul.f32.gmra.mxu0 %v870
    %v889 = vpop.f32.mrf.mxu0
    %v890 = vadd.f32 0.0, %v889
    %891 = vdwg.mxu0
    %v893 = vsel %vm531, %v840, 0
    %895 = vmatpush.msra.mxu0 0.0
    %896 = vmatpush.msra.mxu0 0.0
    %897 = vmatpush.msra.mxu0 0.0
    %898 = vmatpush.msra.mxu0 0.0
    %899 = vmatpush.msra.mxu0 0.0
    %900 = vmatpush.msra.mxu0 0.0
    %901 = vmatpush.msra.mxu0 0.0
    %902 = vmatpush.msra.mxu0 0.0
    %903 = vmatpush.msra.mxu0 0.0
    %904 = vmatpush.msra.mxu0 0.0
    %905 = vmatpush.msra.mxu0 0.0
    %906 = vmatpush.msra.mxu0 0.0
    %907 = vmatpush.msra.mxu0 0.0
    %908 = vmatpush.msra.mxu0 0.0
    %909 = vmatpush.msra.mxu0 0.0
    %910 = vmatpush.msra.mxu0 %v480
    %911 = vmatmul.f32.gmra.mxu0 %v893
    %v912 = vpop.f32.mrf.mxu0
    %v913 = vadd.f32 0.0, %v912
    %914 = vdwg.mxu0
    %v916 = vsel %vm531, %v841, 0
    %918 = vmatpush.msra.mxu0 0.0
    %919 = vmatpush.msra.mxu0 0.0
    %920 = vmatpush.msra.mxu0 0.0
    %921 = vmatpush.msra.mxu0 0.0
    %922 = vmatpush.msra.mxu0 0.0
    %923 = vmatpush.msra.mxu0 0.0
    %924 = vmatpush.msra.mxu0 0.0
    %925 = vmatpush.msra.mxu0 0.0
    %926 = vmatpush.msra.mxu0 0.0
    %927 = vmatpush.msra.mxu0 0.0
    %928 = vmatpush.msra.mxu0 0.0
    %929 = vmatpush.msra.mxu0 0.0
    %930 = vmatpush.msra.mxu0 0.0
    %931 = vmatpush.msra.mxu0 0.0
    %932 = vmatpush.msra.mxu0 0.0
    %933 = vmatpush.msra.mxu0 %v483
    %934 = vmatmul.f32.gmra.mxu0 %v916
    %v935 = vpop.f32.mrf.mxu0
    %v936 = vadd.f32 0.0, %v935
    %937 = vdwg.mxu0
    %v939 = vsel %vm531, %v842, 0
    %941 = vmatpush.msra.mxu0 0.0
    %942 = vmatpush.msra.mxu0 0.0
    %943 = vmatpush.msra.mxu0 0.0
    %944 = vmatpush.msra.mxu0 0.0
    %945 = vmatpush.msra.mxu0 0.0
    %946 = vmatpush.msra.mxu0 0.0
    %947 = vmatpush.msra.mxu0 0.0
    %948 = vmatpush.msra.mxu0 0.0
    %949 = vmatpush.msra.mxu0 0.0
    %950 = vmatpush.msra.mxu0 0.0
    %951 = vmatpush.msra.mxu0 0.0
    %952 = vmatpush.msra.mxu0 0.0
    %953 = vmatpush.msra.mxu0 0.0
    %954 = vmatpush.msra.mxu0 0.0
    %955 = vmatpush.msra.mxu0 0.0
    %956 = vmatpush.msra.mxu0 %v503
    %957 = vmatmul.f32.gmra.mxu0 %v939
    %v958 = vpop.f32.mrf.mxu0
    %v959 = vadd.f32 0.0, %v958
    %960 = vdwg.mxu0
    %v962 = vsel %vm531, %v843, 0
    %964 = vmatpush.msra.mxu0 0.0
    %965 = vmatpush.msra.mxu0 0.0
    %966 = vmatpush.msra.mxu0 0.0
    %967 = vmatpush.msra.mxu0 0.0
    %968 = vmatpush.msra.mxu0 0.0
    %969 = vmatpush.msra.mxu0 0.0
    %970 = vmatpush.msra.mxu0 0.0
    %971 = vmatpush.msra.mxu0 0.0
    %972 = vmatpush.msra.mxu0 0.0
    %973 = vmatpush.msra.mxu0 0.0
    %974 = vmatpush.msra.mxu0 0.0
    %975 = vmatpush.msra.mxu0 0.0
    %976 = vmatpush.msra.mxu0 0.0
    %977 = vmatpush.msra.mxu0 0.0
    %978 = vmatpush.msra.mxu0 0.0
    %979 = vmatpush.msra.mxu0 %v506
    %980 = vmatmul.f32.gmra.mxu0 %v962
    %v981 = vpop.f32.mrf.mxu0
    %v982 = vadd.f32 0.0, %v981
    %983 = vdwg.mxu0
    %v985 = vsel %vm531, %v844, 0
    %987 = vmatpush.msra.mxu0 0.0
    %988 = vmatpush.msra.mxu0 0.0
    %989 = vmatpush.msra.mxu0 0.0
    %990 = vmatpush.msra.mxu0 0.0
    %991 = vmatpush.msra.mxu0 0.0
    %992 = vmatpush.msra.mxu0 0.0
    %993 = vmatpush.msra.mxu0 0.0
    %994 = vmatpush.msra.mxu0 0.0
    %995 = vmatpush.msra.mxu0 0.0
    %996 = vmatpush.msra.mxu0 0.0
    %997 = vmatpush.msra.mxu0 0.0
    %998 = vmatpush.msra.mxu0 0.0
    %999 = vmatpush.msra.mxu0 0.0
    %1000 = vmatpush.msra.mxu0 0.0
    %1001 = vmatpush.msra.mxu0 0.0
    %1002 = vmatpush.msra.mxu0 %v526
    %1003 = vmatmul.f32.gmra.mxu0 %v985
    %v1004 = vpop.f32.mrf.mxu0
    %v1005 = vadd.f32 0.0, %v1004
    %1006 = vdwg.mxu0
    %v1008 = vsel %vm531, %v845, 0
    %1010 = vmatpush.msra.mxu0 0.0
    %1011 = vmatpush.msra.mxu0 0.0
    %1012 = vmatpush.msra.mxu0 0.0
    %1013 = vmatpush.msra.mxu0 0.0
    %1014 = vmatpush.msra.mxu0 0.0
    %1015 = vmatpush.msra.mxu0 0.0
    %1016 = vmatpush.msra.mxu0 0.0
    %1017 = vmatpush.msra.mxu0 0.0
    %1018 = vmatpush.msra.mxu0 0.0
    %1019 = vmatpush.msra.mxu0 0.0
    %1020 = vmatpush.msra.mxu0 0.0
    %1021 = vmatpush.msra.mxu0 0.0
    %1022 = vmatpush.msra.mxu0 0.0
    %1023 = vmatpush.msra.mxu0 0.0
    %1024 = vmatpush.msra.mxu0 0.0
    %1025 = vmatpush.msra.mxu0 %v529
    %1026 = vmatmul.f32.gmra.mxu0 %v1008
    %v1027 = vpop.f32.mrf.mxu0
    %v1028 = vadd.f32 0.0, %v1027
    %1029 = vdwg.mxu0
    %v1030 = vld [vmem:[%s4] sm:$0xff]
    %v1031 = vld [vmem:[%s4 + $0x8] sm:$0xff]
    %v1032 = vld [vmem:[%s4 + $0x10] sm:$0xff]
    %v1033 = vld [vmem:[%s4 + $0x18] sm:$0xff]
    %v1035 = vsel %vm531, %v867, 0
    %v1038 = vsel %vm531, %v890, 0
    %1040 = vmatpush.msra.mxu0 0.0
    %1041 = vmatpush.msra.mxu0 0.0
    %1042 = vmatpush.msra.mxu0 0.0
    %1043 = vmatpush.msra.mxu0 0.0
    %1044 = vmatpush.msra.mxu0 0.0
    %1045 = vmatpush.msra.mxu0 0.0
    %1046 = vmatpush.msra.mxu0 0.0
    %1047 = vmatpush.msra.mxu0 0.0
    %1048 = vmatpush.msra.mxu0 0.0
    %1049 = vmatpush.msra.mxu0 0.0
    %1050 = vmatpush.msra.mxu0 0.0
    %1051 = vmatpush.msra.mxu0 0.0
    %1052 = vmatpush.msra.mxu0 0.0
    %1053 = vmatpush.msra.mxu0 0.0
    %1054 = vmatpush.msra.mxu0 0.0
    %1055 = vmatpush.msra.mxu0 %v1030
    %1056 = vmatmul.f32.gmra.mxu0 %v1035
    %v1057 = vpop.f32.mrf.mxu0
    %v1058 = vadd.f32 0.0, %v1057
    %1059 = vmatmul.f32.gmra.mxu0 %v1038
    %v1060 = vpop.f32.mrf.mxu0
    %v1061 = vadd.f32 0.0, %v1060
    %1062 = vdwg.mxu0
    %v1064 = vsel %vm531, %v913, 0
    %v1067 = vsel %vm531, %v936, 0
    %1069 = vmatpush.msra.mxu0 0.0
    %1070 = vmatpush.msra.mxu0 0.0
    %1071 = vmatpush.msra.mxu0 0.0
    %1072 = vmatpush.msra.mxu0 0.0
    %1073 = vmatpush.msra.mxu0 0.0
    %1074 = vmatpush.msra.mxu0 0.0
    %1075 = vmatpush.msra.mxu0 0.0
    %1076 = vmatpush.msra.mxu0 0.0
    %1077 = vmatpush.msra.mxu0 0.0
    %1078 = vmatpush.msra.mxu0 0.0
    %1079 = vmatpush.msra.mxu0 0.0
    %1080 = vmatpush.msra.mxu0 0.0
    %1081 = vmatpush.msra.mxu0 0.0
    %1082 = vmatpush.msra.mxu0 0.0
    %1083 = vmatpush.msra.mxu0 0.0
    %1084 = vmatpush.msra.mxu0 %v1031
    %1085 = vmatmul.f32.gmra.mxu0 %v1064
    %v1086 = vpop.f32.mrf.mxu0
    %v1087 = vadd.f32 0.0, %v1086
    %1088 = vmatmul.f32.gmra.mxu0 %v1067
    %v1089 = vpop.f32.mrf.mxu0
    %v1090 = vadd.f32 0.0, %v1089
    %1091 = vdwg.mxu0
    %v1093 = vsel %vm531, %v959, 0
    %v1096 = vsel %vm531, %v982, 0
    %1098 = vmatpush.msra.mxu0 0.0
    %1099 = vmatpush.msra.mxu0 0.0
    %1100 = vmatpush.msra.mxu0 0.0
    %1101 = vmatpush.msra.mxu0 0.0
    %1102 = vmatpush.msra.mxu0 0.0
    %1103 = vmatpush.msra.mxu0 0.0
    %1104 = vmatpush.msra.mxu0 0.0
    %1105 = vmatpush.msra.mxu0 0.0
    %1106 = vmatpush.msra.mxu0 0.0
    %1107 = vmatpush.msra.mxu0 0.0
    %1108 = vmatpush.msra.mxu0 0.0
    %1109 = vmatpush.msra.mxu0 0.0
    %1110 = vmatpush.msra.mxu0 0.0
    %1111 = vmatpush.msra.mxu0 0.0
    %1112 = vmatpush.msra.mxu0 0.0
    %1113 = vmatpush.msra.mxu0 %v1032
    %1114 = vmatmul.f32.gmra.mxu0 %v1093
    %v1115 = vpop.f32.mrf.mxu0
    %v1116 = vadd.f32 0.0, %v1115
    %1117 = vmatmul.f32.gmra.mxu0 %v1096
    %v1118 = vpop.f32.mrf.mxu0
    %v1119 = vadd.f32 0.0, %v1118
    %1120 = vdwg.mxu0
    %v1122 = vsel %vm531, %v1005, 0
    %v1125 = vsel %vm531, %v1028, 0
    %1127 = vmatpush.msra.mxu0 0.0
    %1128 = vmatpush.msra.mxu0 0.0
    %1129 = vmatpush.msra.mxu0 0.0
    %1130 = vmatpush.msra.mxu0 0.0
    %1131 = vmatpush.msra.mxu0 0.0
    %1132 = vmatpush.msra.mxu0 0.0
    %1133 = vmatpush.msra.mxu0 0.0
    %1134 = vmatpush.msra.mxu0 0.0
    %1135 = vmatpush.msra.mxu0 0.0
    %1136 = vmatpush.msra.mxu0 0.0
    %1137 = vmatpush.msra.mxu0 0.0
    %1138 = vmatpush.msra.mxu0 0.0
    %1139 = vmatpush.msra.mxu0 0.0
    %1140 = vmatpush.msra.mxu0 0.0
    %1141 = vmatpush.msra.mxu0 0.0
    %1142 = vmatpush.msra.mxu0 %v1033
    %1143 = vmatmul.f32.gmra.mxu0 %v1122
    %v1144 = vpop.f32.mrf.mxu0
    %v1145 = vadd.f32 0.0, %v1144
    %1146 = vmatmul.f32.gmra.mxu0 %v1125
    %v1147 = vpop.f32.mrf.mxu0
    %v1148 = vadd.f32 0.0, %v1147
    %1149 = vdwg.mxu0
    %v1150 = vsel %vm141, %v1058, 0.0
    %v1151 = vsel %vm141, %v1087, 0.0
    %v1152 = vadd.f32 %v1150, %v1151
    %v1153 = vsel %vm141, %v1116, 0.0
    %v1154 = vadd.f32 %v1152, %v1153
    %v1155 = vsel %vm141, %v1145, 0.0
    %v1156 = vadd.f32 %v1154, %v1155
    %v1157 = vsel %vm141, %v1061, 0.0
    %v1158 = vsel %vm141, %v1090, 0.0
    %v1159 = vadd.f32 %v1157, %v1158
    %v1160 = vsel %vm141, %v1119, 0.0
    %v1161 = vadd.f32 %v1159, %v1160
    %v1162 = vsel %vm141, %v1148, 0.0
    %v1163 = vadd.f32 %v1161, %v1162
    %v1164 = vadd.f32 %v131, %v1156
    %v1165 = vadd.f32 %v134, %v1163
    %v1166 = vld [vmem:[%s7 + $0x4] sm:$0x1]
    %v1167 = vperm.slane %v1166, 0
    %v1168 = vadd.f32 %v1164, %v1167
    %v1169 = vadd.f32 %v1165, %v1167
    %v1170 = vld [vmem:[%s7 + $0x2] sm:$0x1]
    %v1171 = vld [vmem:[%s7 + $0x3] sm:$0x1]
    %v1172 = vsel %vm141, %v1168, 0.0
    %1173 = vadd.xlane.f32.xlu0 %v1172
    %v1174 = vpop.xlane.xlu0 %1173
    %v1175 = vsel %vm141, %v1169, 0.0
    %1176 = vadd.xlane.f32.xlu0 %v1175
    %v1177 = vpop.xlane.xlu0 %1176
    %v1178 = vmul.f32 %v1174, %v154
    %v1179 = vmul.f32 %v1177, %v154
    %v1180 = vsub.f32 %v1168, %v1178
    %v1181 = vsub.f32 %v1169, %v1179
    %v1182 = vmul.f32 %v1180, %v1180
    %v1183 = vmul.f32 %v1181, %v1181
    %v1184 = vsel %vm141, %v1182, 0.0
    %1185 = vadd.xlane.f32.xlu0 %v1184
    %v1186 = vpop.xlane.xlu0 %1185
    %v1187 = vsel %vm141, %v1183, 0.0
    %1188 = vadd.xlane.f32.xlu0 %v1187
    %v1189 = vpop.xlane.xlu0 %1188
    %v1190 = vmul.f32 %v1186, %v154
    %v1191 = vmul.f32 %v1189, %v154
    %v1192 = vadd.f32 %v1190, 1e-05
    %v1193 = vadd.f32 %v1191, 1e-05
    %v1194 = vrsqrt.pop %v1192
    %v1195 = vmul.f32 %v1194, %v1192
    %v1196 = vmul.f32 %v1195, %v1194
    %v1197 = vmul.f32 0.5, %v1196
    %v1198 = vsub.f32 1.5, %v1197
    %v1199 = vmul.f32 %v1194, %v1198
    %vm1200 = vweird.f32 %v1192
    %vm1201 = vweird.f32 %v1194
    %vm1202 = vmor %vm1200, %vm1201
    %v1203 = vsel %vm1202, %v1194, %v1199
    %v1204 = vrsqrt.pop %v1193
    %v1205 = vmul.f32 %v1204, %v1193
    %v1206 = vmul.f32 %v1205, %v1204
    %v1207 = vmul.f32 0.5, %v1206
    %v1208 = vsub.f32 1.5, %v1207
    %v1209 = vmul.f32 %v1204, %v1208
    %vm1210 = vweird.f32 %v1193
    %vm1211 = vweird.f32 %v1204
    %vm1212 = vmor %vm1210, %vm1211
    %v1213 = vsel %vm1212, %v1204, %v1209
    %v1214 = vmul.f32 %v1180, %v1203
    %v1215 = vmul.f32 %v1181, %v1213
    %v1216 = vperm.slane %v1170, 0
    %v1217 = vmul.f32 %v1216, %v1214
    %v1218 = vmul.f32 %v1216, %v1215
    %v1219 = vperm.slane %v1171, 0
    %v1220 = vadd.f32 %v1217, %v1219
    %v1221 = vadd.f32 %v1218, %v1219
    %v1222 = vld [vmem:[%s5] sm:$0xff]
    %v1223 = vld [vmem:[%s5 + $0x8] sm:$0xff]
    %v1224 = vld [vmem:[%s5 + $0x10] sm:$0xff]
    %v1225 = vld [vmem:[%s5 + $0x18] sm:$0xff]
    %v1226 = vld [vmem:[%s7 + $0x5] sm:$0x1]
    %v1227 = vperm.slane %v1226, 0
    %v1229 = vsel %vm141, %v1220, 0
    %v1232 = vsel %vm141, %v1221, 0
    %1234 = vmatpush.msra.mxu0 0.0
    %1235 = vmatpush.msra.mxu0 0.0
    %1236 = vmatpush.msra.mxu0 0.0
    %1237 = vmatpush.msra.mxu0 0.0
    %1238 = vmatpush.msra.mxu0 0.0
    %1239 = vmatpush.msra.mxu0 0.0
    %1240 = vmatpush.msra.mxu0 0.0
    %1241 = vmatpush.msra.mxu0 0.0
    %1242 = vmatpush.msra.mxu0 0.0
    %1243 = vmatpush.msra.mxu0 0.0
    %1244 = vmatpush.msra.mxu0 0.0
    %1245 = vmatpush.msra.mxu0 0.0
    %1246 = vmatpush.msra.mxu0 %v1225
    %1247 = vmatpush.msra.mxu0 %v1224
    %1248 = vmatpush.msra.mxu0 %v1223
    %1249 = vmatpush.msra.mxu0 %v1222
    %1250 = vmatmul.f32.gmra.mxu0 %v1229
    %v1251 = vpop.f32.mrf.mxu0
    %v1252 = vadd.f32 %v1227, %v1251
    %1253 = vmatmul.f32.gmra.mxu0 %v1232
    %v1254 = vpop.f32.mrf.mxu0
    %v1255 = vadd.f32 %v1227, %v1254
    %1256 = vdwg.mxu0
    %v1257 = vmul.f32 %v1252, 0.5
    %v1258 = vmul.f32 %v1255, 0.5
    %v1259 = vmul.f32 %v1252, 0.70710677
    %v1260 = vmul.f32 %v1255, 0.70710677
    %v1261 = vand.u32 2147483647, %v1259
    %v1262 = vand.u32 2147483647, %v1260
    %v1263 = vmul.f32 %v1261, 0.3275911
    %v1264 = vmul.f32 %v1262, 0.3275911
    %v1265 = vadd.f32 %v1263, 1.0
    %v1266 = vadd.f32 %v1264, 1.0
    %v1267 = vrcp.pop %v1265
    %v1268 = vmul.f32 %v1265, %v1267
    %v1269 = vsub.f32 1.0, %v1268
    %v1270 = vmul.f32 %v1267, %v1269
    %v1271 = vadd.f32 %v1267, %v1270
    %vm1272 = vweird.f32 %v1265
    %vm1273 = vweird.f32 %v1267
    %vm1274 = vmor %vm1272, %vm1273
    %v1275 = vsel %vm1274, %v1267, %v1271
    %v1276 = vand.u32 2147483647, %v1265
    %vm1277 = vcmp.eq.f32.partialorder %v1276, 8.507059e+37
    %v1278 = vand.u32 %v1265, 2147483648
    %v1279 = vor.u32 1.1754944e-38, %v1278
    %v1280 = vsel %vm1277, %v1279, %v1275
    %v1281 = vmul.f32 1.0, %v1280
    %v1282 = vrcp.pop %v1266
    %v1283 = vmul.f32 %v1266, %v1282
    %v1284 = vsub.f32 1.0, %v1283
    %v1285 = vmul.f32 %v1282, %v1284
    %v1286 = vadd.f32 %v1282, %v1285
    %vm1287 = vweird.f32 %v1266
    %vm1288 = vweird.f32 %v1282
    %vm1289 = vmor %vm1287, %vm1288
    %v1290 = vsel %vm1289, %v1282, %v1286
    %v1291 = vand.u32 2147483647, %v1266
    %vm1292 = vcmp.eq.f32.partialorder %v1291, 8.507059e+37
    %v1293 = vand.u32 %v1266, 2147483648
    %v1294 = vor.u32 1.1754944e-38, %v1293
    %v1295 = vsel %vm1292, %v1294, %v1290
    %v1296 = vmul.f32 1.0, %v1295
    %v1297 = vmul.f32 %v1281, 1.0614054
    %v1298 = vmul.f32 %v1296, 1.0614054
    %v1299 = vadd.f32 %v1297, -1.4531521
    %v1300 = vadd.f32 %v1298, -1.4531521
    %v1301 = vmul.f32 %v1299, %v1281
    %v1302 = vmul.f32 %v1300, %v1296
    %v1303 = vadd.f32 %v1301, 1.4214138
    %v1304 = vadd.f32 %v1302, 1.4214138
    %v1305 = vmul.f32 %v1303, %v1281
    %v1306 = vmul.f32 %v1304, %v1296
    %v1307 = vadd.f32 %v1305, -0.28449672
    %v1308 = vadd.f32 %v1306, -0.28449672
    %v1309 = vmul.f32 %v1307, %v1281
    %v1310 = vmul.f32 %v1308, %v1296
    %v1311 = vadd.f32 %v1309, 0.2548296
    %v1312 = vadd.f32 %v1310, 0.2548296
    %v1313 = vmul.f32 %v1311, %v1281
    %v1314 = vmul.f32 %v1312, %v1296
    %v1315 = vsub.f32 0.0, %v1261
    %v1316 = vsub.f32 0.0, %v1262
    %v1317 = vmul.f32 %v1315, %v1261
    %v1318 = vmul.f32 %v1316, %v1262
    %v1319 = vmul.f32 %v1317, 1.442695
    %v1320 = vpow.pop %v1319
    %v1321 = vmul.f32 %v1318, 1.442695
    %v1322 = vpow.pop %v1321
    %v1323 = vmul.f32 %v1313, %v1320
    %v1324 = vmul.f32 %v1314, %v1322
    %v1325 = vsub.f32 1.0, %v1323
    %v1326 = vsub.f32 1.0, %v1324
    %vm1327 = vcmp.ge.f32.partialorder %v1259, 0.0
    %vm1328 = vcmp.ge.f32.partialorder %v1260, 0.0
    %v1329 = vsub.f32 0.0, %v1325
    %v1330 = vsub.f32 0.0, %v1326
    %v1331 = vsel %vm1327, %v1325, %v1329
    %v1332 = vsel %vm1328, %v1326, %v1330
    %v1333 = vadd.f32 %v1331, 1.0
    %v1334 = vadd.f32 %v1332, 1.0
    %v1335 = vmul.f32 %v1257, %v1333
    %v1336 = vmul.f32 %v1258, %v1334
    %v1337 = vld [vmem:[%s6] sm:$0xff]
    %v1338 = vld [vmem:[%s6 + $0x8] sm:$0xff]
    %v1339 = vld [vmem:[%s6 + $0x10] sm:$0xff]
    %v1340 = vld [vmem:[%s6 + $0x18] sm:$0xff]
    %v1341 = vld [vmem:[%s6 + $0x20] sm:$0xff]
    %v1342 = vld [vmem:[%s6 + $0x28] sm:$0xff]
    %v1343 = vld [vmem:[%s6 + $0x30] sm:$0xff]
    %v1344 = vld [vmem:[%s6 + $0x38] sm:$0xff]
    %v1345 = vld [vmem:[%s6 + $0x40] sm:$0xff]
    %v1346 = vld [vmem:[%s6 + $0x48] sm:$0xff]
    %v1347 = vld [vmem:[%s6 + $0x50] sm:$0xff]
    %v1348 = vld [vmem:[%s6 + $0x58] sm:$0xff]
    %v1349 = vld [vmem:[%s6 + $0x60] sm:$0xff]
    %v1350 = vld [vmem:[%s6 + $0x68] sm:$0xff]
    %v1351 = vld [vmem:[%s6 + $0x70] sm:$0xff]
    %v1352 = vld [vmem:[%s6 + $0x78] sm:$0xff]
    %v1353 = vld [vmem:[%s7 + $0x6] sm:$0x1]
    %v1354 = vperm.slane %v1353, 0
    %1355 = vmatpush.msra.mxu0 %v1352
    %1356 = vmatpush.msra.mxu0 %v1351
    %1357 = vmatpush.msra.mxu0 %v1350
    %1358 = vmatpush.msra.mxu0 %v1349
    %1359 = vmatpush.msra.mxu0 %v1348
    %1360 = vmatpush.msra.mxu0 %v1347
    %1361 = vmatpush.msra.mxu0 %v1346
    %1362 = vmatpush.msra.mxu0 %v1345
    %1363 = vmatpush.msra.mxu0 %v1344
    %1364 = vmatpush.msra.mxu0 %v1343
    %1365 = vmatpush.msra.mxu0 %v1342
    %1366 = vmatpush.msra.mxu0 %v1341
    %1367 = vmatpush.msra.mxu0 %v1340
    %1368 = vmatpush.msra.mxu0 %v1339
    %1369 = vmatpush.msra.mxu0 %v1338
    %1370 = vmatpush.msra.mxu0 %v1337
    %1371 = vmatmul.f32.gmra.mxu0 %v1335
    %v1372 = vpop.f32.mrf.mxu0
    %v1373 = vadd.f32 %v1354, %v1372
    %1374 = vmatmul.f32.gmra.mxu0 %v1336
    %v1375 = vpop.f32.mrf.mxu0
    %v1376 = vadd.f32 %v1354, %v1375
    %1377 = vdwg.mxu0
    %v1378 = vadd.f32 %v1168, %v1373
    %v1379 = vadd.f32 %v1169, %v1376
    %s1380 = scalar_lea.vmem %s7, 8
    %v1381 = vld [vmem:[%s1380] sm:$0x1]
    %v1382 = vld [vmem:[%s1380 + $0x1] sm:$0x1]
    %v1383 = vsel %vm141, %v1378, 0.0
    %1384 = vadd.xlane.f32.xlu0 %v1383
    %v1385 = vpop.xlane.xlu0 %1384
    %v1386 = vsel %vm141, %v1379, 0.0
    %1387 = vadd.xlane.f32.xlu0 %v1386
    %v1388 = vpop.xlane.xlu0 %1387
    %v1389 = vmul.f32 %v1385, %v154
    %v1390 = vmul.f32 %v1388, %v154
    %v1391 = vsub.f32 %v1378, %v1389
    %v1392 = vsub.f32 %v1379, %v1390
    %v1393 = vmul.f32 %v1391, %v1391
    %v1394 = vmul.f32 %v1392, %v1392
    %v1395 = vsel %vm141, %v1393, 0.0
    %1396 = vadd.xlane.f32.xlu0 %v1395
    %v1397 = vpop.xlane.xlu0 %1396
    %v1398 = vsel %vm141, %v1394, 0.0
    %1399 = vadd.xlane.f32.xlu0 %v1398
    %v1400 = vpop.xlane.xlu0 %1399
    %v1401 = vmul.f32 %v1397, %v154
    %v1402 = vmul.f32 %v1400, %v154
    %v1403 = vadd.f32 %v1401, 1e-05
    %v1404 = vadd.f32 %v1402, 1e-05
    %v1405 = vrsqrt.pop %v1403
    %v1406 = vmul.f32 %v1405, %v1403
    %v1407 = vmul.f32 %v1406, %v1405
    %v1408 = vmul.f32 0.5, %v1407
    %v1409 = vsub.f32 1.5, %v1408
    %v1410 = vmul.f32 %v1405, %v1409
    %vm1411 = vweird.f32 %v1403
    %vm1412 = vweird.f32 %v1405
    %vm1413 = vmor %vm1411, %vm1412
    %v1414 = vsel %vm1413, %v1405, %v1410
    %v1415 = vrsqrt.pop %v1404
    %v1416 = vmul.f32 %v1415, %v1404
    %v1417 = vmul.f32 %v1416, %v1415
    %v1418 = vmul.f32 0.5, %v1417
    %v1419 = vsub.f32 1.5, %v1418
    %v1420 = vmul.f32 %v1415, %v1419
    %vm1421 = vweird.f32 %v1404
    %vm1422 = vweird.f32 %v1415
    %vm1423 = vmor %vm1421, %vm1422
    %v1424 = vsel %vm1423, %v1415, %v1420
    %v1425 = vmul.f32 %v1391, %v1414
    %v1426 = vmul.f32 %v1392, %v1424
    %v1427 = vperm.slane %v1381, 0
    %v1428 = vmul.f32 %v1427, %v1425
    %v1429 = vmul.f32 %v1427, %v1426
    %v1430 = vperm.slane %v1382, 0
    %v1431 = vadd.f32 %v1428, %v1430
    %v1432 = vadd.f32 %v1429, %v1430
    %s1433 = scalar_lea.vmem %s3, 384
    %v1434 = vld [vmem:[%s1433] sm:$0xff]
    %v1435 = vld [vmem:[%s1433 + $0x8] sm:$0xff]
    %v1436 = vld [vmem:[%s1433 + $0x10] sm:$0xff]
    %v1437 = vld [vmem:[%s1433 + $0x18] sm:$0xff]
    %v1438 = vld [vmem:[%s1433 + $0x20] sm:$0xff]
    %v1439 = vld [vmem:[%s1433 + $0x28] sm:$0xff]
    %v1440 = vld [vmem:[%s1433 + $0x30] sm:$0xff]
    %v1441 = vld [vmem:[%s1433 + $0x38] sm:$0xff]
    %v1442 = vld [vmem:[%s1433 + $0x40] sm:$0xff]
    %v1443 = vld [vmem:[%s1433 + $0x48] sm:$0xff]
    %v1444 = vld [vmem:[%s1433 + $0x50] sm:$0xff]
    %v1445 = vld [vmem:[%s1433 + $0x58] sm:$0xff]
    %v1446 = vld [vmem:[%s1433 + $0x60] sm:$0xff]
    %v1447 = vld [vmem:[%s1433 + $0x68] sm:$0xff]
    %v1448 = vld [vmem:[%s1433 + $0x70] sm:$0xff]
    %v1449 = vld [vmem:[%s1433 + $0x78] sm:$0xff]
    %v1451 = vsel %vm141, %v1431, 0
    %v1454 = vsel %vm141, %v1432, 0
    %1456 = vmatpush.msra.mxu0 0.0
    %1457 = vmatpush.msra.mxu0 0.0
    %1458 = vmatpush.msra.mxu0 0.0
    %1459 = vmatpush.msra.mxu0 0.0
    %1460 = vmatpush.msra.mxu0 0.0
    %1461 = vmatpush.msra.mxu0 0.0
    %1462 = vmatpush.msra.mxu0 0.0
    %1463 = vmatpush.msra.mxu0 0.0
    %1464 = vmatpush.msra.mxu0 0.0
    %1465 = vmatpush.msra.mxu0 0.0
    %1466 = vmatpush.msra.mxu0 0.0
    %1467 = vmatpush.msra.mxu0 0.0
    %1468 = vmatpush.msra.mxu0 %v1437
    %1469 = vmatpush.msra.mxu0 %v1436
    %1470 = vmatpush.msra.mxu0 %v1435
    %1471 = vmatpush.msra.mxu0 %v1434
    %1472 = vmatmul.f32.gmra.mxu0 %v1451
    %v1473 = vpop.f32.mrf.mxu0
    %v1474 = vadd.f32 0.0, %v1473
    %1475 = vmatmul.f32.gmra.mxu0 %v1454
    %v1476 = vpop.f32.mrf.mxu0
    %v1477 = vadd.f32 0.0, %v1476
    %1478 = vdwg.mxu0
    %1479 = vmatpush.msra.mxu0 0.0
    %1480 = vmatpush.msra.mxu0 0.0
    %1481 = vmatpush.msra.mxu0 0.0
    %1482 = vmatpush.msra.mxu0 0.0
    %1483 = vmatpush.msra.mxu0 0.0
    %1484 = vmatpush.msra.mxu0 0.0
    %1485 = vmatpush.msra.mxu0 0.0
    %1486 = vmatpush.msra.mxu0 0.0
    %1487 = vmatpush.msra.mxu0 0.0
    %1488 = vmatpush.msra.mxu0 0.0
    %1489 = vmatpush.msra.mxu0 0.0
    %1490 = vmatpush.msra.mxu0 0.0
    %1491 = vmatpush.msra.mxu0 %v1441
    %1492 = vmatpush.msra.mxu0 %v1440
    %1493 = vmatpush.msra.mxu0 %v1439
    %1494 = vmatpush.msra.mxu0 %v1438
    %1495 = vmatmul.f32.gmra.mxu0 %v1451
    %v1496 = vpop.f32.mrf.mxu0
    %v1497 = vadd.f32 0.0, %v1496
    %1498 = vmatmul.f32.gmra.mxu0 %v1454
    %v1499 = vpop.f32.mrf.mxu0
    %v1500 = vadd.f32 0.0, %v1499
    %1501 = vdwg.mxu0
    %1502 = vmatpush.msra.mxu0 0.0
    %1503 = vmatpush.msra.mxu0 0.0
    %1504 = vmatpush.msra.mxu0 0.0
    %1505 = vmatpush.msra.mxu0 0.0
    %1506 = vmatpush.msra.mxu0 0.0
    %1507 = vmatpush.msra.mxu0 0.0
    %1508 = vmatpush.msra.mxu0 0.0
    %1509 = vmatpush.msra.mxu0 0.0
    %1510 = vmatpush.msra.mxu0 0.0
    %1511 = vmatpush.msra.mxu0 0.0
    %1512 = vmatpush.msra.mxu0 0.0
    %1513 = vmatpush.msra.mxu0 0.0
    %1514 = vmatpush.msra.mxu0 %v1445
    %1515 = vmatpush.msra.mxu0 %v1444
    %1516 = vmatpush.msra.mxu0 %v1443
    %1517 = vmatpush.msra.mxu0 %v1442
    %1518 = vmatmul.f32.gmra.mxu0 %v1451
    %v1519 = vpop.f32.mrf.mxu0
    %v1520 = vadd.f32 0.0, %v1519
    %1521 = vmatmul.f32.gmra.mxu0 %v1454
    %v1522 = vpop.f32.mrf.mxu0
    %v1523 = vadd.f32 0.0, %v1522
    %1524 = vdwg.mxu0
    %1525 = vmatpush.msra.mxu0 0.0
    %1526 = vmatpush.msra.mxu0 0.0
    %1527 = vmatpush.msra.mxu0 0.0
    %1528 = vmatpush.msra.mxu0 0.0
    %1529 = vmatpush.msra.mxu0 0.0
    %1530 = vmatpush.msra.mxu0 0.0
    %1531 = vmatpush.msra.mxu0 0.0
    %1532 = vmatpush.msra.mxu0 0.0
    %1533 = vmatpush.msra.mxu0 0.0
    %1534 = vmatpush.msra.mxu0 0.0
    %1535 = vmatpush.msra.mxu0 0.0
    %1536 = vmatpush.msra.mxu0 0.0
    %1537 = vmatpush.msra.mxu0 %v1449
    %1538 = vmatpush.msra.mxu0 %v1448
    %1539 = vmatpush.msra.mxu0 %v1447
    %1540 = vmatpush.msra.mxu0 %v1446
    %1541 = vmatmul.f32.gmra.mxu0 %v1451
    %v1542 = vpop.f32.mrf.mxu0
    %v1543 = vadd.f32 0.0, %v1542
    %1544 = vmatmul.f32.gmra.mxu0 %v1454
    %v1545 = vpop.f32.mrf.mxu0
    %v1546 = vadd.f32 0.0, %v1545
    %1547 = vdwg.mxu0
    %s1548 = scalar_lea.vmem %s3, 512
    %v1549 = vld [vmem:[%s1548] sm:$0xff]
    %v1550 = vld [vmem:[%s1548 + $0x8] sm:$0xff]
    %v1551 = vld [vmem:[%s1548 + $0x10] sm:$0xff]
    %v1552 = vld [vmem:[%s1548 + $0x18] sm:$0xff]
    %v1553 = vld [vmem:[%s1548 + $0x20] sm:$0xff]
    %v1554 = vld [vmem:[%s1548 + $0x28] sm:$0xff]
    %v1555 = vld [vmem:[%s1548 + $0x30] sm:$0xff]
    %v1556 = vld [vmem:[%s1548 + $0x38] sm:$0xff]
    %v1557 = vld [vmem:[%s1548 + $0x40] sm:$0xff]
    %v1558 = vld [vmem:[%s1548 + $0x48] sm:$0xff]
    %v1559 = vld [vmem:[%s1548 + $0x50] sm:$0xff]
    %v1560 = vld [vmem:[%s1548 + $0x58] sm:$0xff]
    %v1561 = vld [vmem:[%s1548 + $0x60] sm:$0xff]
    %v1562 = vld [vmem:[%s1548 + $0x68] sm:$0xff]
    %v1563 = vld [vmem:[%s1548 + $0x70] sm:$0xff]
    %v1564 = vld [vmem:[%s1548 + $0x78] sm:$0xff]
    %1565 = vmatpush.msra.mxu0 0.0
    %1566 = vmatpush.msra.mxu0 0.0
    %1567 = vmatpush.msra.mxu0 0.0
    %1568 = vmatpush.msra.mxu0 0.0
    %1569 = vmatpush.msra.mxu0 0.0
    %1570 = vmatpush.msra.mxu0 0.0
    %1571 = vmatpush.msra.mxu0 0.0
    %1572 = vmatpush.msra.mxu0 0.0
    %1573 = vmatpush.msra.mxu0 0.0
    %1574 = vmatpush.msra.mxu0 0.0
    %1575 = vmatpush.msra.mxu0 0.0
    %1576 = vmatpush.msra.mxu0 0.0
    %1577 = vmatpush.msra.mxu0 %v1552
    %1578 = vmatpush.msra.mxu0 %v1551
    %1579 = vmatpush.msra.mxu0 %v1550
    %1580 = vmatpush.msra.mxu0 %v1549
    %1581 = vmatmul.f32.gmra.mxu0 %v1451
    %v1582 = vpop.f32.mrf.mxu0
    %v1583 = vadd.f32 0.0, %v1582
    %1584 = vmatmul.f32.gmra.mxu0 %v1454
    %v1585 = vpop.f32.mrf.mxu0
    %v1586 = vadd.f32 0.0, %v1585
    %1587 = vdwg.mxu0
    %1588 = vmatpush.msra.mxu0 0.0
    %1589 = vmatpush.msra.mxu0 0.0
    %1590 = vmatpush.msra.mxu0 0.0
    %1591 = vmatpush.msra.mxu0 0.0
    %1592 = vmatpush.msra.mxu0 0.0
    %1593 = vmatpush.msra.mxu0 0.0
    %1594 = vmatpush.msra.mxu0 0.0
    %1595 = vmatpush.msra.mxu0 0.0
    %1596 = vmatpush.msra.mxu0 0.0
    %1597 = vmatpush.msra.mxu0 0.0
    %1598 = vmatpush.msra.mxu0 0.0
    %1599 = vmatpush.msra.mxu0 0.0
    %1600 = vmatpush.msra.mxu0 %v1556
    %1601 = vmatpush.msra.mxu0 %v1555
    %1602 = vmatpush.msra.mxu0 %v1554
    %1603 = vmatpush.msra.mxu0 %v1553
    %1604 = vmatmul.f32.gmra.mxu0 %v1451
    %v1605 = vpop.f32.mrf.mxu0
    %v1606 = vadd.f32 0.0, %v1605
    %1607 = vmatmul.f32.gmra.mxu0 %v1454
    %v1608 = vpop.f32.mrf.mxu0
    %v1609 = vadd.f32 0.0, %v1608
    %1610 = vdwg.mxu0
    %1611 = vmatpush.msra.mxu0 0.0
    %1612 = vmatpush.msra.mxu0 0.0
    %1613 = vmatpush.msra.mxu0 0.0
    %1614 = vmatpush.msra.mxu0 0.0
    %1615 = vmatpush.msra.mxu0 0.0
    %1616 = vmatpush.msra.mxu0 0.0
    %1617 = vmatpush.msra.mxu0 0.0
    %1618 = vmatpush.msra.mxu0 0.0
    %1619 = vmatpush.msra.mxu0 0.0
    %1620 = vmatpush.msra.mxu0 0.0
    %1621 = vmatpush.msra.mxu0 0.0
    %1622 = vmatpush.msra.mxu0 0.0
    %1623 = vmatpush.msra.mxu0 %v1560
    %1624 = vmatpush.msra.mxu0 %v1559
    %1625 = vmatpush.msra.mxu0 %v1558
    %1626 = vmatpush.msra.mxu0 %v1557
    %1627 = vmatmul.f32.gmra.mxu0 %v1451
    %v1628 = vpop.f32.mrf.mxu0
    %v1629 = vadd.f32 0.0, %v1628
    %1630 = vmatmul.f32.gmra.mxu0 %v1454
    %v1631 = vpop.f32.mrf.mxu0
    %v1632 = vadd.f32 0.0, %v1631
    %1633 = vdwg.mxu0
    %1634 = vmatpush.msra.mxu0 0.0
    %1635 = vmatpush.msra.mxu0 0.0
    %1636 = vmatpush.msra.mxu0 0.0
    %1637 = vmatpush.msra.mxu0 0.0
    %1638 = vmatpush.msra.mxu0 0.0
    %1639 = vmatpush.msra.mxu0 0.0
    %1640 = vmatpush.msra.mxu0 0.0
    %1641 = vmatpush.msra.mxu0 0.0
    %1642 = vmatpush.msra.mxu0 0.0
    %1643 = vmatpush.msra.mxu0 0.0
    %1644 = vmatpush.msra.mxu0 0.0
    %1645 = vmatpush.msra.mxu0 0.0
    %1646 = vmatpush.msra.mxu0 %v1564
    %1647 = vmatpush.msra.mxu0 %v1563
    %1648 = vmatpush.msra.mxu0 %v1562
    %1649 = vmatpush.msra.mxu0 %v1561
    %1650 = vmatmul.f32.gmra.mxu0 %v1451
    %v1651 = vpop.f32.mrf.mxu0
    %v1652 = vadd.f32 0.0, %v1651
    %1653 = vmatmul.f32.gmra.mxu0 %v1454
    %v1654 = vpop.f32.mrf.mxu0
    %v1655 = vadd.f32 0.0, %v1654
    %1656 = vdwg.mxu0
    %s1657 = scalar_lea.vmem %s3, 640
    %v1658 = vld [vmem:[%s1657] sm:$0xff]
    %v1659 = vld [vmem:[%s1657 + $0x8] sm:$0xff]
    %v1660 = vld [vmem:[%s1657 + $0x10] sm:$0xff]
    %v1661 = vld [vmem:[%s1657 + $0x18] sm:$0xff]
    %v1662 = vld [vmem:[%s1657 + $0x20] sm:$0xff]
    %v1663 = vld [vmem:[%s1657 + $0x28] sm:$0xff]
    %v1664 = vld [vmem:[%s1657 + $0x30] sm:$0xff]
    %v1665 = vld [vmem:[%s1657 + $0x38] sm:$0xff]
    %v1666 = vld [vmem:[%s1657 + $0x40] sm:$0xff]
    %v1667 = vld [vmem:[%s1657 + $0x48] sm:$0xff]
    %v1668 = vld [vmem:[%s1657 + $0x50] sm:$0xff]
    %v1669 = vld [vmem:[%s1657 + $0x58] sm:$0xff]
    %v1670 = vld [vmem:[%s1657 + $0x60] sm:$0xff]
    %v1671 = vld [vmem:[%s1657 + $0x68] sm:$0xff]
    %v1672 = vld [vmem:[%s1657 + $0x70] sm:$0xff]
    %v1673 = vld [vmem:[%s1657 + $0x78] sm:$0xff]
    %1674 = vmatpush.msra.mxu0 0.0
    %1675 = vmatpush.msra.mxu0 0.0
    %1676 = vmatpush.msra.mxu0 0.0
    %1677 = vmatpush.msra.mxu0 0.0
    %1678 = vmatpush.msra.mxu0 0.0
    %1679 = vmatpush.msra.mxu0 0.0
    %1680 = vmatpush.msra.mxu0 0.0
    %1681 = vmatpush.msra.mxu0 0.0
    %1682 = vmatpush.msra.mxu0 0.0
    %1683 = vmatpush.msra.mxu0 0.0
    %1684 = vmatpush.msra.mxu0 0.0
    %1685 = vmatpush.msra.mxu0 0.0
    %1686 = vmatpush.msra.mxu0 %v1661
    %1687 = vmatpush.msra.mxu0 %v1660
    %1688 = vmatpush.msra.mxu0 %v1659
    %1689 = vmatpush.msra.mxu0 %v1658
    %1690 = vmatmul.f32.gmra.mxu0 %v1451
    %v1691 = vpop.f32.mrf.mxu0
    %v1692 = vadd.f32 0.0, %v1691
    %1693 = vmatmul.f32.gmra.mxu0 %v1454
    %v1694 = vpop.f32.mrf.mxu0
    %v1695 = vadd.f32 0.0, %v1694
    %1696 = vdwg.mxu0
    %1697 = vmatpush.msra.mxu0 0.0
    %1698 = vmatpush.msra.mxu0 0.0
    %1699 = vmatpush.msra.mxu0 0.0
    %1700 = vmatpush.msra.mxu0 0.0
    %1701 = vmatpush.msra.mxu0 0.0
    %1702 = vmatpush.msra.mxu0 0.0
    %1703 = vmatpush.msra.mxu0 0.0
    %1704 = vmatpush.msra.mxu0 0.0
    %1705 = vmatpush.msra.mxu0 0.0
    %1706 = vmatpush.msra.mxu0 0.0
    %1707 = vmatpush.msra.mxu0 0.0
    %1708 = vmatpush.msra.mxu0 0.0
    %1709 = vmatpush.msra.mxu0 %v1665
    %1710 = vmatpush.msra.mxu0 %v1664
    %1711 = vmatpush.msra.mxu0 %v1663
    %1712 = vmatpush.msra.mxu0 %v1662
    %1713 = vmatmul.f32.gmra.mxu0 %v1451
    %v1714 = vpop.f32.mrf.mxu0
    %v1715 = vadd.f32 0.0, %v1714
    %1716 = vmatmul.f32.gmra.mxu0 %v1454
    %v1717 = vpop.f32.mrf.mxu0
    %v1718 = vadd.f32 0.0, %v1717
    %1719 = vdwg.mxu0
    %1720 = vmatpush.msra.mxu0 0.0
    %1721 = vmatpush.msra.mxu0 0.0
    %1722 = vmatpush.msra.mxu0 0.0
    %1723 = vmatpush.msra.mxu0 0.0
    %1724 = vmatpush.msra.mxu0 0.0
    %1725 = vmatpush.msra.mxu0 0.0
    %1726 = vmatpush.msra.mxu0 0.0
    %1727 = vmatpush.msra.mxu0 0.0
    %1728 = vmatpush.msra.mxu0 0.0
    %1729 = vmatpush.msra.mxu0 0.0
    %1730 = vmatpush.msra.mxu0 0.0
    %1731 = vmatpush.msra.mxu0 0.0
    %1732 = vmatpush.msra.mxu0 %v1669
    %1733 = vmatpush.msra.mxu0 %v1668
    %1734 = vmatpush.msra.mxu0 %v1667
    %1735 = vmatpush.msra.mxu0 %v1666
    %1736 = vmatmul.f32.gmra.mxu0 %v1451
    %v1737 = vpop.f32.mrf.mxu0
    %v1738 = vadd.f32 0.0, %v1737
    %1739 = vmatmul.f32.gmra.mxu0 %v1454
    %v1740 = vpop.f32.mrf.mxu0
    %v1741 = vadd.f32 0.0, %v1740
    %1742 = vdwg.mxu0
    %1743 = vmatpush.msra.mxu0 0.0
    %1744 = vmatpush.msra.mxu0 0.0
    %1745 = vmatpush.msra.mxu0 0.0
    %1746 = vmatpush.msra.mxu0 0.0
    %1747 = vmatpush.msra.mxu0 0.0
    %1748 = vmatpush.msra.mxu0 0.0
    %1749 = vmatpush.msra.mxu0 0.0
    %1750 = vmatpush.msra.mxu0 0.0
    %1751 = vmatpush.msra.mxu0 0.0
    %1752 = vmatpush.msra.mxu0 0.0
    %1753 = vmatpush.msra.mxu0 0.0
    %1754 = vmatpush.msra.mxu0 0.0
    %1755 = vmatpush.msra.mxu0 %v1673
    %1756 = vmatpush.msra.mxu0 %v1672
    %1757 = vmatpush.msra.mxu0 %v1671
    %1758 = vmatpush.msra.mxu0 %v1670
    %1759 = vmatmul.f32.gmra.mxu0 %v1451
    %v1760 = vpop.f32.mrf.mxu0
    %v1761 = vadd.f32 0.0, %v1760
    %1762 = vmatmul.f32.gmra.mxu0 %v1454
    %v1763 = vpop.f32.mrf.mxu0
    %v1764 = vadd.f32 0.0, %v1763
    %1765 = vdwg.mxu0
    %v1767 = vsel %vm531, %v1474, 0
    %v1770 = vsel %vm531, %v1583, 0
    %1772 = vmatpush.xpose.msra.mxu0 0.0
    %1773 = vmatpush.xpose.msra.mxu0 0.0
    %1774 = vmatpush.xpose.msra.mxu0 0.0
    %1775 = vmatpush.xpose.msra.mxu0 0.0
    %1776 = vmatpush.xpose.msra.mxu0 0.0
    %1777 = vmatpush.xpose.msra.mxu0 0.0
    %1778 = vmatpush.xpose.msra.mxu0 0.0
    %1779 = vmatpush.xpose.msra.mxu0 0.0
    %1780 = vmatpush.xpose.msra.mxu0 0.0
    %1781 = vmatpush.xpose.msra.mxu0 0.0
    %1782 = vmatpush.xpose.msra.mxu0 0.0
    %1783 = vmatpush.xpose.msra.mxu0 0.0
    %1784 = vmatpush.xpose.msra.mxu0 0.0
    %1785 = vmatpush.xpose.msra.mxu0 0.0
    %1786 = vmatpush.xpose.msra.mxu0 0.0
    %1787 = vmatpush.xpose.msra.mxu0 %v1770
    %1788 = vmatmul.f32.gmra.mxu0 %v1767
    %v1789 = vpop.f32.mrf.mxu0
    %v1790 = vadd.f32 0.0, %v1789
    %1791 = vdwg.mxu0
    %v1793 = vsel %vm531, %v1477, 0
    %v1796 = vsel %vm531, %v1586, 0
    %1798 = vmatpush.xpose.msra.mxu0 0.0
    %1799 = vmatpush.xpose.msra.mxu0 0.0
    %1800 = vmatpush.xpose.msra.mxu0 0.0
    %1801 = vmatpush.xpose.msra.mxu0 0.0
    %1802 = vmatpush.xpose.msra.mxu0 0.0
    %1803 = vmatpush.xpose.msra.mxu0 0.0
    %1804 = vmatpush.xpose.msra.mxu0 0.0
    %1805 = vmatpush.xpose.msra.mxu0 0.0
    %1806 = vmatpush.xpose.msra.mxu0 0.0
    %1807 = vmatpush.xpose.msra.mxu0 0.0
    %1808 = vmatpush.xpose.msra.mxu0 0.0
    %1809 = vmatpush.xpose.msra.mxu0 0.0
    %1810 = vmatpush.xpose.msra.mxu0 0.0
    %1811 = vmatpush.xpose.msra.mxu0 0.0
    %1812 = vmatpush.xpose.msra.mxu0 0.0
    %1813 = vmatpush.xpose.msra.mxu0 %v1796
    %1814 = vmatmul.f32.gmra.mxu0 %v1793
    %v1815 = vpop.f32.mrf.mxu0
    %v1816 = vadd.f32 0.0, %v1815
    %1817 = vdwg.mxu0
    %v1819 = vsel %vm531, %v1497, 0
    %v1822 = vsel %vm531, %v1606, 0
    %1824 = vmatpush.xpose.msra.mxu0 0.0
    %1825 = vmatpush.xpose.msra.mxu0 0.0
    %1826 = vmatpush.xpose.msra.mxu0 0.0
    %1827 = vmatpush.xpose.msra.mxu0 0.0
    %1828 = vmatpush.xpose.msra.mxu0 0.0
    %1829 = vmatpush.xpose.msra.mxu0 0.0
    %1830 = vmatpush.xpose.msra.mxu0 0.0
    %1831 = vmatpush.xpose.msra.mxu0 0.0
    %1832 = vmatpush.xpose.msra.mxu0 0.0
    %1833 = vmatpush.xpose.msra.mxu0 0.0
    %1834 = vmatpush.xpose.msra.mxu0 0.0
    %1835 = vmatpush.xpose.msra.mxu0 0.0
    %1836 = vmatpush.xpose.msra.mxu0 0.0
    %1837 = vmatpush.xpose.msra.mxu0 0.0
    %1838 = vmatpush.xpose.msra.mxu0 0.0
    %1839 = vmatpush.xpose.msra.mxu0 %v1822
    %1840 = vmatmul.f32.gmra.mxu0 %v1819
    %v1841 = vpop.f32.mrf.mxu0
    %v1842 = vadd.f32 0.0, %v1841
    %1843 = vdwg.mxu0
    %v1845 = vsel %vm531, %v1500, 0
    %v1848 = vsel %vm531, %v1609, 0
    %1850 = vmatpush.xpose.msra.mxu0 0.0
    %1851 = vmatpush.xpose.msra.mxu0 0.0
    %1852 = vmatpush.xpose.msra.mxu0 0.0
    %1853 = vmatpush.xpose.msra.mxu0 0.0
    %1854 = vmatpush.xpose.msra.mxu0 0.0
    %1855 = vmatpush.xpose.msra.mxu0 0.0
    %1856 = vmatpush.xpose.msra.mxu0 0.0
    %1857 = vmatpush.xpose.msra.mxu0 0.0
    %1858 = vmatpush.xpose.msra.mxu0 0.0
    %1859 = vmatpush.xpose.msra.mxu0 0.0
    %1860 = vmatpush.xpose.msra.mxu0 0.0
    %1861 = vmatpush.xpose.msra.mxu0 0.0
    %1862 = vmatpush.xpose.msra.mxu0 0.0
    %1863 = vmatpush.xpose.msra.mxu0 0.0
    %1864 = vmatpush.xpose.msra.mxu0 0.0
    %1865 = vmatpush.xpose.msra.mxu0 %v1848
    %1866 = vmatmul.f32.gmra.mxu0 %v1845
    %v1867 = vpop.f32.mrf.mxu0
    %v1868 = vadd.f32 0.0, %v1867
    %1869 = vdwg.mxu0
    %v1871 = vsel %vm531, %v1520, 0
    %v1874 = vsel %vm531, %v1629, 0
    %1876 = vmatpush.xpose.msra.mxu0 0.0
    %1877 = vmatpush.xpose.msra.mxu0 0.0
    %1878 = vmatpush.xpose.msra.mxu0 0.0
    %1879 = vmatpush.xpose.msra.mxu0 0.0
    %1880 = vmatpush.xpose.msra.mxu0 0.0
    %1881 = vmatpush.xpose.msra.mxu0 0.0
    %1882 = vmatpush.xpose.msra.mxu0 0.0
    %1883 = vmatpush.xpose.msra.mxu0 0.0
    %1884 = vmatpush.xpose.msra.mxu0 0.0
    %1885 = vmatpush.xpose.msra.mxu0 0.0
    %1886 = vmatpush.xpose.msra.mxu0 0.0
    %1887 = vmatpush.xpose.msra.mxu0 0.0
    %1888 = vmatpush.xpose.msra.mxu0 0.0
    %1889 = vmatpush.xpose.msra.mxu0 0.0
    %1890 = vmatpush.xpose.msra.mxu0 0.0
    %1891 = vmatpush.xpose.msra.mxu0 %v1874
    %1892 = vmatmul.f32.gmra.mxu0 %v1871
    %v1893 = vpop.f32.mrf.mxu0
    %v1894 = vadd.f32 0.0, %v1893
    %1895 = vdwg.mxu0
    %v1897 = vsel %vm531, %v1523, 0
    %v1900 = vsel %vm531, %v1632, 0
    %1902 = vmatpush.xpose.msra.mxu0 0.0
    %1903 = vmatpush.xpose.msra.mxu0 0.0
    %1904 = vmatpush.xpose.msra.mxu0 0.0
    %1905 = vmatpush.xpose.msra.mxu0 0.0
    %1906 = vmatpush.xpose.msra.mxu0 0.0
    %1907 = vmatpush.xpose.msra.mxu0 0.0
    %1908 = vmatpush.xpose.msra.mxu0 0.0
    %1909 = vmatpush.xpose.msra.mxu0 0.0
    %1910 = vmatpush.xpose.msra.mxu0 0.0
    %1911 = vmatpush.xpose.msra.mxu0 0.0
    %1912 = vmatpush.xpose.msra.mxu0 0.0
    %1913 = vmatpush.xpose.msra.mxu0 0.0
    %1914 = vmatpush.xpose.msra.mxu0 0.0
    %1915 = vmatpush.xpose.msra.mxu0 0.0
    %1916 = vmatpush.xpose.msra.mxu0 0.0
    %1917 = vmatpush.xpose.msra.mxu0 %v1900
    %1918 = vmatmul.f32.gmra.mxu0 %v1897
    %v1919 = vpop.f32.mrf.mxu0
    %v1920 = vadd.f32 0.0, %v1919
    %1921 = vdwg.mxu0
    %v1923 = vsel %vm531, %v1543, 0
    %v1926 = vsel %vm531, %v1652, 0
    %1928 = vmatpush.xpose.msra.mxu0 0.0
    %1929 = vmatpush.xpose.msra.mxu0 0.0
    %1930 = vmatpush.xpose.msra.mxu0 0.0
    %1931 = vmatpush.xpose.msra.mxu0 0.0
    %1932 = vmatpush.xpose.msra.mxu0 0.0
    %1933 = vmatpush.xpose.msra.mxu0 0.0
    %1934 = vmatpush.xpose.msra.mxu0 0.0
    %1935 = vmatpush.xpose.msra.mxu0 0.0
    %1936 = vmatpush.xpose.msra.mxu0 0.0
    %1937 = vmatpush.xpose.msra.mxu0 0.0
    %1938 = vmatpush.xpose.msra.mxu0 0.0
    %1939 = vmatpush.xpose.msra.mxu0 0.0
    %1940 = vmatpush.xpose.msra.mxu0 0.0
    %1941 = vmatpush.xpose.msra.mxu0 0.0
    %1942 = vmatpush.xpose.msra.mxu0 0.0
    %1943 = vmatpush.xpose.msra.mxu0 %v1926
    %1944 = vmatmul.f32.gmra.mxu0 %v1923
    %v1945 = vpop.f32.mrf.mxu0
    %v1946 = vadd.f32 0.0, %v1945
    %1947 = vdwg.mxu0
    %v1949 = vsel %vm531, %v1546, 0
    %v1952 = vsel %vm531, %v1655, 0
    %1954 = vmatpush.xpose.msra.mxu0 0.0
    %1955 = vmatpush.xpose.msra.mxu0 0.0
    %1956 = vmatpush.xpose.msra.mxu0 0.0
    %1957 = vmatpush.xpose.msra.mxu0 0.0
    %1958 = vmatpush.xpose.msra.mxu0 0.0
    %1959 = vmatpush.xpose.msra.mxu0 0.0
    %1960 = vmatpush.xpose.msra.mxu0 0.0
    %1961 = vmatpush.xpose.msra.mxu0 0.0
    %1962 = vmatpush.xpose.msra.mxu0 0.0
    %1963 = vmatpush.xpose.msra.mxu0 0.0
    %1964 = vmatpush.xpose.msra.mxu0 0.0
    %1965 = vmatpush.xpose.msra.mxu0 0.0
    %1966 = vmatpush.xpose.msra.mxu0 0.0
    %1967 = vmatpush.xpose.msra.mxu0 0.0
    %1968 = vmatpush.xpose.msra.mxu0 0.0
    %1969 = vmatpush.xpose.msra.mxu0 %v1952
    %1970 = vmatmul.f32.gmra.mxu0 %v1949
    %v1971 = vpop.f32.mrf.mxu0
    %v1972 = vadd.f32 0.0, %v1971
    %1973 = vdwg.mxu0
    %v1974 = vmul.f32 %v1790, 0.35355338
    %v1975 = vmul.f32 %v1816, 0.35355338
    %v1976 = vmul.f32 %v1842, 0.35355338
    %v1977 = vmul.f32 %v1868, 0.35355338
    %v1978 = vmul.f32 %v1894, 0.35355338
    %v1979 = vmul.f32 %v1920, 0.35355338
    %v1980 = vmul.f32 %v1946, 0.35355338
    %v1981 = vmul.f32 %v1972, 0.35355338
    %v1982 = vsel %vm749, %v1974, -1e+30
    %v1983 = vsel %vm749, %v1975, -1e+30
    %v1984 = vsel %vm749, %v1976, -1e+30
    %v1985 = vsel %vm749, %v1977, -1e+30
    %v1986 = vsel %vm749, %v1978, -1e+30
    %v1987 = vsel %vm749, %v1979, -1e+30
    %v1988 = vsel %vm749, %v1980, -1e+30
    %v1989 = vsel %vm749, %v1981, -1e+30
    %v1990 = vsel %vm531, %v1982, -inf
    %1991 = vmax.xlane.f32.xlu0 %v1990
    %v1992 = vpop.xlane.xlu0 %1991
    %v1993 = vsel %vm531, %v1983, -inf
    %1994 = vmax.xlane.f32.xlu0 %v1993
    %v1995 = vpop.xlane.xlu0 %1994
    %v1996 = vsel %vm531, %v1984, -inf
    %1997 = vmax.xlane.f32.xlu0 %v1996
    %v1998 = vpop.xlane.xlu0 %1997
    %v1999 = vsel %vm531, %v1985, -inf
    %2000 = vmax.xlane.f32.xlu0 %v1999
    %v2001 = vpop.xlane.xlu0 %2000
    %v2002 = vsel %vm531, %v1986, -inf
    %2003 = vmax.xlane.f32.xlu0 %v2002
    %v2004 = vpop.xlane.xlu0 %2003
    %v2005 = vsel %vm531, %v1987, -inf
    %2006 = vmax.xlane.f32.xlu0 %v2005
    %v2007 = vpop.xlane.xlu0 %2006
    %v2008 = vsel %vm531, %v1988, -inf
    %2009 = vmax.xlane.f32.xlu0 %v2008
    %v2010 = vpop.xlane.xlu0 %2009
    %v2011 = vsel %vm531, %v1989, -inf
    %2012 = vmax.xlane.f32.xlu0 %v2011
    %v2013 = vpop.xlane.xlu0 %2012
    %v2014 = vsub.f32 %v1982, %v1992
    %v2015 = vsub.f32 %v1983, %v1995
    %v2016 = vsub.f32 %v1984, %v1998
    %v2017 = vsub.f32 %v1985, %v2001
    %v2018 = vsub.f32 %v1986, %v2004
    %v2019 = vsub.f32 %v1987, %v2007
    %v2020 = vsub.f32 %v1988, %v2010
    %v2021 = vsub.f32 %v1989, %v2013
    %v2022 = vmul.f32 %v2014, 1.442695
    %v2023 = vpow.pop %v2022
    %v2024 = vmul.f32 %v2015, 1.442695
    %v2025 = vpow.pop %v2024
    %v2026 = vmul.f32 %v2016, 1.442695
    %v2027 = vpow.pop %v2026
    %v2028 = vmul.f32 %v2017, 1.442695
    %v2029 = vpow.pop %v2028
    %v2030 = vmul.f32 %v2018, 1.442695
    %v2031 = vpow.pop %v2030
    %v2032 = vmul.f32 %v2019, 1.442695
    %v2033 = vpow.pop %v2032
    %v2034 = vmul.f32 %v2020, 1.442695
    %v2035 = vpow.pop %v2034
    %v2036 = vmul.f32 %v2021, 1.442695
    %v2037 = vpow.pop %v2036
    %v2038 = vsel %vm531, %v2023, 0.0
    %2039 = vadd.xlane.f32.xlu0 %v2038
    %v2040 = vpop.xlane.xlu0 %2039
    %v2041 = vsel %vm531, %v2025, 0.0
    %2042 = vadd.xlane.f32.xlu0 %v2041
    %v2043 = vpop.xlane.xlu0 %2042
    %v2044 = vsel %vm531, %v2027, 0.0
    %2045 = vadd.xlane.f32.xlu0 %v2044
    %v2046 = vpop.xlane.xlu0 %2045
    %v2047 = vsel %vm531, %v2029, 0.0
    %2048 = vadd.xlane.f32.xlu0 %v2047
    %v2049 = vpop.xlane.xlu0 %2048
    %v2050 = vsel %vm531, %v2031, 0.0
    %2051 = vadd.xlane.f32.xlu0 %v2050
    %v2052 = vpop.xlane.xlu0 %2051
    %v2053 = vsel %vm531, %v2033, 0.0
    %2054 = vadd.xlane.f32.xlu0 %v2053
    %v2055 = vpop.xlane.xlu0 %2054
    %v2056 = vsel %vm531, %v2035, 0.0
    %2057 = vadd.xlane.f32.xlu0 %v2056
    %v2058 = vpop.xlane.xlu0 %2057
    %v2059 = vsel %vm531, %v2037, 0.0
    %2060 = vadd.xlane.f32.xlu0 %v2059
    %v2061 = vpop.xlane.xlu0 %2060
    %v2062 = vrcp.pop %v2040
    %v2063 = vrcp.pop %v2043
    %v2064 = vrcp.pop %v2046
    %v2065 = vrcp.pop %v2049
    %v2066 = vrcp.pop %v2052
    %v2067 = vrcp.pop %v2055
    %v2068 = vrcp.pop %v2058
    %v2069 = vrcp.pop %v2061
    %v2070 = vmul.f32 %v2023, %v2062
    %v2071 = vmul.f32 %v2025, %v2063
    %v2072 = vmul.f32 %v2027, %v2064
    %v2073 = vmul.f32 %v2029, %v2065
    %v2074 = vmul.f32 %v2031, %v2066
    %v2075 = vmul.f32 %v2033, %v2067
    %v2076 = vmul.f32 %v2035, %v2068
    %v2077 = vmul.f32 %v2037, %v2069
    %v2079 = vsel %vm531, %v2070, 0
    %2081 = vmatpush.msra.mxu0 0.0
    %2082 = vmatpush.msra.mxu0 0.0
    %2083 = vmatpush.msra.mxu0 0.0
    %2084 = vmatpush.msra.mxu0 0.0
    %2085 = vmatpush.msra.mxu0 0.0
    %2086 = vmatpush.msra.mxu0 0.0
    %2087 = vmatpush.msra.mxu0 0.0
    %2088 = vmatpush.msra.mxu0 0.0
    %2089 = vmatpush.msra.mxu0 0.0
    %2090 = vmatpush.msra.mxu0 0.0
    %2091 = vmatpush.msra.mxu0 0.0
    %2092 = vmatpush.msra.mxu0 0.0
    %2093 = vmatpush.msra.mxu0 0.0
    %2094 = vmatpush.msra.mxu0 0.0
    %2095 = vmatpush.msra.mxu0 0.0
    %2096 = vmatpush.msra.mxu0 %v1692
    %2097 = vmatmul.f32.gmra.mxu0 %v2079
    %v2098 = vpop.f32.mrf.mxu0
    %v2099 = vadd.f32 0.0, %v2098
    %2100 = vdwg.mxu0
    %v2102 = vsel %vm531, %v2071, 0
    %2104 = vmatpush.msra.mxu0 0.0
    %2105 = vmatpush.msra.mxu0 0.0
    %2106 = vmatpush.msra.mxu0 0.0
    %2107 = vmatpush.msra.mxu0 0.0
    %2108 = vmatpush.msra.mxu0 0.0
    %2109 = vmatpush.msra.mxu0 0.0
    %2110 = vmatpush.msra.mxu0 0.0
    %2111 = vmatpush.msra.mxu0 0.0
    %2112 = vmatpush.msra.mxu0 0.0
    %2113 = vmatpush.msra.mxu0 0.0
    %2114 = vmatpush.msra.mxu0 0.0
    %2115 = vmatpush.msra.mxu0 0.0
    %2116 = vmatpush.msra.mxu0 0.0
    %2117 = vmatpush.msra.mxu0 0.0
    %2118 = vmatpush.msra.mxu0 0.0
    %2119 = vmatpush.msra.mxu0 %v1695
    %2120 = vmatmul.f32.gmra.mxu0 %v2102
    %v2121 = vpop.f32.mrf.mxu0
    %v2122 = vadd.f32 0.0, %v2121
    %2123 = vdwg.mxu0
    %v2125 = vsel %vm531, %v2072, 0
    %2127 = vmatpush.msra.mxu0 0.0
    %2128 = vmatpush.msra.mxu0 0.0
    %2129 = vmatpush.msra.mxu0 0.0
    %2130 = vmatpush.msra.mxu0 0.0
    %2131 = vmatpush.msra.mxu0 0.0
    %2132 = vmatpush.msra.mxu0 0.0
    %2133 = vmatpush.msra.mxu0 0.0
    %2134 = vmatpush.msra.mxu0 0.0
    %2135 = vmatpush.msra.mxu0 0.0
    %2136 = vmatpush.msra.mxu0 0.0
    %2137 = vmatpush.msra.mxu0 0.0
    %2138 = vmatpush.msra.mxu0 0.0
    %2139 = vmatpush.msra.mxu0 0.0
    %2140 = vmatpush.msra.mxu0 0.0
    %2141 = vmatpush.msra.mxu0 0.0
    %2142 = vmatpush.msra.mxu0 %v1715
    %2143 = vmatmul.f32.gmra.mxu0 %v2125
    %v2144 = vpop.f32.mrf.mxu0
    %v2145 = vadd.f32 0.0, %v2144
    %2146 = vdwg.mxu0
    %v2148 = vsel %vm531, %v2073, 0
    %2150 = vmatpush.msra.mxu0 0.0
    %2151 = vmatpush.msra.mxu0 0.0
    %2152 = vmatpush.msra.mxu0 0.0
    %2153 = vmatpush.msra.mxu0 0.0
    %2154 = vmatpush.msra.mxu0 0.0
    %2155 = vmatpush.msra.mxu0 0.0
    %2156 = vmatpush.msra.mxu0 0.0
    %2157 = vmatpush.msra.mxu0 0.0
    %2158 = vmatpush.msra.mxu0 0.0
    %2159 = vmatpush.msra.mxu0 0.0
    %2160 = vmatpush.msra.mxu0 0.0
    %2161 = vmatpush.msra.mxu0 0.0
    %2162 = vmatpush.msra.mxu0 0.0
    %2163 = vmatpush.msra.mxu0 0.0
    %2164 = vmatpush.msra.mxu0 0.0
    %2165 = vmatpush.msra.mxu0 %v1718
    %2166 = vmatmul.f32.gmra.mxu0 %v2148
    %v2167 = vpop.f32.mrf.mxu0
    %v2168 = vadd.f32 0.0, %v2167
    %2169 = vdwg.mxu0
    %v2171 = vsel %vm531, %v2074, 0
    %2173 = vmatpush.msra.mxu0 0.0
    %2174 = vmatpush.msra.mxu0 0.0
    %2175 = vmatpush.msra.mxu0 0.0
    %2176 = vmatpush.msra.mxu0 0.0
    %2177 = vmatpush.msra.mxu0 0.0
    %2178 = vmatpush.msra.mxu0 0.0
    %2179 = vmatpush.msra.mxu0 0.0
    %2180 = vmatpush.msra.mxu0 0.0
    %2181 = vmatpush.msra.mxu0 0.0
    %2182 = vmatpush.msra.mxu0 0.0
    %2183 = vmatpush.msra.mxu0 0.0
    %2184 = vmatpush.msra.mxu0 0.0
    %2185 = vmatpush.msra.mxu0 0.0
    %2186 = vmatpush.msra.mxu0 0.0
    %2187 = vmatpush.msra.mxu0 0.0
    %2188 = vmatpush.msra.mxu0 %v1738
    %2189 = vmatmul.f32.gmra.mxu0 %v2171
    %v2190 = vpop.f32.mrf.mxu0
    %v2191 = vadd.f32 0.0, %v2190
    %2192 = vdwg.mxu0
    %v2194 = vsel %vm531, %v2075, 0
    %2196 = vmatpush.msra.mxu0 0.0
    %2197 = vmatpush.msra.mxu0 0.0
    %2198 = vmatpush.msra.mxu0 0.0
    %2199 = vmatpush.msra.mxu0 0.0
    %2200 = vmatpush.msra.mxu0 0.0
    %2201 = vmatpush.msra.mxu0 0.0
    %2202 = vmatpush.msra.mxu0 0.0
    %2203 = vmatpush.msra.mxu0 0.0
    %2204 = vmatpush.msra.mxu0 0.0
    %2205 = vmatpush.msra.mxu0 0.0
    %2206 = vmatpush.msra.mxu0 0.0
    %2207 = vmatpush.msra.mxu0 0.0
    %2208 = vmatpush.msra.mxu0 0.0
    %2209 = vmatpush.msra.mxu0 0.0
    %2210 = vmatpush.msra.mxu0 0.0
    %2211 = vmatpush.msra.mxu0 %v1741
    %2212 = vmatmul.f32.gmra.mxu0 %v2194
    %v2213 = vpop.f32.mrf.mxu0
    %v2214 = vadd.f32 0.0, %v2213
    %2215 = vdwg.mxu0
    %v2217 = vsel %vm531, %v2076, 0
    %2219 = vmatpush.msra.mxu0 0.0
    %2220 = vmatpush.msra.mxu0 0.0
    %2221 = vmatpush.msra.mxu0 0.0
    %2222 = vmatpush.msra.mxu0 0.0
    %2223 = vmatpush.msra.mxu0 0.0
    %2224 = vmatpush.msra.mxu0 0.0
    %2225 = vmatpush.msra.mxu0 0.0
    %2226 = vmatpush.msra.mxu0 0.0
    %2227 = vmatpush.msra.mxu0 0.0
    %2228 = vmatpush.msra.mxu0 0.0
    %2229 = vmatpush.msra.mxu0 0.0
    %2230 = vmatpush.msra.mxu0 0.0
    %2231 = vmatpush.msra.mxu0 0.0
    %2232 = vmatpush.msra.mxu0 0.0
    %2233 = vmatpush.msra.mxu0 0.0
    %2234 = vmatpush.msra.mxu0 %v1761
    %2235 = vmatmul.f32.gmra.mxu0 %v2217
    %v2236 = vpop.f32.mrf.mxu0
    %v2237 = vadd.f32 0.0, %v2236
    %2238 = vdwg.mxu0
    %v2240 = vsel %vm531, %v2077, 0
    %2242 = vmatpush.msra.mxu0 0.0
    %2243 = vmatpush.msra.mxu0 0.0
    %2244 = vmatpush.msra.mxu0 0.0
    %2245 = vmatpush.msra.mxu0 0.0
    %2246 = vmatpush.msra.mxu0 0.0
    %2247 = vmatpush.msra.mxu0 0.0
    %2248 = vmatpush.msra.mxu0 0.0
    %2249 = vmatpush.msra.mxu0 0.0
    %2250 = vmatpush.msra.mxu0 0.0
    %2251 = vmatpush.msra.mxu0 0.0
    %2252 = vmatpush.msra.mxu0 0.0
    %2253 = vmatpush.msra.mxu0 0.0
    %2254 = vmatpush.msra.mxu0 0.0
    %2255 = vmatpush.msra.mxu0 0.0
    %2256 = vmatpush.msra.mxu0 0.0
    %2257 = vmatpush.msra.mxu0 %v1764
    %2258 = vmatmul.f32.gmra.mxu0 %v2240
    %v2259 = vpop.f32.mrf.mxu0
    %v2260 = vadd.f32 0.0, %v2259
    %2261 = vdwg.mxu0
    %s2262 = scalar_lea.vmem %s4, 32
    %v2263 = vld [vmem:[%s2262] sm:$0xff]
    %v2264 = vld [vmem:[%s2262 + $0x8] sm:$0xff]
    %v2265 = vld [vmem:[%s2262 + $0x10] sm:$0xff]
    %v2266 = vld [vmem:[%s2262 + $0x18] sm:$0xff]
    %v2268 = vsel %vm531, %v2099, 0
    %v2271 = vsel %vm531, %v2122, 0
    %2273 = vmatpush.msra.mxu0 0.0
    %2274 = vmatpush.msra.mxu0 0.0
    %2275 = vmatpush.msra.mxu0 0.0
    %2276 = vmatpush.msra.mxu0 0.0
    %2277 = vmatpush.msra.mxu0 0.0
    %2278 = vmatpush.msra.mxu0 0.0
    %2279 = vmatpush.msra.mxu0 0.0
    %2280 = vmatpush.msra.mxu0 0.0
    %2281 = vmatpush.msra.mxu0 0.0
    %2282 = vmatpush.msra.mxu0 0.0
    %2283 = vmatpush.msra.mxu0 0.0
    %2284 = vmatpush.msra.mxu0 0.0
    %2285 = vmatpush.msra.mxu0 0.0
    %2286 = vmatpush.msra.mxu0 0.0
    %2287 = vmatpush.msra.mxu0 0.0
    %2288 = vmatpush.msra.mxu0 %v2263
    %2289 = vmatmul.f32.gmra.mxu0 %v2268
    %v2290 = vpop.f32.mrf.mxu0
    %v2291 = vadd.f32 0.0, %v2290
    %2292 = vmatmul.f32.gmra.mxu0 %v2271
    %v2293 = vpop.f32.mrf.mxu0
    %v2294 = vadd.f32 0.0, %v2293
    %2295 = vdwg.mxu0
    %v2297 = vsel %vm531, %v2145, 0
    %v2300 = vsel %vm531, %v2168, 0
    %2302 = vmatpush.msra.mxu0 0.0
    %2303 = vmatpush.msra.mxu0 0.0
    %2304 = vmatpush.msra.mxu0 0.0
    %2305 = vmatpush.msra.mxu0 0.0
    %2306 = vmatpush.msra.mxu0 0.0
    %2307 = vmatpush.msra.mxu0 0.0
    %2308 = vmatpush.msra.mxu0 0.0
    %2309 = vmatpush.msra.mxu0 0.0
    %2310 = vmatpush.msra.mxu0 0.0
    %2311 = vmatpush.msra.mxu0 0.0
    %2312 = vmatpush.msra.mxu0 0.0
    %2313 = vmatpush.msra.mxu0 0.0
    %2314 = vmatpush.msra.mxu0 0.0
    %2315 = vmatpush.msra.mxu0 0.0
    %2316 = vmatpush.msra.mxu0 0.0
    %2317 = vmatpush.msra.mxu0 %v2264
    %2318 = vmatmul.f32.gmra.mxu0 %v2297
    %v2319 = vpop.f32.mrf.mxu0
    %v2320 = vadd.f32 0.0, %v2319
    %2321 = vmatmul.f32.gmra.mxu0 %v2300
    %v2322 = vpop.f32.mrf.mxu0
    %v2323 = vadd.f32 0.0, %v2322
    %2324 = vdwg.mxu0
    %v2326 = vsel %vm531, %v2191, 0
    %v2329 = vsel %vm531, %v2214, 0
    %2331 = vmatpush.msra.mxu0 0.0
    %2332 = vmatpush.msra.mxu0 0.0
    %2333 = vmatpush.msra.mxu0 0.0
    %2334 = vmatpush.msra.mxu0 0.0
    %2335 = vmatpush.msra.mxu0 0.0
    %2336 = vmatpush.msra.mxu0 0.0
    %2337 = vmatpush.msra.mxu0 0.0
    %2338 = vmatpush.msra.mxu0 0.0
    %2339 = vmatpush.msra.mxu0 0.0
    %2340 = vmatpush.msra.mxu0 0.0
    %2341 = vmatpush.msra.mxu0 0.0
    %2342 = vmatpush.msra.mxu0 0.0
    %2343 = vmatpush.msra.mxu0 0.0
    %2344 = vmatpush.msra.mxu0 0.0
    %2345 = vmatpush.msra.mxu0 0.0
    %2346 = vmatpush.msra.mxu0 %v2265
    %2347 = vmatmul.f32.gmra.mxu0 %v2326
    %v2348 = vpop.f32.mrf.mxu0
    %v2349 = vadd.f32 0.0, %v2348
    %2350 = vmatmul.f32.gmra.mxu0 %v2329
    %v2351 = vpop.f32.mrf.mxu0
    %v2352 = vadd.f32 0.0, %v2351
    %2353 = vdwg.mxu0
    %v2355 = vsel %vm531, %v2237, 0
    %v2358 = vsel %vm531, %v2260, 0
    %2360 = vmatpush.msra.mxu0 0.0
    %2361 = vmatpush.msra.mxu0 0.0
    %2362 = vmatpush.msra.mxu0 0.0
    %2363 = vmatpush.msra.mxu0 0.0
    %2364 = vmatpush.msra.mxu0 0.0
    %2365 = vmatpush.msra.mxu0 0.0
    %2366 = vmatpush.msra.mxu0 0.0
    %2367 = vmatpush.msra.mxu0 0.0
    %2368 = vmatpush.msra.mxu0 0.0
    %2369 = vmatpush.msra.mxu0 0.0
    %2370 = vmatpush.msra.mxu0 0.0
    %2371 = vmatpush.msra.mxu0 0.0
    %2372 = vmatpush.msra.mxu0 0.0
    %2373 = vmatpush.msra.mxu0 0.0
    %2374 = vmatpush.msra.mxu0 0.0
    %2375 = vmatpush.msra.mxu0 %v2266
    %2376 = vmatmul.f32.gmra.mxu0 %v2355
    %v2377 = vpop.f32.mrf.mxu0
    %v2378 = vadd.f32 0.0, %v2377
    %2379 = vmatmul.f32.gmra.mxu0 %v2358
    %v2380 = vpop.f32.mrf.mxu0
    %v2381 = vadd.f32 0.0, %v2380
    %2382 = vdwg.mxu0
    %v2383 = vsel %vm141, %v2291, 0.0
    %v2384 = vsel %vm141, %v2320, 0.0
    %v2385 = vadd.f32 %v2383, %v2384
    %v2386 = vsel %vm141, %v2349, 0.0
    %v2387 = vadd.f32 %v2385, %v2386
    %v2388 = vsel %vm141, %v2378, 0.0
    %v2389 = vadd.f32 %v2387, %v2388
    %v2390 = vsel %vm141, %v2294, 0.0
    %v2391 = vsel %vm141, %v2323, 0.0
    %v2392 = vadd.f32 %v2390, %v2391
    %v2393 = vsel %vm141, %v2352, 0.0
    %v2394 = vadd.f32 %v2392, %v2393
    %v2395 = vsel %vm141, %v2381, 0.0
    %v2396 = vadd.f32 %v2394, %v2395
    %v2397 = vadd.f32 %v1378, %v2389
    %v2398 = vadd.f32 %v1379, %v2396
    %v2399 = vld [vmem:[%s1380 + $0x4] sm:$0x1]
    %v2400 = vperm.slane %v2399, 0
    %v2401 = vadd.f32 %v2397, %v2400
    %v2402 = vadd.f32 %v2398, %v2400
    %v2403 = vld [vmem:[%s1380 + $0x2] sm:$0x1]
    %v2404 = vld [vmem:[%s1380 + $0x3] sm:$0x1]
    %v2405 = vsel %vm141, %v2401, 0.0
    %2406 = vadd.xlane.f32.xlu0 %v2405
    %v2407 = vpop.xlane.xlu0 %2406
    %v2408 = vsel %vm141, %v2402, 0.0
    %2409 = vadd.xlane.f32.xlu0 %v2408
    %v2410 = vpop.xlane.xlu0 %2409
    %v2411 = vmul.f32 %v2407, %v154
    %v2412 = vmul.f32 %v2410, %v154
    %v2413 = vsub.f32 %v2401, %v2411
    %v2414 = vsub.f32 %v2402, %v2412
    %v2415 = vmul.f32 %v2413, %v2413
    %v2416 = vmul.f32 %v2414, %v2414
    %v2417 = vsel %vm141, %v2415, 0.0
    %2418 = vadd.xlane.f32.xlu0 %v2417
    %v2419 = vpop.xlane.xlu0 %2418
    %v2420 = vsel %vm141, %v2416, 0.0
    %2421 = vadd.xlane.f32.xlu0 %v2420
    %v2422 = vpop.xlane.xlu0 %2421
    %v2423 = vmul.f32 %v2419, %v154
    %v2424 = vmul.f32 %v2422, %v154
    %v2425 = vadd.f32 %v2423, 1e-05
    %v2426 = vadd.f32 %v2424, 1e-05
    %v2427 = vrsqrt.pop %v2425
    %v2428 = vmul.f32 %v2427, %v2425
    %v2429 = vmul.f32 %v2428, %v2427
    %v2430 = vmul.f32 0.5, %v2429
    %v2431 = vsub.f32 1.5, %v2430
    %v2432 = vmul.f32 %v2427, %v2431
    %vm2433 = vweird.f32 %v2425
    %vm2434 = vweird.f32 %v2427
    %vm2435 = vmor %vm2433, %vm2434
    %v2436 = vsel %vm2435, %v2427, %v2432
    %v2437 = vrsqrt.pop %v2426
    %v2438 = vmul.f32 %v2437, %v2426
    %v2439 = vmul.f32 %v2438, %v2437
    %v2440 = vmul.f32 0.5, %v2439
    %v2441 = vsub.f32 1.5, %v2440
    %v2442 = vmul.f32 %v2437, %v2441
    %vm2443 = vweird.f32 %v2426
    %vm2444 = vweird.f32 %v2437
    %vm2445 = vmor %vm2443, %vm2444
    %v2446 = vsel %vm2445, %v2437, %v2442
    %v2447 = vmul.f32 %v2413, %v2436
    %v2448 = vmul.f32 %v2414, %v2446
    %v2449 = vperm.slane %v2403, 0
    %v2450 = vmul.f32 %v2449, %v2447
    %v2451 = vmul.f32 %v2449, %v2448
    %v2452 = vperm.slane %v2404, 0
    %v2453 = vadd.f32 %v2450, %v2452
    %v2454 = vadd.f32 %v2451, %v2452
    %s2455 = scalar_lea.vmem %s5, 32
    %v2456 = vld [vmem:[%s2455] sm:$0xff]
    %v2457 = vld [vmem:[%s2455 + $0x8] sm:$0xff]
    %v2458 = vld [vmem:[%s2455 + $0x10] sm:$0xff]
    %v2459 = vld [vmem:[%s2455 + $0x18] sm:$0xff]
    %v2460 = vld [vmem:[%s1380 + $0x5] sm:$0x1]
    %v2461 = vperm.slane %v2460, 0
    %v2463 = vsel %vm141, %v2453, 0
    %v2466 = vsel %vm141, %v2454, 0
    %2468 = vmatpush.msra.mxu0 0.0
    %2469 = vmatpush.msra.mxu0 0.0
    %2470 = vmatpush.msra.mxu0 0.0
    %2471 = vmatpush.msra.mxu0 0.0
    %2472 = vmatpush.msra.mxu0 0.0
    %2473 = vmatpush.msra.mxu0 0.0
    %2474 = vmatpush.msra.mxu0 0.0
    %2475 = vmatpush.msra.mxu0 0.0
    %2476 = vmatpush.msra.mxu0 0.0
    %2477 = vmatpush.msra.mxu0 0.0
    %2478 = vmatpush.msra.mxu0 0.0
    %2479 = vmatpush.msra.mxu0 0.0
    %2480 = vmatpush.msra.mxu0 %v2459
    %2481 = vmatpush.msra.mxu0 %v2458
    %2482 = vmatpush.msra.mxu0 %v2457
    %2483 = vmatpush.msra.mxu0 %v2456
    %2484 = vmatmul.f32.gmra.mxu0 %v2463
    %v2485 = vpop.f32.mrf.mxu0
    %v2486 = vadd.f32 %v2461, %v2485
    %2487 = vmatmul.f32.gmra.mxu0 %v2466
    %v2488 = vpop.f32.mrf.mxu0
    %v2489 = vadd.f32 %v2461, %v2488
    %2490 = vdwg.mxu0
    %v2491 = vmul.f32 %v2486, 0.5
    %v2492 = vmul.f32 %v2489, 0.5
    %v2493 = vmul.f32 %v2486, 0.70710677
    %v2494 = vmul.f32 %v2489, 0.70710677
    %v2495 = vand.u32 2147483647, %v2493
    %v2496 = vand.u32 2147483647, %v2494
    %v2497 = vmul.f32 %v2495, 0.3275911
    %v2498 = vmul.f32 %v2496, 0.3275911
    %v2499 = vadd.f32 %v2497, 1.0
    %v2500 = vadd.f32 %v2498, 1.0
    %v2501 = vrcp.pop %v2499
    %v2502 = vmul.f32 %v2499, %v2501
    %v2503 = vsub.f32 1.0, %v2502
    %v2504 = vmul.f32 %v2501, %v2503
    %v2505 = vadd.f32 %v2501, %v2504
    %vm2506 = vweird.f32 %v2499
    %vm2507 = vweird.f32 %v2501
    %vm2508 = vmor %vm2506, %vm2507
    %v2509 = vsel %vm2508, %v2501, %v2505
    %v2510 = vand.u32 2147483647, %v2499
    %vm2511 = vcmp.eq.f32.partialorder %v2510, 8.507059e+37
    %v2512 = vand.u32 %v2499, 2147483648
    %v2513 = vor.u32 1.1754944e-38, %v2512
    %v2514 = vsel %vm2511, %v2513, %v2509
    %v2515 = vmul.f32 1.0, %v2514
    %v2516 = vrcp.pop %v2500
    %v2517 = vmul.f32 %v2500, %v2516
    %v2518 = vsub.f32 1.0, %v2517
    %v2519 = vmul.f32 %v2516, %v2518
    %v2520 = vadd.f32 %v2516, %v2519
    %vm2521 = vweird.f32 %v2500
    %vm2522 = vweird.f32 %v2516
    %vm2523 = vmor %vm2521, %vm2522
    %v2524 = vsel %vm2523, %v2516, %v2520
    %v2525 = vand.u32 2147483647, %v2500
    %vm2526 = vcmp.eq.f32.partialorder %v2525, 8.507059e+37
    %v2527 = vand.u32 %v2500, 2147483648
    %v2528 = vor.u32 1.1754944e-38, %v2527
    %v2529 = vsel %vm2526, %v2528, %v2524
    %v2530 = vmul.f32 1.0, %v2529
    %v2531 = vmul.f32 %v2515, 1.0614054
    %v2532 = vmul.f32 %v2530, 1.0614054
    %v2533 = vadd.f32 %v2531, -1.4531521
    %v2534 = vadd.f32 %v2532, -1.4531521
    %v2535 = vmul.f32 %v2533, %v2515
    %v2536 = vmul.f32 %v2534, %v2530
    %v2537 = vadd.f32 %v2535, 1.4214138
    %v2538 = vadd.f32 %v2536, 1.4214138
    %v2539 = vmul.f32 %v2537, %v2515
    %v2540 = vmul.f32 %v2538, %v2530
    %v2541 = vadd.f32 %v2539, -0.28449672
    %v2542 = vadd.f32 %v2540, -0.28449672
    %v2543 = vmul.f32 %v2541, %v2515
    %v2544 = vmul.f32 %v2542, %v2530
    %v2545 = vadd.f32 %v2543, 0.2548296
    %v2546 = vadd.f32 %v2544, 0.2548296
    %v2547 = vmul.f32 %v2545, %v2515
    %v2548 = vmul.f32 %v2546, %v2530
    %v2549 = vsub.f32 0.0, %v2495
    %v2550 = vsub.f32 0.0, %v2496
    %v2551 = vmul.f32 %v2549, %v2495
    %v2552 = vmul.f32 %v2550, %v2496
    %v2553 = vmul.f32 %v2551, 1.442695
    %v2554 = vpow.pop %v2553
    %v2555 = vmul.f32 %v2552, 1.442695
    %v2556 = vpow.pop %v2555
    %v2557 = vmul.f32 %v2547, %v2554
    %v2558 = vmul.f32 %v2548, %v2556
    %v2559 = vsub.f32 1.0, %v2557
    %v2560 = vsub.f32 1.0, %v2558
    %vm2561 = vcmp.ge.f32.partialorder %v2493, 0.0
    %vm2562 = vcmp.ge.f32.partialorder %v2494, 0.0
    %v2563 = vsub.f32 0.0, %v2559
    %v2564 = vsub.f32 0.0, %v2560
    %v2565 = vsel %vm2561, %v2559, %v2563
    %v2566 = vsel %vm2562, %v2560, %v2564
    %v2567 = vadd.f32 %v2565, 1.0
    %v2568 = vadd.f32 %v2566, 1.0
    %v2569 = vmul.f32 %v2491, %v2567
    %v2570 = vmul.f32 %v2492, %v2568
    %s2571 = scalar_lea.vmem %s6, 128
    %v2572 = vld [vmem:[%s2571] sm:$0xff]
    %v2573 = vld [vmem:[%s2571 + $0x8] sm:$0xff]
    %v2574 = vld [vmem:[%s2571 + $0x10] sm:$0xff]
    %v2575 = vld [vmem:[%s2571 + $0x18] sm:$0xff]
    %v2576 = vld [vmem:[%s2571 + $0x20] sm:$0xff]
    %v2577 = vld [vmem:[%s2571 + $0x28] sm:$0xff]
    %v2578 = vld [vmem:[%s2571 + $0x30] sm:$0xff]
    %v2579 = vld [vmem:[%s2571 + $0x38] sm:$0xff]
    %v2580 = vld [vmem:[%s2571 + $0x40] sm:$0xff]
    %v2581 = vld [vmem:[%s2571 + $0x48] sm:$0xff]
    %v2582 = vld [vmem:[%s2571 + $0x50] sm:$0xff]
    %v2583 = vld [vmem:[%s2571 + $0x58] sm:$0xff]
    %v2584 = vld [vmem:[%s2571 + $0x60] sm:$0xff]
    %v2585 = vld [vmem:[%s2571 + $0x68] sm:$0xff]
    %v2586 = vld [vmem:[%s2571 + $0x70] sm:$0xff]
    %v2587 = vld [vmem:[%s2571 + $0x78] sm:$0xff]
    %v2588 = vld [vmem:[%s1380 + $0x6] sm:$0x1]
    %v2589 = vperm.slane %v2588, 0
    %2590 = vmatpush.msra.mxu0 %v2587
    %2591 = vmatpush.msra.mxu0 %v2586
    %2592 = vmatpush.msra.mxu0 %v2585
    %2593 = vmatpush.msra.mxu0 %v2584
    %2594 = vmatpush.msra.mxu0 %v2583
    %2595 = vmatpush.msra.mxu0 %v2582
    %2596 = vmatpush.msra.mxu0 %v2581
    %2597 = vmatpush.msra.mxu0 %v2580
    %2598 = vmatpush.msra.mxu0 %v2579
    %2599 = vmatpush.msra.mxu0 %v2578
    %2600 = vmatpush.msra.mxu0 %v2577
    %2601 = vmatpush.msra.mxu0 %v2576
    %2602 = vmatpush.msra.mxu0 %v2575
    %2603 = vmatpush.msra.mxu0 %v2574
    %2604 = vmatpush.msra.mxu0 %v2573
    %2605 = vmatpush.msra.mxu0 %v2572
    %2606 = vmatmul.f32.gmra.mxu0 %v2569
    %v2607 = vpop.f32.mrf.mxu0
    %v2608 = vadd.f32 %v2589, %v2607
    %2609 = vmatmul.f32.gmra.mxu0 %v2570
    %v2610 = vpop.f32.mrf.mxu0
    %v2611 = vadd.f32 %v2589, %v2610
    %2612 = vdwg.mxu0
    %v2613 = vadd.f32 %v2401, %v2608
    %v2614 = vadd.f32 %v2402, %v2611
    %s2615 = scalar_lea.vmem %s7, 16
    %v2616 = vld [vmem:[%s2615] sm:$0x1]
    %v2617 = vld [vmem:[%s2615 + $0x1] sm:$0x1]
    %v2618 = vsel %vm141, %v2613, 0.0
    %2619 = vadd.xlane.f32.xlu0 %v2618
    %v2620 = vpop.xlane.xlu0 %2619
    %v2621 = vsel %vm141, %v2614, 0.0
    %2622 = vadd.xlane.f32.xlu0 %v2621
    %v2623 = vpop.xlane.xlu0 %2622
    %v2624 = vmul.f32 %v2620, %v154
    %v2625 = vmul.f32 %v2623, %v154
    %v2626 = vsub.f32 %v2613, %v2624
    %v2627 = vsub.f32 %v2614, %v2625
    %v2628 = vmul.f32 %v2626, %v2626
    %v2629 = vmul.f32 %v2627, %v2627
    %v2630 = vsel %vm141, %v2628, 0.0
    %2631 = vadd.xlane.f32.xlu0 %v2630
    %v2632 = vpop.xlane.xlu0 %2631
    %v2633 = vsel %vm141, %v2629, 0.0
    %2634 = vadd.xlane.f32.xlu0 %v2633
    %v2635 = vpop.xlane.xlu0 %2634
    %v2636 = vmul.f32 %v2632, %v154
    %v2637 = vmul.f32 %v2635, %v154
    %v2638 = vadd.f32 %v2636, 1e-05
    %v2639 = vadd.f32 %v2637, 1e-05
    %v2640 = vrsqrt.pop %v2638
    %v2641 = vmul.f32 %v2640, %v2638
    %v2642 = vmul.f32 %v2641, %v2640
    %v2643 = vmul.f32 0.5, %v2642
    %v2644 = vsub.f32 1.5, %v2643
    %v2645 = vmul.f32 %v2640, %v2644
    %vm2646 = vweird.f32 %v2638
    %vm2647 = vweird.f32 %v2640
    %vm2648 = vmor %vm2646, %vm2647
    %v2649 = vsel %vm2648, %v2640, %v2645
    %v2650 = vrsqrt.pop %v2639
    %v2651 = vmul.f32 %v2650, %v2639
    %v2652 = vmul.f32 %v2651, %v2650
    %v2653 = vmul.f32 0.5, %v2652
    %v2654 = vsub.f32 1.5, %v2653
    %v2655 = vmul.f32 %v2650, %v2654
    %vm2656 = vweird.f32 %v2639
    %vm2657 = vweird.f32 %v2650
    %vm2658 = vmor %vm2656, %vm2657
    %v2659 = vsel %vm2658, %v2650, %v2655
    %v2660 = vmul.f32 %v2626, %v2649
    %v2661 = vmul.f32 %v2627, %v2659
    %v2662 = vperm.slane %v2616, 0
    %v2663 = vmul.f32 %v2662, %v2660
    %v2664 = vmul.f32 %v2662, %v2661
    %v2665 = vperm.slane %v2617, 0
    %v2666 = vadd.f32 %v2663, %v2665
    %v2667 = vadd.f32 %v2664, %v2665
    %v2668 = vld [vmem:[%s8] sm:$0xff]
    %v2669 = vld [vmem:[%s8 + $0x8] sm:$0xff]
    %v2670 = vld [vmem:[%s8 + $0x10] sm:$0xff]
    %v2671 = vld [vmem:[%s8 + $0x18] sm:$0xff]
    %v2672 = vld [vmem:[%s8 + $0x20] sm:$0xff]
    %v2673 = vld [vmem:[%s8 + $0x28] sm:$0xff]
    %v2674 = vld [vmem:[%s8 + $0x30] sm:$0xff]
    %v2675 = vld [vmem:[%s8 + $0x38] sm:$0xff]
    %v2677 = vsel %vm141, %v2666, 0
    %v2680 = vsel %vm141, %v2667, 0
    %2682 = vmatpush.msra.mxu0 0.0
    %2683 = vmatpush.msra.mxu0 0.0
    %2684 = vmatpush.msra.mxu0 0.0
    %2685 = vmatpush.msra.mxu0 0.0
    %2686 = vmatpush.msra.mxu0 0.0
    %2687 = vmatpush.msra.mxu0 0.0
    %2688 = vmatpush.msra.mxu0 0.0
    %2689 = vmatpush.msra.mxu0 0.0
    %2690 = vmatpush.msra.mxu0 0.0
    %2691 = vmatpush.msra.mxu0 0.0
    %2692 = vmatpush.msra.mxu0 0.0
    %2693 = vmatpush.msra.mxu0 0.0
    %2694 = vmatpush.msra.mxu0 %v2674
    %2695 = vmatpush.msra.mxu0 %v2672
    %2696 = vmatpush.msra.mxu0 %v2670
    %2697 = vmatpush.msra.mxu0 %v2668
    %2698 = vmatmul.f32.gmra.mxu0 %v2677
    %v2699 = vpop.f32.mrf.mxu0
    %v2700 = vadd.f32 0.0, %v2699
    %2701 = vmatmul.f32.gmra.mxu0 %v2680
    %v2702 = vpop.f32.mrf.mxu0
    %v2703 = vadd.f32 0.0, %v2702
    %2704 = vdwg.mxu0
    %2705 = vmatpush.msra.mxu0 0.0
    %2706 = vmatpush.msra.mxu0 0.0
    %2707 = vmatpush.msra.mxu0 0.0
    %2708 = vmatpush.msra.mxu0 0.0
    %2709 = vmatpush.msra.mxu0 0.0
    %2710 = vmatpush.msra.mxu0 0.0
    %2711 = vmatpush.msra.mxu0 0.0
    %2712 = vmatpush.msra.mxu0 0.0
    %2713 = vmatpush.msra.mxu0 0.0
    %2714 = vmatpush.msra.mxu0 0.0
    %2715 = vmatpush.msra.mxu0 0.0
    %2716 = vmatpush.msra.mxu0 0.0
    %2717 = vmatpush.msra.mxu0 %v2675
    %2718 = vmatpush.msra.mxu0 %v2673
    %2719 = vmatpush.msra.mxu0 %v2671
    %2720 = vmatpush.msra.mxu0 %v2669
    %2721 = vmatmul.f32.gmra.mxu0 %v2677
    %v2722 = vpop.f32.mrf.mxu0
    %v2723 = vadd.f32 0.0, %v2722
    %2724 = vmatmul.f32.gmra.mxu0 %v2680
    %v2725 = vpop.f32.mrf.mxu0
    %v2726 = vadd.f32 0.0, %v2725
    %2727 = vdwg.mxu0
    %2728 = vst [vmem:[#allocation2] sm:$0xff] %v2700
    %2729 = vst [vmem:[#allocation2 + $0x8] sm:$0xff] %v2723
    %2730 = vst [vmem:[#allocation2 + $0x10] sm:$0xff] %v2703
    %2731 = vst [vmem:[#allocation2 + $0x18] sm:$0xff] %v2726
    // Predicated region
    $region38: #{tpu_custom_call.1} parent=1 // pred_check
      _
    $region39: #{tpu_custom_call.1} parent=1 // pred_check_branch
      %2733 = sbr.rel (0) target = $region41
    $region40: #{tpu_custom_call.1} parent=1 // pred_region
      %2735 = vsyncadd [#allocation3], 0
      %s2736 = sshll.u32 [#allocation2], 4
      %s2737 = int_to_ptr.vmem [resolvable:$true] %s2736
      %s2738 = sshll.u32 %s9, 4
      %s2739 = int_to_ptr.hbm [resolvable:$true] %s2738
      %2744 = dma.vmem_to_hbm [thread:$0]  %s2737, 512, %s2739, [#allocation3], 256, 256, 16
    $region41: #{tpu_custom_call.1} parent=1 // pred_fallthru
      _
    // Predicated region
    $region42: #{tpu_custom_call.1} parent=1 // pred_check
      _
    $region43: #{tpu_custom_call.1} parent=1 // pred_check_branch
      %2746 = sbr.rel (0) target = $region45
    $region44: #{tpu_custom_call.1} parent=1 // pred_region
      %2748 = dma.done [#allocation3], 512
    $region45: #{tpu_custom_call.1} parent=1 // pred_fallthru
      _
    %2749 = vsyncpa [#allocation3], 1

</llo_original>
